<compile_context>
chip_gen: v6e
topology: v6e:2x2x1
jax: 0.10.0
libtpu: 0.0.40
codegen_flags: <defaults>
</compile_context>

<pallas_src>
import jax
import jax.numpy as jnp
from jax.experimental import pallas as pl
from jax.experimental.pallas import tpu as pltpu

_PAD = 2                # max halo (conv3: kernel_size=5 -> padding=2)
_CLS_LANES = 128        # lane-padded width for the 1-wide classifier


def _vmem_limit_bytes():
    """Derive the scoped VMEM limit from the actual chip (64 MiB/TC on v7x,
    128 MiB on v5e/v6e), with a conservative fallback."""
    cap = 64 * 1024 * 1024
    try:
        info = pltpu.get_tpu_info()
        cap = getattr(info, "vmem_capacity_bytes", cap) or cap
    except Exception:
        pass
    return int(cap) * 3 // 4


def _pick_batch_block(B, T):
    """Target ~512 rows of (Bblk*T) per program for MXU row utilization, but
    keep the grid at >=2 steps when B allows it (v7x megacore: 2 TCs)."""
    target_rows = 512
    bblk = max(1, min(B, target_rows // max(T, 1)))
    while B % bblk:
        bblk -= 1
    if B >= 2 and B // bblk < 2:
        bblk = max(1, B // 2)
        while B % bblk:
            bblk -= 1
    return bblk


# -----------------------------------------------------------------------------
# Fused forward kernel
# -----------------------------------------------------------------------------
def _make_fused_kernel(Bblk, T, C):
    M = Bblk * T

    def kernel(x_ref, w23_ref, b23_ref, w1_ref, b1_ref, wb2_ref, bb2_ref,
               wb1_ref, bb1_ref, wcls_ref, bcls_ref, y_ref, s_ref, pad_ref):
        # x_ref  : (Bblk, T, C) f32
        # w23_ref: (5, C, 2C) bf16  (cols [:C]=conv3 taps, cols [C:]=conv2 taps 1..3)
        # w1/wb2/wb1: (C, C) bf16;  wcls: (C, 128) bf16 (col 0 real)
        # biases : (1, N) f32
        # y_ref  : (Bblk, T, C) f32;  s_ref: (Bblk, T, 128) bf16
        # pad_ref: (Bblk, T+4, C) bf16 scratch with per-batch zero halos
        bf16 = jnp.bfloat16

        # Stage the input into the zero-halo scratch.  Only the 4 halo rows are
        # zeroed (interior rows are fully overwritten every grid step).
        xb = x_ref[...].astype(bf16)
        pad_ref[:, _PAD:_PAD + T, :] = xb
        pad_ref[:, 0:_PAD, :] = jnp.zeros((Bblk, _PAD, C), bf16)
        pad_ref[:, _PAD + T:_PAD + T + _PAD, :] = jnp.zeros((Bblk, _PAD, C), bf16)
        # TODO(synk): the per-tap slices below sit at non-8-aligned sublane
        # offsets; if the lowering materializes relayout copies, switch to a
        # lane-concat im2col build (one (M, 5C) matmul).

        # Fused conv3(K=5) + conv2(K=3) tap loop: 5 matmuls of N=2C, M=Bblk*T.
        acc = jnp.dot(pad_ref[:, 0:T, :].reshape(M, C), w23_ref[0],
                      preferred_element_type=jnp.float32)
        for k in range(1, 5):
            acc += jnp.dot(pad_ref[:, k:k + T, :].reshape(M, C), w23_ref[k],
                           preferred_element_type=jnp.float32)
        acc = acc + b23_ref[...]
        x23 = (jnp.maximum(acc[:, :C], 0.0)
               + jnp.maximum(acc[:, C:], 0.0)).astype(bf16)   # relu(conv3)+relu(conv2)

        # Pointwise tail on the same (M, C) block.
        x2d = x_ref[...].reshape(M, C).astype(bf16)
        x1 = jnp.maximum(
            jnp.dot(x2d, w1_ref[...], preferred_element_type=jnp.float32)
            + b1_ref[...], 0.0)
        y = jnp.maximum(
            jnp.dot(x23, wb2_ref[...], preferred_element_type=jnp.float32)
            + bb2_ref[...], 0.0) + x1
        y = jnp.maximum(
            jnp.dot(y.astype(bf16), wb1_ref[...], preferred_element_type=jnp.float32)
            + bb1_ref[...], 0.0)
        # TODO(synk): nn.Dropout(p=0.7) treated as identity (eval-mode semantics);
        # training-mode dropout would use pltpu.prng_seed / prng_random_bits here.
        y_ref[...] = y.reshape(Bblk, T, C).astype(y_ref.dtype)

        # Classifier + sigmoid (lane-padded to 128 columns, col 0 real).
        logits = jnp.dot(y.astype(bf16), wcls_ref[...],
                         preferred_element_type=jnp.float32) + bcls_ref[...]
        s_ref[...] = jax.nn.sigmoid(logits).reshape(Bblk, T, _CLS_LANES
                                                    ).astype(s_ref.dtype)

    return kernel


# -----------------------------------------------------------------------------
# One-time parameter preparation (outside jit): bf16 casts, conv2->conv3 tap
# fusion, lane-padded classifier.
# -----------------------------------------------------------------------------
def prepare_params(params):
    bf16 = jnp.bfloat16
    C = params["w1"].shape[1]
    # conv2 (K=3, pad=1) tap j aligns with conv3 (K=5, pad=2) tap k=j+1.
    w23 = jnp.zeros((5, C, 2 * C), jnp.float32)
    w23 = w23.at[:, :, :C].set(params["w3"])
    w23 = w23.at[1:4, :, C:].set(params["w2"])
    b23 = jnp.concatenate([params["b3"], params["b2"]]).reshape(1, 2 * C)
    wcls = jnp.zeros((C, _CLS_LANES), jnp.float32).at[:, 0].set(params["cls_w"][:, 0])
    bcls = jnp.zeros((1, _CLS_LANES), jnp.float32).at[0, 0].set(params["cls_b"][0])
    return dict(
        w23=w23.astype(bf16), b23=b23,
        w1=params["w1"][0].astype(bf16), b1=params["b1"].reshape(1, C),
        wb2=params["wb2"][0].astype(bf16), bb2=params["bb2"].reshape(1, C),
        wb1=params["wb1"][0].astype(bf16), bb1=params["bb1"].reshape(1, C),
        wcls=wcls.astype(bf16), bcls=bcls,
    )


# -----------------------------------------------------------------------------
# Model_sequence forward (single pallas_call)
# -----------------------------------------------------------------------------
def model_sequence_forward(x, prepared, is_training=False):
    """x: (B, T, n_feature) -> (x_out (B,T,C), sigmoid(classifier(x_out)) (B,T,1))."""
    # TODO(synk): is_training=True dropout path not implemented (identity dropout).
    B, T, C = x.shape
    assert C % 128 == 0, "n_feature must be a multiple of 128 for lane-aligned tiles"
    assert C <= 512, "fused single-kernel path keeps all weights VMEM resident"
    bblk = _pick_batch_block(B, T)
    grid = (B // bblk,)

    y, s = pl.pallas_call(
        _make_fused_kernel(bblk, T, C),
        out_shape=(jax.ShapeDtypeStruct((B, T, C), jnp.float32),
                   jax.ShapeDtypeStruct((B, T, _CLS_LANES), jnp.bfloat16)),
        grid=grid,
        in_specs=[
            pl.BlockSpec((bblk, T, C), lambda i: (i, 0, 0)),
            # Weight / bias blocks use constant index maps -> DMA'd once, resident.
            pl.BlockSpec((5, C, 2 * C), lambda i: (0, 0, 0)),
            pl.BlockSpec((1, 2 * C), lambda i: (0, 0)),
            pl.BlockSpec((C, C), lambda i: (0, 0)),
            pl.BlockSpec((1, C), lambda i: (0, 0)),
            pl.BlockSpec((C, C), lambda i: (0, 0)),
            pl.BlockSpec((1, C), lambda i: (0, 0)),
            pl.BlockSpec((C, C), lambda i: (0, 0)),
            pl.BlockSpec((1, C), lambda i: (0, 0)),
            pl.BlockSpec((C, _CLS_LANES), lambda i: (0, 0)),
            pl.BlockSpec((1, _CLS_LANES), lambda i: (0, 0)),
        ],
        out_specs=(pl.BlockSpec((bblk, T, C), lambda i: (i, 0, 0)),
                   pl.BlockSpec((bblk, T, _CLS_LANES), lambda i: (i, 0, 0))),
        scratch_shapes=[pltpu.VMEM((bblk, T + 2 * _PAD, C), jnp.bfloat16)],
        compiler_params=pltpu.CompilerParams(
            dimension_semantics=("parallel",),
            vmem_limit_bytes=_vmem_limit_bytes()),
    )(x, prepared["w23"], prepared["b23"],
      prepared["w1"], prepared["b1"],
      prepared["wb2"], prepared["bb2"],
      prepared["wb1"], prepared["bb1"],
      prepared["wcls"], prepared["bcls"])

    return y, s[:, :, :1].astype(jnp.float32)


# -----------------------------------------------------------------------------
# Pure-JAX reference (mirrors the bf16-matmul / f32-accumulate numerics)
# -----------------------------------------------------------------------------
def _ref_forward(x, p):
    B, T, C = x.shape
    bf16 = jnp.bfloat16
    relu = lambda v: jnp.maximum(v, 0.0)

    def conv(xin, w, b, pad):
        K = w.shape[0]
        xp = jnp.pad(xin, ((0, 0), (pad, pad), (0, 0))) if pad else xin
        acc = jnp.zeros((B, T, w.shape[2]), jnp.float32)
        for k in range(K):
            acc = acc + jnp.einsum("btc,cd->btd",
                                   xp[:, k:k + T, :].astype(bf16),
                                   w[k].astype(bf16),
                                   preferred_element_type=jnp.float32)
        return acc + b[None, None, :]

    x1 = relu(conv(x, p["w1"], p["b1"], 0))
    x2 = relu(conv(x, p["w2"], p["b2"], 1))
    x3 = relu(conv(x, p["w3"], p["b3"], 2))
    y = relu(conv(x2 + x3, p["wb2"], p["bb2"], 0)) + x1
    y = relu(conv(y, p["wb1"], p["bb1"], 0))
    logits = jnp.einsum("btc,cd->btd", y.astype(bf16), p["cls_w"].astype(bf16),
                        preferred_element_type=jnp.float32) + p["cls_b"][None, None, :]
    return y, jax.nn.sigmoid(logits)


# -----------------------------------------------------------------------------
# Deterministic parameter init (shapes follow the PyTorch module's __init__)
# NOTE: weight layout is (K, Cin, Cout) = transpose of PyTorch Conv1d's
# (Cout, Cin, K); importing real checkpoints requires a transpose.
# -----------------------------------------------------------------------------
def init_params(key, n_feature):
    def conv_init(k, cin, cout, ksize):
        kw, kb = jax.random.split(k)
        bound = (6.0 / (cin * ksize + cout * ksize)) ** 0.5   # xavier_uniform-style
        w = jax.random.uniform(kw, (ksize, cin, cout), jnp.float32, -bound, bound)
        b = 0.01 * jax.random.normal(kb, (cout,), jnp.float32)
        return w, b

    ks = jax.random.split(key, 6)
    p = {}
    p["w1"], p["b1"] = conv_init(ks[0], n_feature, n_feature, 1)     # conv1, k=1
    p["w2"], p["b2"] = conv_init(ks[1], n_feature, n_feature, 3)     # conv2, k=3
    p["w3"], p["b3"] = conv_init(ks[2], n_feature, n_feature, 5)     # conv3, k=5
    p["wb1"], p["bb1"] = conv_init(ks[3], n_feature, n_feature, 1)   # conv_b1, k=1
    p["wb2"], p["bb2"] = conv_init(ks[4], n_feature, n_feature, 1)   # conv_b2, k=1
    kcw, kcb = jax.random.split(ks[5])
    bound = (6.0 / (n_feature + 1)) ** 0.5
    p["cls_w"] = jax.random.uniform(kcw, (n_feature, 1), jnp.float32, -bound, bound)
    p["cls_b"] = 0.01 * jax.random.normal(kcb, (1,), jnp.float32)
    return p


if __name__ == "__main__":
    # Small, module-consistent shapes: x is (batch, time, n_feature)
    B, T, n_feature = 2, 16, 256

    key = jax.random.PRNGKey(0)
    kx, kp = jax.random.split(key)
    x = jax.random.normal(kx, (B, T, n_feature), jnp.float32)
    params = init_params(kp, n_feature)
    prepared = prepare_params(params)   # one-time bf16 cast / tap fusion / cls pad

    fwd = jax.jit(model_sequence_forward)
    out_x, out_s = jax.block_until_ready(fwd(x, prepared))

    # Sanity check against a pure-JAX reference with matching bf16 numerics.
    ref_x, ref_s = _ref_forward(x, params)
    assert out_x.shape == (B, T, n_feature), out_x.shape
    assert out_s.shape == (B, T, 1), out_s.shape
    assert jnp.allclose(out_x, ref_x, rtol=2e-2, atol=2e-2), "x output mismatch"
    assert jnp.allclose(out_s, ref_s, rtol=2e-2, atol=2e-2), "score output mismatch"

    print("KERNEL_OK")
</pallas_src>

<mosaic_0001>
module attributes {stable_mosaic.version = 11 : i64} {
  func.func @kernel(%arg0: i32, %arg1: memref<1x16x256xf32, #tpu.memory_space<vmem>>, %arg2: memref<5x256x512xbf16, #tpu.memory_space<vmem>>, %arg3: memref<1x512xf32, #tpu.memory_space<vmem>>, %arg4: memref<256x256xbf16, #tpu.memory_space<vmem>>, %arg5: memref<1x256xf32, #tpu.memory_space<vmem>>, %arg6: memref<256x256xbf16, #tpu.memory_space<vmem>>, %arg7: memref<1x256xf32, #tpu.memory_space<vmem>>, %arg8: memref<256x256xbf16, #tpu.memory_space<vmem>>, %arg9: memref<1x256xf32, #tpu.memory_space<vmem>>, %arg10: memref<256x128xbf16, #tpu.memory_space<vmem>>, %arg11: memref<1x128xf32, #tpu.memory_space<vmem>>, %arg12: memref<1x16x256xf32, #tpu.memory_space<vmem>>, %arg13: memref<1x16x128xbf16, #tpu.memory_space<vmem>>, %arg14: memref<1x20x256xbf16, #tpu.memory_space<vmem>>) attributes {dimension_semantics = [#tpu.dimension_semantics<parallel>], iteration_bounds = array<i64: 2>, scalar_prefetch = 0 : i64, scratch_operands = 1 : i64, tpu.core_type = #tpu.core_type<tc>, window_params = [{transform_indices = @transform_0, window_bounds = array<i64: 1, 16, 256>}, {pipeline_mode = #tpu.pipeline_mode<synchronous>, transform_indices = @transform_1, window_bounds = array<i64: 5, 256, 512>}, {pipeline_mode = #tpu.pipeline_mode<synchronous>, transform_indices = @transform_2, window_bounds = array<i64: 1, 512>}, {pipeline_mode = #tpu.pipeline_mode<synchronous>, transform_indices = @transform_3, window_bounds = array<i64: 256, 256>}, {pipeline_mode = #tpu.pipeline_mode<synchronous>, transform_indices = @transform_4, window_bounds = array<i64: 1, 256>}, {pipeline_mode = #tpu.pipeline_mode<synchronous>, transform_indices = @transform_5, window_bounds = array<i64: 256, 256>}, {pipeline_mode = #tpu.pipeline_mode<synchronous>, transform_indices = @transform_6, window_bounds = array<i64: 1, 256>}, {pipeline_mode = #tpu.pipeline_mode<synchronous>, transform_indices = @transform_7, window_bounds = array<i64: 256, 256>}, {pipeline_mode = #tpu.pipeline_mode<synchronous>, transform_indices = @transform_8, window_bounds = array<i64: 1, 256>}, {pipeline_mode = #tpu.pipeline_mode<synchronous>, transform_indices = @transform_9, window_bounds = array<i64: 256, 128>}, {pipeline_mode = #tpu.pipeline_mode<synchronous>, transform_indices = @transform_10, window_bounds = array<i64: 1, 128>}, {transform_indices = @transform_11, window_bounds = array<i64: 1, 16, 256>}, {transform_indices = @transform_12, window_bounds = array<i64: 1, 16, 128>}]} {
    %c0 = arith.constant 0 : index
    %c0_0 = arith.constant 0 : index
    %c0_1 = arith.constant 0 : index
    %0 = vector.load %arg1[%c0, %c0_0, %c0_1] : memref<1x16x256xf32, #tpu.memory_space<vmem>>, vector<1x16x256xf32>
    %1 = arith.truncf %0 : vector<1x16x256xf32> to vector<1x16x256xbf16>
    %c0_2 = arith.constant 0 : index
    %c2 = arith.constant 2 : index
    %c0_3 = arith.constant 0 : index
    %2 = vector.load %arg14[%c0_2, %c2, %c0_3] : memref<1x20x256xbf16, #tpu.memory_space<vmem>>, vector<1x16x256xbf16>
    tpu.vector_store %arg14[%c0_2, %c2, %c0_3], %1 {strides = array<i32>} : memref<1x20x256xbf16, #tpu.memory_space<vmem>>, vector<1x16x256xbf16>,
    %cst = arith.constant 0.000000e+00 : bf16
    %3 = vector.broadcast %cst : bf16 to vector<1x2x256xbf16>
    %c0_4 = arith.constant 0 : index
    %c0_5 = arith.constant 0 : index
    %c0_6 = arith.constant 0 : index
    %4 = vector.load %arg14[%c0_4, %c0_5, %c0_6] : memref<1x20x256xbf16, #tpu.memory_space<vmem>>, vector<1x2x256xbf16>
    tpu.vector_store %arg14[%c0_4, %c0_5, %c0_6], %3 {strides = array<i32>} : memref<1x20x256xbf16, #tpu.memory_space<vmem>>, vector<1x2x256xbf16>,
    %cst_7 = arith.constant 0.000000e+00 : bf16
    %5 = vector.broadcast %cst_7 : bf16 to vector<1x2x256xbf16>
    %c0_8 = arith.constant 0 : index
    %c18 = arith.constant 18 : index
    %c0_9 = arith.constant 0 : index
    %6 = vector.load %arg14[%c0_8, %c18, %c0_9] : memref<1x20x256xbf16, #tpu.memory_space<vmem>>, vector<1x2x256xbf16>
    tpu.vector_store %arg14[%c0_8, %c18, %c0_9], %5 {strides = array<i32>} : memref<1x20x256xbf16, #tpu.memory_space<vmem>>, vector<1x2x256xbf16>,
    %c0_10 = arith.constant 0 : index
    %c0_11 = arith.constant 0 : index
    %c0_12 = arith.constant 0 : index
    %7 = vector.load %arg14[%c0_10, %c0_11, %c0_12] : memref<1x20x256xbf16, #tpu.memory_space<vmem>>, vector<1x16x256xbf16>
    %8 = vector.shape_cast %7 : vector<1x16x256xbf16> to vector<16x256xbf16>
    %c0_13 = arith.constant 0 : index
    %c0_14 = arith.constant 0 : index
    %c0_15 = arith.constant 0 : index
    %9 = vector.load %arg2[%c0_13, %c0_14, %c0_15] : memref<5x256x512xbf16, #tpu.memory_space<vmem>>, vector<1x256x512xbf16>
    %10 = vector.shape_cast %9 : vector<1x256x512xbf16> to vector<256x512xbf16>
    %cst_16 = arith.constant dense<0.000000e+00> : vector<16x512xf32>
    %11 = tpu.matmul %8, %10, %cst_16 {dimension_numbers = #tpu.dot_dimension_numbers<[1], [0], [0], [1], [0, 0, 1, 1], [], []>} : vector<16x256xbf16>, vector<256x512xbf16>, vector<16x512xf32> -> vector<16x512xf32>
    %c0_17 = arith.constant 0 : index
    %c1 = arith.constant 1 : index
    %c0_18 = arith.constant 0 : index
    %12 = vector.load %arg14[%c0_17, %c1, %c0_18] : memref<1x20x256xbf16, #tpu.memory_space<vmem>>, vector<1x16x256xbf16>
    %13 = vector.shape_cast %12 : vector<1x16x256xbf16> to vector<16x256xbf16>
    %c1_19 = arith.constant 1 : index
    %c0_20 = arith.constant 0 : index
    %c0_21 = arith.constant 0 : index
    %14 = vector.load %arg2[%c1_19, %c0_20, %c0_21] : memref<5x256x512xbf16, #tpu.memory_space<vmem>>, vector<1x256x512xbf16>
    %15 = vector.shape_cast %14 : vector<1x256x512xbf16> to vector<256x512xbf16>
    %cst_22 = arith.constant dense<0.000000e+00> : vector<16x512xf32>
    %16 = tpu.matmul %13, %15, %cst_22 {dimension_numbers = #tpu.dot_dimension_numbers<[1], [0], [0], [1], [0, 0, 1, 1], [], []>} : vector<16x256xbf16>, vector<256x512xbf16>, vector<16x512xf32> -> vector<16x512xf32>
    %17 = arith.addf %11, %16 : vector<16x512xf32>
    %c0_23 = arith.constant 0 : index
    %c2_24 = arith.constant 2 : index
    %c0_25 = arith.constant 0 : index
    %18 = vector.load %arg14[%c0_23, %c2_24, %c0_25] : memref<1x20x256xbf16, #tpu.memory_space<vmem>>, vector<1x16x256xbf16>
    %19 = vector.shape_cast %18 : vector<1x16x256xbf16> to vector<16x256xbf16>
    %c2_26 = arith.constant 2 : index
    %c0_27 = arith.constant 0 : index
    %c0_28 = arith.constant 0 : index
    %20 = vector.load %arg2[%c2_26, %c0_27, %c0_28] : memref<5x256x512xbf16, #tpu.memory_space<vmem>>, vector<1x256x512xbf16>
    %21 = vector.shape_cast %20 : vector<1x256x512xbf16> to vector<256x512xbf16>
    %cst_29 = arith.constant dense<0.000000e+00> : vector<16x512xf32>
    %22 = tpu.matmul %19, %21, %cst_29 {dimension_numbers = #tpu.dot_dimension_numbers<[1], [0], [0], [1], [0, 0, 1, 1], [], []>} : vector<16x256xbf16>, vector<256x512xbf16>, vector<16x512xf32> -> vector<16x512xf32>
    %23 = arith.addf %17, %22 : vector<16x512xf32>
    %c0_30 = arith.constant 0 : index
    %c3 = arith.constant 3 : index
    %c0_31 = arith.constant 0 : index
    %24 = vector.load %arg14[%c0_30, %c3, %c0_31] : memref<1x20x256xbf16, #tpu.memory_space<vmem>>, vector<1x16x256xbf16>
    %25 = vector.shape_cast %24 : vector<1x16x256xbf16> to vector<16x256xbf16>
    %c3_32 = arith.constant 3 : index
    %c0_33 = arith.constant 0 : index
    %c0_34 = arith.constant 0 : index
    %26 = vector.load %arg2[%c3_32, %c0_33, %c0_34] : memref<5x256x512xbf16, #tpu.memory_space<vmem>>, vector<1x256x512xbf16>
    %27 = vector.shape_cast %26 : vector<1x256x512xbf16> to vector<256x512xbf16>
    %cst_35 = arith.constant dense<0.000000e+00> : vector<16x512xf32>
    %28 = tpu.matmul %25, %27, %cst_35 {dimension_numbers = #tpu.dot_dimension_numbers<[1], [0], [0], [1], [0, 0, 1, 1], [], []>} : vector<16x256xbf16>, vector<256x512xbf16>, vector<16x512xf32> -> vector<16x512xf32>
    %29 = arith.addf %23, %28 : vector<16x512xf32>
    %c0_36 = arith.constant 0 : index
    %c4 = arith.constant 4 : index
    %c0_37 = arith.constant 0 : index
    %30 = vector.load %arg14[%c0_36, %c4, %c0_37] : memref<1x20x256xbf16, #tpu.memory_space<vmem>>, vector<1x16x256xbf16>
    %31 = vector.shape_cast %30 : vector<1x16x256xbf16> to vector<16x256xbf16>
    %c4_38 = arith.constant 4 : index
    %c0_39 = arith.constant 0 : index
    %c0_40 = arith.constant 0 : index
    %32 = vector.load %arg2[%c4_38, %c0_39, %c0_40] : memref<5x256x512xbf16, #tpu.memory_space<vmem>>, vector<1x256x512xbf16>
    %33 = vector.shape_cast %32 : vector<1x256x512xbf16> to vector<256x512xbf16>
    %cst_41 = arith.constant dense<0.000000e+00> : vector<16x512xf32>
    %34 = tpu.matmul %31, %33, %cst_41 {dimension_numbers = #tpu.dot_dimension_numbers<[1], [0], [0], [1], [0, 0, 1, 1], [], []>} : vector<16x256xbf16>, vector<256x512xbf16>, vector<16x512xf32> -> vector<16x512xf32>
    %35 = arith.addf %29, %34 : vector<16x512xf32>
    %c0_42 = arith.constant 0 : index
    %c0_43 = arith.constant 0 : index
    %36 = vector.load %arg3[%c0_42, %c0_43] : memref<1x512xf32, #tpu.memory_space<vmem>>, vector<1x512xf32>
    %37 = vector.broadcast %36 : vector<1x512xf32> to vector<16x512xf32>
    %38 = arith.addf %35, %37 : vector<16x512xf32>
    %39 = vector.extract_strided_slice %38 {offsets = [0, 0], sizes = [16, 256], strides = [1, 1]} : vector<16x512xf32> to vector<16x256xf32>
    %cst_44 = arith.constant 0.000000e+00 : f32
    %40 = vector.broadcast %cst_44 : f32 to vector<16x256xf32>
    %41 = arith.maximumf %39, %40 : vector<16x256xf32>
    %42 = vector.extract_strided_slice %38 {offsets = [0, 256], sizes = [16, 256], strides = [1, 1]} : vector<16x512xf32> to vector<16x256xf32>
    %cst_45 = arith.constant 0.000000e+00 : f32
    %43 = vector.broadcast %cst_45 : f32 to vector<16x256xf32>
    %44 = arith.maximumf %42, %43 : vector<16x256xf32>
    %45 = arith.addf %41, %44 : vector<16x256xf32>
    %46 = arith.truncf %45 : vector<16x256xf32> to vector<16x256xbf16>
    %c0_46 = arith.constant 0 : index
    %c0_47 = arith.constant 0 : index
    %c0_48 = arith.constant 0 : index
    %47 = vector.load %arg1[%c0_46, %c0_47, %c0_48] : memref<1x16x256xf32, #tpu.memory_space<vmem>>, vector<1x16x256xf32>
    %48 = vector.shape_cast %47 : vector<1x16x256xf32> to vector<16x256xf32>
    %49 = arith.truncf %48 : vector<16x256xf32> to vector<16x256xbf16>
    %c0_49 = arith.constant 0 : index
    %c0_50 = arith.constant 0 : index
    %50 = vector.load %arg4[%c0_49, %c0_50] : memref<256x256xbf16, #tpu.memory_space<vmem>>, vector<256x256xbf16>
    %cst_51 = arith.constant dense<0.000000e+00> : vector<16x256xf32>
    %51 = tpu.matmul %49, %50, %cst_51 {dimension_numbers = #tpu.dot_dimension_numbers<[1], [0], [0], [1], [0, 0, 1, 1], [], []>} : vector<16x256xbf16>, vector<256x256xbf16>, vector<16x256xf32> -> vector<16x256xf32>
    %c0_52 = arith.constant 0 : index
    %c0_53 = arith.constant 0 : index
    %52 = vector.load %arg5[%c0_52, %c0_53] : memref<1x256xf32, #tpu.memory_space<vmem>>, vector<1x256xf32>
    %53 = vector.broadcast %52 : vector<1x256xf32> to vector<16x256xf32>
    %54 = arith.addf %51, %53 : vector<16x256xf32>
    %cst_54 = arith.constant 0.000000e+00 : f32
    %55 = vector.broadcast %cst_54 : f32 to vector<16x256xf32>
    %56 = arith.maximumf %54, %55 : vector<16x256xf32>
    %c0_55 = arith.constant 0 : index
    %c0_56 = arith.constant 0 : index
    %57 = vector.load %arg6[%c0_55, %c0_56] : memref<256x256xbf16, #tpu.memory_space<vmem>>, vector<256x256xbf16>
    %cst_57 = arith.constant dense<0.000000e+00> : vector<16x256xf32>
    %58 = tpu.matmul %46, %57, %cst_57 {dimension_numbers = #tpu.dot_dimension_numbers<[1], [0], [0], [1], [0, 0, 1, 1], [], []>} : vector<16x256xbf16>, vector<256x256xbf16>, vector<16x256xf32> -> vector<16x256xf32>
    %c0_58 = arith.constant 0 : index
    %c0_59 = arith.constant 0 : index
    %59 = vector.load %arg7[%c0_58, %c0_59] : memref<1x256xf32, #tpu.memory_space<vmem>>, vector<1x256xf32>
    %60 = vector.broadcast %59 : vector<1x256xf32> to vector<16x256xf32>
    %61 = arith.addf %58, %60 : vector<16x256xf32>
    %cst_60 = arith.constant 0.000000e+00 : f32
    %62 = vector.broadcast %cst_60 : f32 to vector<16x256xf32>
    %63 = arith.maximumf %61, %62 : vector<16x256xf32>
    %64 = arith.addf %63, %56 : vector<16x256xf32>
    %65 = arith.truncf %64 : vector<16x256xf32> to vector<16x256xbf16>
    %c0_61 = arith.constant 0 : index
    %c0_62 = arith.constant 0 : index
    %66 = vector.load %arg8[%c0_61, %c0_62] : memref<256x256xbf16, #tpu.memory_space<vmem>>, vector<256x256xbf16>
    %cst_63 = arith.constant dense<0.000000e+00> : vector<16x256xf32>
    %67 = tpu.matmul %65, %66, %cst_63 {dimension_numbers = #tpu.dot_dimension_numbers<[1], [0], [0], [1], [0, 0, 1, 1], [], []>} : vector<16x256xbf16>, vector<256x256xbf16>, vector<16x256xf32> -> vector<16x256xf32>
    %c0_64 = arith.constant 0 : index
    %c0_65 = arith.constant 0 : index
    %68 = vector.load %arg9[%c0_64, %c0_65] : memref<1x256xf32, #tpu.memory_space<vmem>>, vector<1x256xf32>
    %69 = vector.broadcast %68 : vector<1x256xf32> to vector<16x256xf32>
    %70 = arith.addf %67, %69 : vector<16x256xf32>
    %cst_66 = arith.constant 0.000000e+00 : f32
    %71 = vector.broadcast %cst_66 : f32 to vector<16x256xf32>
    %72 = arith.maximumf %70, %71 : vector<16x256xf32>
    %73 = vector.shape_cast %72 : vector<16x256xf32> to vector<1x16x256xf32>
    %c0_67 = arith.constant 0 : index
    %c0_68 = arith.constant 0 : index
    %c0_69 = arith.constant 0 : index
    %74 = vector.load %arg12[%c0_67, %c0_68, %c0_69] : memref<1x16x256xf32, #tpu.memory_space<vmem>>, vector<1x16x256xf32>
    tpu.vector_store %arg12[%c0_67, %c0_68, %c0_69], %73 {strides = array<i32>} : memref<1x16x256xf32, #tpu.memory_space<vmem>>, vector<1x16x256xf32>,
    %75 = arith.truncf %72 : vector<16x256xf32> to vector<16x256xbf16>
    %c0_70 = arith.constant 0 : index
    %c0_71 = arith.constant 0 : index
    %76 = vector.load %arg10[%c0_70, %c0_71] : memref<256x128xbf16, #tpu.memory_space<vmem>>, vector<256x128xbf16>
    %cst_72 = arith.constant dense<0.000000e+00> : vector<16x128xf32>
    %77 = tpu.matmul %75, %76, %cst_72 {dimension_numbers = #tpu.dot_dimension_numbers<[1], [0], [0], [1], [0, 0, 1, 1], [], []>} : vector<16x256xbf16>, vector<256x128xbf16>, vector<16x128xf32> -> vector<16x128xf32>
    %c0_73 = arith.constant 0 : index
    %c0_74 = arith.constant 0 : index
    %78 = vector.load %arg11[%c0_73, %c0_74] : memref<1x128xf32, #tpu.memory_space<vmem>>, vector<1x128xf32>
    %79 = vector.broadcast %78 : vector<1x128xf32> to vector<16x128xf32>
    %80 = arith.addf %77, %79 : vector<16x128xf32>
    %81 = arith.negf %80 : vector<16x128xf32>
    %82 = math.exp %81 : vector<16x128xf32>
    %cst_75 = arith.constant 1.000000e+00 : f32
    %83 = vector.broadcast %cst_75 : f32 to vector<16x128xf32>
    %84 = arith.addf %83, %82 : vector<16x128xf32>
    %85 = arith.divf %83, %84 : vector<16x128xf32>
    %86 = vector.shape_cast %85 : vector<16x128xf32> to vector<1x16x128xf32>
    %87 = arith.truncf %86 : vector<1x16x128xf32> to vector<1x16x128xbf16>
    %c0_76 = arith.constant 0 : index
    %c0_77 = arith.constant 0 : index
    %c0_78 = arith.constant 0 : index
    %88 = vector.load %arg13[%c0_76, %c0_77, %c0_78] : memref<1x16x128xbf16, #tpu.memory_space<vmem>>, vector<1x16x128xbf16>
    tpu.vector_store %arg13[%c0_76, %c0_77, %c0_78], %87 {strides = array<i32>} : memref<1x16x128xbf16, #tpu.memory_space<vmem>>, vector<1x16x128xbf16>,
    return
  }
  func.func @transform_0(%arg0: i32) -> (i32, i32, i32) {
    %c0_i32 = arith.constant 0 : i32
    %c0_i32_0 = arith.constant 0 : i32
    %c0_i32_1 = arith.constant 0 : i32
    return %arg0, %c0_i32, %c0_i32_0 : i32, i32, i32
  }
  func.func @transform_1(%arg0: i32) -> (i32, i32, i32) {
    %c0_i32 = arith.constant 0 : i32
    %c0_i32_0 = arith.constant 0 : i32
    %c0_i32_1 = arith.constant 0 : i32
    %c0_i32_2 = arith.constant 0 : i32
    return %c0_i32, %c0_i32_0, %c0_i32_1 : i32, i32, i32
  }
  func.func @transform_2(%arg0: i32) -> (i32, i32) {
    %c0_i32 = arith.constant 0 : i32
    %c0_i32_0 = arith.constant 0 : i32
    %c0_i32_1 = arith.constant 0 : i32
    return %c0_i32, %c0_i32_0 : i32, i32
  }
  func.func @transform_3(%arg0: i32) -> (i32, i32) {
    %c0_i32 = arith.constant 0 : i32
    %c0_i32_0 = arith.constant 0 : i32
    %c0_i32_1 = arith.constant 0 : i32
    return %c0_i32, %c0_i32_0 : i32, i32
  }
  func.func @transform_4(%arg0: i32) -> (i32, i32) {
    %c0_i32 = arith.constant 0 : i32
    %c0_i32_0 = arith.constant 0 : i32
    %c0_i32_1 = arith.constant 0 : i32
    return %c0_i32, %c0_i32_0 : i32, i32
  }
  func.func @transform_5(%arg0: i32) -> (i32, i32) {
    %c0_i32 = arith.constant 0 : i32
    %c0_i32_0 = arith.constant 0 : i32
    %c0_i32_1 = arith.constant 0 : i32
    return %c0_i32, %c0_i32_0 : i32, i32
  }
  func.func @transform_6(%arg0: i32) -> (i32, i32) {
    %c0_i32 = arith.constant 0 : i32
    %c0_i32_0 = arith.constant 0 : i32
    %c0_i32_1 = arith.constant 0 : i32
    return %c0_i32, %c0_i32_0 : i32, i32
  }
  func.func @transform_7(%arg0: i32) -> (i32, i32) {
    %c0_i32 = arith.constant 0 : i32
    %c0_i32_0 = arith.constant 0 : i32
    %c0_i32_1 = arith.constant 0 : i32
    return %c0_i32, %c0_i32_0 : i32, i32
  }
  func.func @transform_8(%arg0: i32) -> (i32, i32) {
    %c0_i32 = arith.constant 0 : i32
    %c0_i32_0 = arith.constant 0 : i32
    %c0_i32_1 = arith.constant 0 : i32
    return %c0_i32, %c0_i32_0 : i32, i32
  }
  func.func @transform_9(%arg0: i32) -> (i32, i32) {
    %c0_i32 = arith.constant 0 : i32
    %c0_i32_0 = arith.constant 0 : i32
    %c0_i32_1 = arith.constant 0 : i32
    return %c0_i32, %c0_i32_0 : i32, i32
  }
  func.func @transform_10(%arg0: i32) -> (i32, i32) {
    %c0_i32 = arith.constant 0 : i32
    %c0_i32_0 = arith.constant 0 : i32
    %c0_i32_1 = arith.constant 0 : i32
    return %c0_i32, %c0_i32_0 : i32, i32
  }
  func.func @transform_11(%arg0: i32) -> (i32, i32, i32) {
    %c0_i32 = arith.constant 0 : i32
    %c0_i32_0 = arith.constant 0 : i32
    %c0_i32_1 = arith.constant 0 : i32
    return %arg0, %c0_i32, %c0_i32_0 : i32, i32, i32
  }
  func.func @transform_12(%arg0: i32) -> (i32, i32, i32) {
    %c0_i32 = arith.constant 0 : i32
    %c0_i32_0 = arith.constant 0 : i32
    %c0_i32_1 = arith.constant 0 : i32
    return %arg0, %c0_i32, %c0_i32_0 : i32, i32, i32
  }
}

</mosaic_0001>

<llo_original>
// kernel: model_sequence_forward.1
$region0: #{model_sequence_forward.1}
  #allocation0 [shape = 'u32[]', space=smem, size = 0x4, offset = 0x4, fixed_abs, tag = 'smem constant byte address 0x4 - core index']
  #allocation1 [shape = 'u32[144,128]{1,0:T(1,128)}', space=vmem, size = 0x12000, scoped, tag = 'internal scratch']
  #allocation2 [shape = 'bf16[1,20,256]{2,1,0:T(8,128)(2,1)}', space=vmem, size = 0x3000, scoped, tag = 'scratch operand']
  %s0 = inlined_call_operand.hbm [shape: f32[2,16,256], index: 0, kind: input, shape index: {}]
  %s1 = inlined_call_operand.hbm [shape: bf16[5,256,512], index: 1, kind: input, shape index: {}]
  %s2 = inlined_call_operand.hbm [shape: f32[1,512], index: 2, kind: input, shape index: {}]
  %s3 = inlined_call_operand.hbm [shape: bf16[256,256], index: 3, kind: input, shape index: {}]
  %s4 = inlined_call_operand.hbm [shape: f32[1,256], index: 4, kind: input, shape index: {}]
  %s5 = inlined_call_operand.hbm [shape: bf16[256,256], index: 5, kind: input, shape index: {}]
  %s6 = inlined_call_operand.hbm [shape: f32[1,256], index: 6, kind: input, shape index: {}]
  %s7 = inlined_call_operand.hbm [shape: bf16[256,256], index: 7, kind: input, shape index: {}]
  %s8 = inlined_call_operand.hbm [shape: f32[1,256], index: 8, kind: input, shape index: {}]
  %s9 = inlined_call_operand.hbm [shape: bf16[256,128], index: 9, kind: input, shape index: {}]
  %s10 = inlined_call_operand.hbm [shape: f32[1,128], index: 10, kind: input, shape index: {}]
  %s11 = inlined_call_operand.hbm [shape: f32[2,16,256], index: 11, kind: output, shape index: {0}]
  %s12 = inlined_call_operand.vmem [shape: bf16[2,16,128], index: 12, kind: output, shape index: {1}]
  %13 = xla_tuple %s11, %s12
  %s14 = sld [smem:[#allocation0]]
  $region129: #{model_sequence_forward.1} parent=0
    _
  %s16 = ssub.s32 1, %s14
  %s17 = scalar_select 0, %s16, %s14
  $region1: #{model_sequence_forward.1} parent=0
    #allocation3 [shape = 'u8[32768]{0}', space=vmem, size = 0x8000, scoped, tag = 'input window, operand 0']
    #allocation4 [shape = 's32[2]{0}', space=sflag, size = 0x8, scoped, tag = 'scoped memory for model_sequence_forward.1']
    #allocation5 [shape = 's32[2]{0}', space=sflag, size = 0x8, scoped, tag = 'scoped memory for model_sequence_forward.1']
    #allocation6 [shape = 'u8[1310720]{0}', space=vmem, size = 0x140000, scoped, tag = 'input window, operand 1, single buffered']
    #allocation7 [shape = 's32[1]{0}', space=sflag, size = 0x4, scoped, tag = 'scoped memory for model_sequence_forward.1']
    #allocation8 [shape = 'u8[2048]{0}', space=vmem, size = 0x800, scoped, tag = 'input window, operand 2, single buffered']
    #allocation9 [shape = 'u8[131072]{0}', space=vmem, size = 0x20000, scoped, tag = 'input window, operand 3, single buffered']
    #allocation10 [shape = 's32[1]{0}', space=sflag, size = 0x4, scoped, tag = 'scoped memory for model_sequence_forward.1']
    #allocation11 [shape = 'u8[1024]{0}', space=vmem, size = 0x400, scoped, tag = 'input window, operand 4, single buffered']
    #allocation12 [shape = 'u8[131072]{0}', space=vmem, size = 0x20000, scoped, tag = 'input window, operand 5, single buffered']
    #allocation13 [shape = 's32[1]{0}', space=sflag, size = 0x4, scoped, tag = 'scoped memory for model_sequence_forward.1']
    #allocation14 [shape = 'u8[1024]{0}', space=vmem, size = 0x400, scoped, tag = 'input window, operand 6, single buffered']
    #allocation15 [shape = 'u8[131072]{0}', space=vmem, size = 0x20000, scoped, tag = 'input window, operand 7, single buffered']
    #allocation16 [shape = 's32[1]{0}', space=sflag, size = 0x4, scoped, tag = 'scoped memory for model_sequence_forward.1']
    #allocation17 [shape = 'u8[1024]{0}', space=vmem, size = 0x400, scoped, tag = 'input window, operand 8, single buffered']
    #allocation18 [shape = 'u8[65536]{0}', space=vmem, size = 0x10000, scoped, tag = 'input window, operand 9, single buffered']
    #allocation19 [shape = 's32[1]{0}', space=sflag, size = 0x4, scoped, tag = 'scoped memory for model_sequence_forward.1']
    #allocation20 [shape = 'u8[512]{0}', space=vmem, size = 0x400, scoped, tag = 'input window, operand 10, single buffered']
    #allocation21 [shape = 'u8[32768]{0}', space=vmem, size = 0x8000, scoped, tag = 'output window, operand 0']
    %18 = vsyncpa [#allocation4], 0
    %s19 = scalar_lea.sflag [#allocation4], 1
    %20 = vsyncpa %s19, 0
    %21 = vsyncpa [#allocation7], 0
    %22 = vsyncpa [#allocation10], 0
    %23 = vsyncpa [#allocation13], 0
    %24 = vsyncpa [#allocation16], 0
    %25 = vsyncpa [#allocation19], 0
    %26 = vsyncpa [#allocation5], 0
    %s27 = scalar_lea.sflag [#allocation5], 1
    %28 = vsyncpa %s27, 0
    loop: start=0, step=1, limit=4
    $region2: #{model_sequence_forward.1} parent=1 // loop_pre_header
      _
    $region3: #{model_sequence_forward.1} parent=1 // loop_header
      %s30 = sphi 0, %s34
      %p31 = scmp.ge.s32.totalorder %s30, 4
      %s40 = sphi 0, %s42
      %s43 = sphi 0, %s40
      %s44 = sphi 0, %s43
      %s60 = sphi 0, %s44
      %s64 = sphi 0, %s64
      %s66 = sphi 0, %s64
      %s67 = sphi 0, %s66
      %s81 = sphi 0, %s67
      %s85 = sphi 0, %s85
      %s87 = sphi 0, %s85
      %s88 = sphi 0, %s87
      %s102 = sphi 0, %s88
      %s106 = sphi 0, %s106
      %s108 = sphi 0, %s106
      %s109 = sphi 0, %s108
      %s123 = sphi 0, %s109
      %s127 = sphi 0, %s127
      %s129 = sphi 0, %s127
      %s130 = sphi 0, %s129
      %s144 = sphi 0, %s130
      %s148 = sphi 0, %s148
      %s150 = sphi 0, %s148
      %s151 = sphi 0, %s150
      %s165 = sphi 0, %s151
      %s169 = sphi 0, %s169
      %s171 = sphi 0, %s169
      %s172 = sphi 0, %s171
      %s186 = sphi 0, %s172
      %s190 = sphi 0, %s190
      %s192 = sphi 0, %s190
      %s193 = sphi 0, %s192
      %s207 = sphi 0, %s193
      %s211 = sphi 0, %s211
      %s213 = sphi 0, %s211
      %s214 = sphi 0, %s213
      %s228 = sphi 0, %s214
      %s232 = sphi 0, %s232
      %s234 = sphi 0, %s232
      %s235 = sphi 0, %s234
      %s249 = sphi 0, %s235
      %s253 = sphi 0, %s253
      %s255 = sphi 0, %s253
      %s256 = sphi 0, %s255
      %s270 = sphi 0, %s256
      %s276 = sphi 0, %s278
      %s279 = sphi 0, %s276
      %s280 = sphi 0, %s279
      %s296 = sphi 0, %s280
      %s302 = sphi 0, %s304
      %s305 = sphi 0, %s302
      %s306 = sphi 0, %s305
      %s322 = sphi 0, %s306
    $region4: #{model_sequence_forward.1} parent=1 // loop_header_branch
      %33 = sbr.rel (%p31) target = $region8
    $region5: #{model_sequence_forward.1} parent=1 // loop_body
      %s35 = ssub.s32 %s30, 1
      %s36 = ssub.s32 %s30, 2
      %s37 = sadd.s32 %s30, 1
      %s38 = ssub.s32 %s30, %s37
      %p39 = scmp.eq.s32.totalorder %s38, 0
      %s41 = sadd.s32 %s40, 1
      %s42 = scalar_select %p39, %s40, %s41
      %p45 = pneg %p39
      %p46 = scmp.eq.s32.totalorder %s30, 1
      %p47 = por %p45, %p46
      %p48 = scmp.ne.s32.totalorder %s40, %s43
      %p49 = scmp.eq.s32.totalorder %s30, 0
      %p50 = por %p48, %p49
      %p51 = scmp.ne.s32.totalorder %s40, %s43
      %p52 = scmp.eq.s32.totalorder %s35, 1
      %p53 = por %p51, %p52
      %p54 = scmp.ne.s32.totalorder %s43, %s44
      %p55 = scmp.eq.s32.totalorder %s35, 0
      %p56 = por %p54, %p55
      %p57 = scmp.ne.s32.totalorder %s43, %s44
      %p58 = scmp.eq.s32.totalorder %s36, 1
      %p59 = por %p57, %p58
      %p61 = scmp.ne.s32.totalorder %s44, %s60
      %p62 = scmp.eq.s32.totalorder %s36, 0
      %p63 = por %p61, %p62
      %s65 = sadd.s32 %s64, 1
      %p68 = scmp.eq.s32.totalorder %s30, 1
      %p69 = scmp.ne.s32.totalorder %s64, %s66
      %p70 = scmp.eq.s32.totalorder %s30, 0
      %p71 = por %p69, %p70
      %p72 = scmp.ne.s32.totalorder %s64, %s66
      %p73 = scmp.eq.s32.totalorder %s35, 1
      %p74 = por %p72, %p73
      %p75 = scmp.ne.s32.totalorder %s66, %s67
      %p76 = scmp.eq.s32.totalorder %s35, 0
      %p77 = por %p75, %p76
      %p78 = scmp.ne.s32.totalorder %s66, %s67
      %p79 = scmp.eq.s32.totalorder %s36, 1
      %p80 = por %p78, %p79
      %p82 = scmp.ne.s32.totalorder %s67, %s81
      %p83 = scmp.eq.s32.totalorder %s36, 0
      %p84 = por %p82, %p83
      %s86 = sadd.s32 %s85, 1
      %p89 = scmp.eq.s32.totalorder %s30, 1
      %p90 = scmp.ne.s32.totalorder %s85, %s87
      %p91 = scmp.eq.s32.totalorder %s30, 0
      %p92 = por %p90, %p91
      %p93 = scmp.ne.s32.totalorder %s85, %s87
      %p94 = scmp.eq.s32.totalorder %s35, 1
      %p95 = por %p93, %p94
      %p96 = scmp.ne.s32.totalorder %s87, %s88
      %p97 = scmp.eq.s32.totalorder %s35, 0
      %p98 = por %p96, %p97
      %p99 = scmp.ne.s32.totalorder %s87, %s88
      %p100 = scmp.eq.s32.totalorder %s36, 1
      %p101 = por %p99, %p100
      %p103 = scmp.ne.s32.totalorder %s88, %s102
      %p104 = scmp.eq.s32.totalorder %s36, 0
      %p105 = por %p103, %p104
      %s107 = sadd.s32 %s106, 1
      %p110 = scmp.eq.s32.totalorder %s30, 1
      %p111 = scmp.ne.s32.totalorder %s106, %s108
      %p112 = scmp.eq.s32.totalorder %s30, 0
      %p113 = por %p111, %p112
      %p114 = scmp.ne.s32.totalorder %s106, %s108
      %p115 = scmp.eq.s32.totalorder %s35, 1
      %p116 = por %p114, %p115
      %p117 = scmp.ne.s32.totalorder %s108, %s109
      %p118 = scmp.eq.s32.totalorder %s35, 0
      %p119 = por %p117, %p118
      %p120 = scmp.ne.s32.totalorder %s108, %s109
      %p121 = scmp.eq.s32.totalorder %s36, 1
      %p122 = por %p120, %p121
      %p124 = scmp.ne.s32.totalorder %s109, %s123
      %p125 = scmp.eq.s32.totalorder %s36, 0
      %p126 = por %p124, %p125
      %s128 = sadd.s32 %s127, 1
      %p131 = scmp.eq.s32.totalorder %s30, 1
      %p132 = scmp.ne.s32.totalorder %s127, %s129
      %p133 = scmp.eq.s32.totalorder %s30, 0
      %p134 = por %p132, %p133
      %p135 = scmp.ne.s32.totalorder %s127, %s129
      %p136 = scmp.eq.s32.totalorder %s35, 1
      %p137 = por %p135, %p136
      %p138 = scmp.ne.s32.totalorder %s129, %s130
      %p139 = scmp.eq.s32.totalorder %s35, 0
      %p140 = por %p138, %p139
      %p141 = scmp.ne.s32.totalorder %s129, %s130
      %p142 = scmp.eq.s32.totalorder %s36, 1
      %p143 = por %p141, %p142
      %p145 = scmp.ne.s32.totalorder %s130, %s144
      %p146 = scmp.eq.s32.totalorder %s36, 0
      %p147 = por %p145, %p146
      %s149 = sadd.s32 %s148, 1
      %p152 = scmp.eq.s32.totalorder %s30, 1
      %p153 = scmp.ne.s32.totalorder %s148, %s150
      %p154 = scmp.eq.s32.totalorder %s30, 0
      %p155 = por %p153, %p154
      %p156 = scmp.ne.s32.totalorder %s148, %s150
      %p157 = scmp.eq.s32.totalorder %s35, 1
      %p158 = por %p156, %p157
      %p159 = scmp.ne.s32.totalorder %s150, %s151
      %p160 = scmp.eq.s32.totalorder %s35, 0
      %p161 = por %p159, %p160
      %p162 = scmp.ne.s32.totalorder %s150, %s151
      %p163 = scmp.eq.s32.totalorder %s36, 1
      %p164 = por %p162, %p163
      %p166 = scmp.ne.s32.totalorder %s151, %s165
      %p167 = scmp.eq.s32.totalorder %s36, 0
      %p168 = por %p166, %p167
      %s170 = sadd.s32 %s169, 1
      %p173 = scmp.eq.s32.totalorder %s30, 1
      %p174 = scmp.ne.s32.totalorder %s169, %s171
      %p175 = scmp.eq.s32.totalorder %s30, 0
      %p176 = por %p174, %p175
      %p177 = scmp.ne.s32.totalorder %s169, %s171
      %p178 = scmp.eq.s32.totalorder %s35, 1
      %p179 = por %p177, %p178
      %p180 = scmp.ne.s32.totalorder %s171, %s172
      %p181 = scmp.eq.s32.totalorder %s35, 0
      %p182 = por %p180, %p181
      %p183 = scmp.ne.s32.totalorder %s171, %s172
      %p184 = scmp.eq.s32.totalorder %s36, 1
      %p185 = por %p183, %p184
      %p187 = scmp.ne.s32.totalorder %s172, %s186
      %p188 = scmp.eq.s32.totalorder %s36, 0
      %p189 = por %p187, %p188
      %s191 = sadd.s32 %s190, 1
      %p194 = scmp.eq.s32.totalorder %s30, 1
      %p195 = scmp.ne.s32.totalorder %s190, %s192
      %p196 = scmp.eq.s32.totalorder %s30, 0
      %p197 = por %p195, %p196
      %p198 = scmp.ne.s32.totalorder %s190, %s192
      %p199 = scmp.eq.s32.totalorder %s35, 1
      %p200 = por %p198, %p199
      %p201 = scmp.ne.s32.totalorder %s192, %s193
      %p202 = scmp.eq.s32.totalorder %s35, 0
      %p203 = por %p201, %p202
      %p204 = scmp.ne.s32.totalorder %s192, %s193
      %p205 = scmp.eq.s32.totalorder %s36, 1
      %p206 = por %p204, %p205
      %p208 = scmp.ne.s32.totalorder %s193, %s207
      %p209 = scmp.eq.s32.totalorder %s36, 0
      %p210 = por %p208, %p209
      %s212 = sadd.s32 %s211, 1
      %p215 = scmp.eq.s32.totalorder %s30, 1
      %p216 = scmp.ne.s32.totalorder %s211, %s213
      %p217 = scmp.eq.s32.totalorder %s30, 0
      %p218 = por %p216, %p217
      %p219 = scmp.ne.s32.totalorder %s211, %s213
      %p220 = scmp.eq.s32.totalorder %s35, 1
      %p221 = por %p219, %p220
      %p222 = scmp.ne.s32.totalorder %s213, %s214
      %p223 = scmp.eq.s32.totalorder %s35, 0
      %p224 = por %p222, %p223
      %p225 = scmp.ne.s32.totalorder %s213, %s214
      %p226 = scmp.eq.s32.totalorder %s36, 1
      %p227 = por %p225, %p226
      %p229 = scmp.ne.s32.totalorder %s214, %s228
      %p230 = scmp.eq.s32.totalorder %s36, 0
      %p231 = por %p229, %p230
      %s233 = sadd.s32 %s232, 1
      %p236 = scmp.eq.s32.totalorder %s30, 1
      %p237 = scmp.ne.s32.totalorder %s232, %s234
      %p238 = scmp.eq.s32.totalorder %s30, 0
      %p239 = por %p237, %p238
      %p240 = scmp.ne.s32.totalorder %s232, %s234
      %p241 = scmp.eq.s32.totalorder %s35, 1
      %p242 = por %p240, %p241
      %p243 = scmp.ne.s32.totalorder %s234, %s235
      %p244 = scmp.eq.s32.totalorder %s35, 0
      %p245 = por %p243, %p244
      %p246 = scmp.ne.s32.totalorder %s234, %s235
      %p247 = scmp.eq.s32.totalorder %s36, 1
      %p248 = por %p246, %p247
      %p250 = scmp.ne.s32.totalorder %s235, %s249
      %p251 = scmp.eq.s32.totalorder %s36, 0
      %p252 = por %p250, %p251
      %s254 = sadd.s32 %s253, 1
      %p257 = scmp.eq.s32.totalorder %s30, 1
      %p258 = scmp.ne.s32.totalorder %s253, %s255
      %p259 = scmp.eq.s32.totalorder %s30, 0
      %p260 = por %p258, %p259
      %p261 = scmp.ne.s32.totalorder %s253, %s255
      %p262 = scmp.eq.s32.totalorder %s35, 1
      %p263 = por %p261, %p262
      %p264 = scmp.ne.s32.totalorder %s255, %s256
      %p265 = scmp.eq.s32.totalorder %s35, 0
      %p266 = por %p264, %p265
      %p267 = scmp.ne.s32.totalorder %s255, %s256
      %p268 = scmp.eq.s32.totalorder %s36, 1
      %p269 = por %p267, %p268
      %p271 = scmp.ne.s32.totalorder %s256, %s270
      %p272 = scmp.eq.s32.totalorder %s36, 0
      %p273 = por %p271, %p272
      %s274 = ssub.s32 %s30, %s37
      %p275 = scmp.eq.s32.totalorder %s274, 0
      %s277 = sadd.s32 %s276, 1
      %s278 = scalar_select %p275, %s276, %s277
      %p281 = pneg %p275
      %p282 = scmp.eq.s32.totalorder %s30, 1
      %p283 = por %p281, %p282
      %p284 = scmp.ne.s32.totalorder %s276, %s279
      %p285 = scmp.eq.s32.totalorder %s30, 0
      %p286 = por %p284, %p285
      %p287 = scmp.ne.s32.totalorder %s276, %s279
      %p288 = scmp.eq.s32.totalorder %s35, 1
      %p289 = por %p287, %p288
      %p290 = scmp.ne.s32.totalorder %s279, %s280
      %p291 = scmp.eq.s32.totalorder %s35, 0
      %p292 = por %p290, %p291
      %p293 = scmp.ne.s32.totalorder %s279, %s280
      %p294 = scmp.eq.s32.totalorder %s36, 1
      %p295 = por %p293, %p294
      %p297 = scmp.ne.s32.totalorder %s280, %s296
      %p298 = scmp.eq.s32.totalorder %s36, 0
      %p299 = por %p297, %p298
      %s300 = ssub.s32 %s30, %s37
      %p301 = scmp.eq.s32.totalorder %s300, 0
      %s303 = sadd.s32 %s302, 1
      %s304 = scalar_select %p301, %s302, %s303
      %p307 = pneg %p301
      %p308 = scmp.eq.s32.totalorder %s30, 1
      %p309 = por %p307, %p308
      %p310 = scmp.ne.s32.totalorder %s302, %s305
      %p311 = scmp.eq.s32.totalorder %s30, 0
      %p312 = por %p310, %p311
      %p313 = scmp.ne.s32.totalorder %s302, %s305
      %p314 = scmp.eq.s32.totalorder %s35, 1
      %p315 = por %p313, %p314
      %p316 = scmp.ne.s32.totalorder %s305, %s306
      %p317 = scmp.eq.s32.totalorder %s35, 0
      %p318 = por %p316, %p317
      %p319 = scmp.ne.s32.totalorder %s305, %s306
      %p320 = scmp.eq.s32.totalorder %s36, 1
      %p321 = por %p319, %p320
      %p323 = scmp.ne.s32.totalorder %s306, %s322
      %p324 = scmp.eq.s32.totalorder %s36, 0
      %p325 = por %p323, %p324
      %p326 = scmp.le.s32.totalorder 1, %s30
      %p327 = scmp.lt.s32.totalorder %s30, 3
      %p328 = pnand %p326, %p327
      %p329 = pneg %p328
      // Predicated region
      $region9: #{model_sequence_forward.1} parent=5 // pred_check
        _
      $region10: #{model_sequence_forward.1} parent=5 // pred_check_branch
        %331 = sbr.rel (%p328) target = $region12
      $region11: #{model_sequence_forward.1} parent=5 // pred_region
        %s332 = ssub.s32 %s30, 1
        // Predicated region
        $region13: #{model_sequence_forward.1} parent=11 // pred_check
          %p333 = pneg %p77
        $region14: #{model_sequence_forward.1} parent=11 // pred_check_branch
          %335 = sbr.rel (%p333) target = $region16
        $region15: #{model_sequence_forward.1} parent=11 // pred_region
          %s337 = ssub.s32 40960, 40960
          %338 = vsyncadd [#allocation7], %s337
          %s339 = sshll.u32 [#allocation6], 4
          %s340 = int_to_ptr.vmem [resolvable:$true] %s339
          %345 = dma.hbm_to_vmem [thread:$0]  %s1, 40960, %s340, [#allocation7], 256, 256, 16
        $region16: #{model_sequence_forward.1} parent=11 // pred_fallthru
          _
        // Predicated region
        $region17: #{model_sequence_forward.1} parent=11 // pred_check
          %p346 = pneg %p98
        $region18: #{model_sequence_forward.1} parent=11 // pred_check_branch
          %348 = sbr.rel (%p346) target = $region20
        $region19: #{model_sequence_forward.1} parent=11 // pred_region
          %s350 = ssub.s32 64, 64
          %351 = vsyncadd [#allocation7], %s350
          %s353 = sshll.u32 [#allocation8], 4
          %s354 = int_to_ptr.vmem [resolvable:$true] %s353
          %356 = dma.hbm_to_vmem [thread:$0]  %s2, 64, %s354, [#allocation7]
        $region20: #{model_sequence_forward.1} parent=11 // pred_fallthru
          _
        // Predicated region
        $region21: #{model_sequence_forward.1} parent=11 // pred_check
          %p357 = pneg %p119
        $region22: #{model_sequence_forward.1} parent=11 // pred_check_branch
          %359 = sbr.rel (%p357) target = $region24
        $region23: #{model_sequence_forward.1} parent=11 // pred_region
          %s361 = ssub.s32 4096, 4096
          %362 = vsyncadd [#allocation10], %s361
          %s363 = sshll.u32 [#allocation9], 4
          %s364 = int_to_ptr.vmem [resolvable:$true] %s363
          %369 = dma.hbm_to_vmem [thread:$0]  %s3, 4096, %s364, [#allocation10], 128, 128, 8
        $region24: #{model_sequence_forward.1} parent=11 // pred_fallthru
          _
        // Predicated region
        $region25: #{model_sequence_forward.1} parent=11 // pred_check
          %p370 = pneg %p140
        $region26: #{model_sequence_forward.1} parent=11 // pred_check_branch
          %372 = sbr.rel (%p370) target = $region28
        $region27: #{model_sequence_forward.1} parent=11 // pred_region
          %s374 = ssub.s32 32, 32
          %375 = vsyncadd [#allocation10], %s374
          %s377 = sshll.u32 [#allocation11], 4
          %s378 = int_to_ptr.vmem [resolvable:$true] %s377
          %380 = dma.hbm_to_vmem [thread:$0]  %s4, 32, %s378, [#allocation10]
        $region28: #{model_sequence_forward.1} parent=11 // pred_fallthru
          _
        // Predicated region
        $region29: #{model_sequence_forward.1} parent=11 // pred_check
          %p381 = pneg %p161
        $region30: #{model_sequence_forward.1} parent=11 // pred_check_branch
          %383 = sbr.rel (%p381) target = $region32
        $region31: #{model_sequence_forward.1} parent=11 // pred_region
          %s385 = ssub.s32 4096, 4096
          %386 = vsyncadd [#allocation13], %s385
          %s387 = sshll.u32 [#allocation12], 4
          %s388 = int_to_ptr.vmem [resolvable:$true] %s387
          %393 = dma.hbm_to_vmem [thread:$0]  %s5, 4096, %s388, [#allocation13], 128, 128, 8
        $region32: #{model_sequence_forward.1} parent=11 // pred_fallthru
          _
        // Predicated region
        $region33: #{model_sequence_forward.1} parent=11 // pred_check
          %p394 = pneg %p182
        $region34: #{model_sequence_forward.1} parent=11 // pred_check_branch
          %396 = sbr.rel (%p394) target = $region36
        $region35: #{model_sequence_forward.1} parent=11 // pred_region
          %s398 = ssub.s32 32, 32
          %399 = vsyncadd [#allocation13], %s398
          %s401 = sshll.u32 [#allocation14], 4
          %s402 = int_to_ptr.vmem [resolvable:$true] %s401
          %404 = dma.hbm_to_vmem [thread:$0]  %s6, 32, %s402, [#allocation13]
        $region36: #{model_sequence_forward.1} parent=11 // pred_fallthru
          _
        // Predicated region
        $region37: #{model_sequence_forward.1} parent=11 // pred_check
          %p405 = pneg %p203
        $region38: #{model_sequence_forward.1} parent=11 // pred_check_branch
          %407 = sbr.rel (%p405) target = $region40
        $region39: #{model_sequence_forward.1} parent=11 // pred_region
          %s409 = ssub.s32 4096, 4096
          %410 = vsyncadd [#allocation16], %s409
          %s411 = sshll.u32 [#allocation15], 4
          %s412 = int_to_ptr.vmem [resolvable:$true] %s411
          %417 = dma.hbm_to_vmem [thread:$0]  %s7, 4096, %s412, [#allocation16], 128, 128, 8
        $region40: #{model_sequence_forward.1} parent=11 // pred_fallthru
          _
        // Predicated region
        $region41: #{model_sequence_forward.1} parent=11 // pred_check
          %p418 = pneg %p224
        $region42: #{model_sequence_forward.1} parent=11 // pred_check_branch
          %420 = sbr.rel (%p418) target = $region44
        $region43: #{model_sequence_forward.1} parent=11 // pred_region
          %s422 = ssub.s32 32, 32
          %423 = vsyncadd [#allocation16], %s422
          %s425 = sshll.u32 [#allocation17], 4
          %s426 = int_to_ptr.vmem [resolvable:$true] %s425
          %428 = dma.hbm_to_vmem [thread:$0]  %s8, 32, %s426, [#allocation16]
        $region44: #{model_sequence_forward.1} parent=11 // pred_fallthru
          _
        // Predicated region
        $region45: #{model_sequence_forward.1} parent=11 // pred_check
          %p429 = pneg %p245
        $region46: #{model_sequence_forward.1} parent=11 // pred_check_branch
          %431 = sbr.rel (%p429) target = $region48
        $region47: #{model_sequence_forward.1} parent=11 // pred_region
          %s433 = ssub.s32 2048, 2048
          %434 = vsyncadd [#allocation19], %s433
          %s435 = sshll.u32 [#allocation18], 4
          %s436 = int_to_ptr.vmem [resolvable:$true] %s435
          %441 = dma.hbm_to_vmem [thread:$0]  %s9, 2048, %s436, [#allocation19], 64, 64, 4
        $region48: #{model_sequence_forward.1} parent=11 // pred_fallthru
          _
        // Predicated region
        $region49: #{model_sequence_forward.1} parent=11 // pred_check
          %p442 = pneg %p266
        $region50: #{model_sequence_forward.1} parent=11 // pred_check_branch
          %444 = sbr.rel (%p442) target = $region52
        $region51: #{model_sequence_forward.1} parent=11 // pred_region
          %s446 = ssub.s32 16, 16
          %447 = vsyncadd [#allocation19], %s446
          %s449 = sshll.u32 [#allocation20], 4
          %s450 = int_to_ptr.vmem [resolvable:$true] %s449
          %452 = dma.hbm_to_vmem [thread:$0]  %s10, 16, %s450, [#allocation19]
        $region52: #{model_sequence_forward.1} parent=11 // pred_fallthru
          _
      $region12: #{model_sequence_forward.1} parent=5 // pred_fallthru
        _
      %p453 = scmp.lt.s32.totalorder %s30, 2
      // Predicated region
      $region53: #{model_sequence_forward.1} parent=5 // pred_check
        %p454 = pneg %p453
      $region54: #{model_sequence_forward.1} parent=5 // pred_check_branch
        %456 = sbr.rel (%p454) target = $region56
      $region55: #{model_sequence_forward.1} parent=5 // pred_region
        // Predicated region
        $region57: #{model_sequence_forward.1} parent=55 // pred_check
          %p457 = pneg %p50
        $region58: #{model_sequence_forward.1} parent=55 // pred_check_branch
          %459 = sbr.rel (%p457) target = $region60
        $region59: #{model_sequence_forward.1} parent=55 // pred_region
          %s460 = sand.u32 %s40, 1
          %s461 = scalar_lea.sflag [#allocation4], %s460
          %s462 = sand.u32 %s40, 1
          %s463 = smul.addr %s462, 32
          %s464 = scalar_lea.vmem [#allocation3], %s463
          %s466 = ssub.s32 512, 512
          %467 = vsyncadd %s461, %s466
          %s468 = smul.addr %s30, 4
          %s469 = smul.addr %s468, 128
          %s470 = scalar_lea.hbm %s0, %s469
          %s471 = sshll.u32 %s464, 4
          %s472 = int_to_ptr.vmem [resolvable:$true] %s471
          %477 = dma.hbm_to_vmem [thread:$0]  %s470, 512, %s472, %s461, 256, 256, 16
        $region60: #{model_sequence_forward.1} parent=55 // pred_fallthru
          _
      $region56: #{model_sequence_forward.1} parent=5 // pred_fallthru
        _
      %p478 = scmp.le.s32.totalorder 1, %s30
      %p479 = scmp.lt.s32.totalorder %s30, 3
      %p480 = pnand %p478, %p479
      %p481 = pneg %p480
      // Predicated region
      $region61: #{model_sequence_forward.1} parent=5 // pred_check
        _
      $region62: #{model_sequence_forward.1} parent=5 // pred_check_branch
        %483 = sbr.rel (%p480) target = $region64
      $region63: #{model_sequence_forward.1} parent=5 // pred_region
        %s484 = ssub.s32 %s30, 1
        %s485 = sand.u32 %s43, 1
        %s486 = scalar_lea.sflag [#allocation4], %s485
        %s487 = sand.u32 %s43, 1
        %s488 = smul.addr %s487, 32
        %s489 = scalar_lea.vmem [#allocation3], %s488
        // Predicated region
        $region65: #{model_sequence_forward.1} parent=63 // pred_check
          %p490 = pneg %p56
        $region66: #{model_sequence_forward.1} parent=63 // pred_check_branch
          %492 = sbr.rel (%p490) target = $region68
        $region67: #{model_sequence_forward.1} parent=63 // pred_region
          %493 = dma.done %s486, 512
        $region68: #{model_sequence_forward.1} parent=63 // pred_fallthru
          _
        // Predicated region
        $region69: #{model_sequence_forward.1} parent=63 // pred_check
          %p494 = pneg %p77
        $region70: #{model_sequence_forward.1} parent=63 // pred_check_branch
          %496 = sbr.rel (%p494) target = $region72
        $region71: #{model_sequence_forward.1} parent=63 // pred_region
          %497 = dma.done [#allocation7], 40960
        $region72: #{model_sequence_forward.1} parent=63 // pred_fallthru
          _
        // Predicated region
        $region73: #{model_sequence_forward.1} parent=63 // pred_check
          %p498 = pneg %p98
        $region74: #{model_sequence_forward.1} parent=63 // pred_check_branch
          %500 = sbr.rel (%p498) target = $region76
        $region75: #{model_sequence_forward.1} parent=63 // pred_region
          %501 = dma.done [#allocation7], 64
        $region76: #{model_sequence_forward.1} parent=63 // pred_fallthru
          _
        // Predicated region
        $region77: #{model_sequence_forward.1} parent=63 // pred_check
          %p502 = pneg %p119
        $region78: #{model_sequence_forward.1} parent=63 // pred_check_branch
          %504 = sbr.rel (%p502) target = $region80
        $region79: #{model_sequence_forward.1} parent=63 // pred_region
          %505 = dma.done [#allocation10], 4096
        $region80: #{model_sequence_forward.1} parent=63 // pred_fallthru
          _
        // Predicated region
        $region81: #{model_sequence_forward.1} parent=63 // pred_check
          %p506 = pneg %p140
        $region82: #{model_sequence_forward.1} parent=63 // pred_check_branch
          %508 = sbr.rel (%p506) target = $region84
        $region83: #{model_sequence_forward.1} parent=63 // pred_region
          %509 = dma.done [#allocation10], 32
        $region84: #{model_sequence_forward.1} parent=63 // pred_fallthru
          _
        // Predicated region
        $region85: #{model_sequence_forward.1} parent=63 // pred_check
          %p510 = pneg %p161
        $region86: #{model_sequence_forward.1} parent=63 // pred_check_branch
          %512 = sbr.rel (%p510) target = $region88
        $region87: #{model_sequence_forward.1} parent=63 // pred_region
          %513 = dma.done [#allocation13], 4096
        $region88: #{model_sequence_forward.1} parent=63 // pred_fallthru
          _
        // Predicated region
        $region89: #{model_sequence_forward.1} parent=63 // pred_check
          %p514 = pneg %p182
        $region90: #{model_sequence_forward.1} parent=63 // pred_check_branch
          %516 = sbr.rel (%p514) target = $region92
        $region91: #{model_sequence_forward.1} parent=63 // pred_region
          %517 = dma.done [#allocation13], 32
        $region92: #{model_sequence_forward.1} parent=63 // pred_fallthru
          _
        // Predicated region
        $region93: #{model_sequence_forward.1} parent=63 // pred_check
          %p518 = pneg %p203
        $region94: #{model_sequence_forward.1} parent=63 // pred_check_branch
          %520 = sbr.rel (%p518) target = $region96
        $region95: #{model_sequence_forward.1} parent=63 // pred_region
          %521 = dma.done [#allocation16], 4096
        $region96: #{model_sequence_forward.1} parent=63 // pred_fallthru
          _
        // Predicated region
        $region97: #{model_sequence_forward.1} parent=63 // pred_check
          %p522 = pneg %p224
        $region98: #{model_sequence_forward.1} parent=63 // pred_check_branch
          %524 = sbr.rel (%p522) target = $region100
        $region99: #{model_sequence_forward.1} parent=63 // pred_region
          %525 = dma.done [#allocation16], 32
        $region100: #{model_sequence_forward.1} parent=63 // pred_fallthru
          _
        // Predicated region
        $region101: #{model_sequence_forward.1} parent=63 // pred_check
          %p526 = pneg %p245
        $region102: #{model_sequence_forward.1} parent=63 // pred_check_branch
          %528 = sbr.rel (%p526) target = $region104
        $region103: #{model_sequence_forward.1} parent=63 // pred_region
          %529 = dma.done [#allocation19], 2048
        $region104: #{model_sequence_forward.1} parent=63 // pred_fallthru
          _
        // Predicated region
        $region105: #{model_sequence_forward.1} parent=63 // pred_check
          %p530 = pneg %p266
        $region106: #{model_sequence_forward.1} parent=63 // pred_check_branch
          %532 = sbr.rel (%p530) target = $region108
        $region107: #{model_sequence_forward.1} parent=63 // pred_region
          %533 = dma.done [#allocation19], 16
        $region108: #{model_sequence_forward.1} parent=63 // pred_fallthru
          _
        %s534 = sand.u32 %s43, 1
        %s535 = scalar_lea.sflag [#allocation4], %s534
        %s536 = sand.u32 %s43, 1
        %s537 = smul.addr %s536, 32
        %s538 = scalar_lea.vmem [#allocation3], %s537
        %p539 = pneg %p56
        %p540 = pneg %p53
        %p541 = pneg %p77
        %p542 = pneg %p74
        %p543 = pneg %p98
        %p544 = pneg %p95
        %p545 = pneg %p119
        %p546 = pneg %p116
        %p547 = pneg %p140
        %p548 = pneg %p137
        %p549 = pneg %p161
        %p550 = pneg %p158
        %p551 = pneg %p182
        %p552 = pneg %p179
        %p553 = pneg %p203
        %p554 = pneg %p200
        %p555 = pneg %p224
        %p556 = pneg %p221
        %p557 = pneg %p245
        %p558 = pneg %p242
        %p559 = pneg %p266
        %p560 = pneg %p263
        %p561 = pneg %p292
        %p562 = pneg %p289
        %s563 = sand.u32 %s279, 1
        %s564 = scalar_lea.sflag [#allocation5], %s563
        %s565 = sand.u32 %s279, 1
        %s566 = smul.addr %s565, 32
        %s567 = scalar_lea.vmem [#allocation21], %s566
        %p568 = pneg %p318
        %p569 = pneg %p315
        %p570 = scmp.lt.s32.totalorder %s35, 1
        %s571 = scalar_select %p570, %s35, 1
        %s572 = smul.addr %s571, 2
        %s573 = smul.addr %s572, 4
        %s574 = scalar_lea.vmem %s12, %s573
        %p575 = scmp.lt.s32.totalorder %s35, 1
        %s576 = scalar_select %p575, %s35, 1
        %s577 = smul.addr %s576, 2
        %s578 = smul.addr %s577, 4
        %s579 = scalar_lea.vmem %s12, %s578
        %v581 = vld [vmem:[%s489] sm:$0xff]
        %v582 = vld [vmem:[%s489 + $0x8] sm:$0xff]
        %v583 = vld [vmem:[%s489 + $0x10] sm:$0xff]
        %v584 = vld [vmem:[%s489 + $0x18] sm:$0xff]
        %v585 = vpack.c.bf16 %v583, %v581
        %v586 = vpack.c.bf16 %v584, %v582
        %v589 = vunpack.c.l.b16 %v585
        %v590 = vunpack.c.l.b16 %v586
        %v591 = vunpack.c.h.b16 %v585
        %v592 = vunpack.c.h.b16 %v586
        %v593 = vpack.c.b16 %v590, %v589
        %v594 = vpack.c.b16 %v592, %v591
        %vm595 = vcmask 1040384
        %vm596 = vcmask 1044484
        %vm597 = vmor %vm595, %vm596
        %v598 = vrot.slane %v593, 7
        %v599 = vrot.slane %v598, 4
        %v600 = vrot.slane %v594, 7
        %v601 = vsel %vm597, %v599, %v600
        %v602 = vrot.slane %v600, 4
        %606 = vst [vmem:[#allocation2] sm:$0xee] %v598
        %607 = vst [vmem:[#allocation2 + $0x8] sm:$0xff] %v601
        %608 = vst [vmem:[#allocation2 + $0x10] sm:$0x11] %v602
        %609 = vst [vmem:[#allocation2] sm:$0x11] 0
        %610 = vst [vmem:[#allocation2 + $0x10] sm:$0x22] 0
        %v611 = vld [vmem:[#allocation2] sm:$0xff]
        %v612 = vld [vmem:[#allocation2 + $0x8] sm:$0xff]
        %v613 = vld [vmem:[#allocation6] sm:$0xff]
        %v614 = vld [vmem:[#allocation6 + $0x8] sm:$0xff]
        %v615 = vld [vmem:[#allocation6 + $0x10] sm:$0xff]
        %v616 = vld [vmem:[#allocation6 + $0x18] sm:$0xff]
        %v617 = vld [vmem:[#allocation6 + $0x20] sm:$0xff]
        %v618 = vld [vmem:[#allocation6 + $0x28] sm:$0xff]
        %v619 = vld [vmem:[#allocation6 + $0x30] sm:$0xff]
        %v620 = vld [vmem:[#allocation6 + $0x38] sm:$0xff]
        %v621 = vld [vmem:[#allocation6 + $0x40] sm:$0xff]
        %v622 = vld [vmem:[#allocation6 + $0x48] sm:$0xff]
        %v623 = vld [vmem:[#allocation6 + $0x50] sm:$0xff]
        %v624 = vld [vmem:[#allocation6 + $0x58] sm:$0xff]
        %v625 = vld [vmem:[#allocation6 + $0x60] sm:$0xff]
        %v626 = vld [vmem:[#allocation6 + $0x68] sm:$0xff]
        %v627 = vld [vmem:[#allocation6 + $0x70] sm:$0xff]
        %v628 = vld [vmem:[#allocation6 + $0x78] sm:$0xff]
        %v629 = vld [vmem:[#allocation6 + $0x80] sm:$0xff]
        %v630 = vld [vmem:[#allocation6 + $0x88] sm:$0xff]
        %v631 = vld [vmem:[#allocation6 + $0x90] sm:$0xff]
        %v632 = vld [vmem:[#allocation6 + $0x98] sm:$0xff]
        %v633 = vld [vmem:[#allocation6 + $0xa0] sm:$0xff]
        %v634 = vld [vmem:[#allocation6 + $0xa8] sm:$0xff]
        %v635 = vld [vmem:[#allocation6 + $0xb0] sm:$0xff]
        %v636 = vld [vmem:[#allocation6 + $0xb8] sm:$0xff]
        %v637 = vld [vmem:[#allocation6 + $0xc0] sm:$0xff]
        %v638 = vld [vmem:[#allocation6 + $0xc8] sm:$0xff]
        %v639 = vld [vmem:[#allocation6 + $0xd0] sm:$0xff]
        %v640 = vld [vmem:[#allocation6 + $0xd8] sm:$0xff]
        %v641 = vld [vmem:[#allocation6 + $0xe0] sm:$0xff]
        %v642 = vld [vmem:[#allocation6 + $0xe8] sm:$0xff]
        %v643 = vld [vmem:[#allocation6 + $0xf0] sm:$0xff]
        %v644 = vld [vmem:[#allocation6 + $0xf8] sm:$0xff]
        %v645 = vld [vmem:[#allocation6 + $0x100] sm:$0xff]
        %v646 = vld [vmem:[#allocation6 + $0x108] sm:$0xff]
        %v647 = vld [vmem:[#allocation6 + $0x110] sm:$0xff]
        %v648 = vld [vmem:[#allocation6 + $0x118] sm:$0xff]
        %v649 = vld [vmem:[#allocation6 + $0x120] sm:$0xff]
        %v650 = vld [vmem:[#allocation6 + $0x128] sm:$0xff]
        %v651 = vld [vmem:[#allocation6 + $0x130] sm:$0xff]
        %v652 = vld [vmem:[#allocation6 + $0x138] sm:$0xff]
        %v653 = vld [vmem:[#allocation6 + $0x140] sm:$0xff]
        %v654 = vld [vmem:[#allocation6 + $0x148] sm:$0xff]
        %v655 = vld [vmem:[#allocation6 + $0x150] sm:$0xff]
        %v656 = vld [vmem:[#allocation6 + $0x158] sm:$0xff]
        %v657 = vld [vmem:[#allocation6 + $0x160] sm:$0xff]
        %v658 = vld [vmem:[#allocation6 + $0x168] sm:$0xff]
        %v659 = vld [vmem:[#allocation6 + $0x170] sm:$0xff]
        %v660 = vld [vmem:[#allocation6 + $0x178] sm:$0xff]
        %v661 = vld [vmem:[#allocation6 + $0x180] sm:$0xff]
        %v662 = vld [vmem:[#allocation6 + $0x188] sm:$0xff]
        %v663 = vld [vmem:[#allocation6 + $0x190] sm:$0xff]
        %v664 = vld [vmem:[#allocation6 + $0x198] sm:$0xff]
        %v665 = vld [vmem:[#allocation6 + $0x1a0] sm:$0xff]
        %v666 = vld [vmem:[#allocation6 + $0x1a8] sm:$0xff]
        %v667 = vld [vmem:[#allocation6 + $0x1b0] sm:$0xff]
        %v668 = vld [vmem:[#allocation6 + $0x1b8] sm:$0xff]
        %v669 = vld [vmem:[#allocation6 + $0x1c0] sm:$0xff]
        %v670 = vld [vmem:[#allocation6 + $0x1c8] sm:$0xff]
        %v671 = vld [vmem:[#allocation6 + $0x1d0] sm:$0xff]
        %v672 = vld [vmem:[#allocation6 + $0x1d8] sm:$0xff]
        %v673 = vld [vmem:[#allocation6 + $0x1e0] sm:$0xff]
        %v674 = vld [vmem:[#allocation6 + $0x1e8] sm:$0xff]
        %v675 = vld [vmem:[#allocation6 + $0x1f0] sm:$0xff]
        %v676 = vld [vmem:[#allocation6 + $0x1f8] sm:$0xff]
        %v677 = vld [vmem:[#allocation2 + $0x10] sm:$0x11]
        %s678 = scalar_lea.vmem [#allocation6], 512
        %v679 = vld [vmem:[%s678] sm:$0xff]
        %v680 = vld [vmem:[%s678 + $0x8] sm:$0xff]
        %v681 = vld [vmem:[%s678 + $0x10] sm:$0xff]
        %v682 = vld [vmem:[%s678 + $0x18] sm:$0xff]
        %v683 = vld [vmem:[%s678 + $0x20] sm:$0xff]
        %v684 = vld [vmem:[%s678 + $0x28] sm:$0xff]
        %v685 = vld [vmem:[%s678 + $0x30] sm:$0xff]
        %v686 = vld [vmem:[%s678 + $0x38] sm:$0xff]
        %v687 = vld [vmem:[%s678 + $0x40] sm:$0xff]
        %v688 = vld [vmem:[%s678 + $0x48] sm:$0xff]
        %v689 = vld [vmem:[%s678 + $0x50] sm:$0xff]
        %v690 = vld [vmem:[%s678 + $0x58] sm:$0xff]
        %v691 = vld [vmem:[%s678 + $0x60] sm:$0xff]
        %v692 = vld [vmem:[%s678 + $0x68] sm:$0xff]
        %v693 = vld [vmem:[%s678 + $0x70] sm:$0xff]
        %v694 = vld [vmem:[%s678 + $0x78] sm:$0xff]
        %v695 = vld [vmem:[%s678 + $0x80] sm:$0xff]
        %v696 = vld [vmem:[%s678 + $0x88] sm:$0xff]
        %v697 = vld [vmem:[%s678 + $0x90] sm:$0xff]
        %v698 = vld [vmem:[%s678 + $0x98] sm:$0xff]
        %v699 = vld [vmem:[%s678 + $0xa0] sm:$0xff]
        %v700 = vld [vmem:[%s678 + $0xa8] sm:$0xff]
        %v701 = vld [vmem:[%s678 + $0xb0] sm:$0xff]
        %v702 = vld [vmem:[%s678 + $0xb8] sm:$0xff]
        %v703 = vld [vmem:[%s678 + $0xc0] sm:$0xff]
        %v704 = vld [vmem:[%s678 + $0xc8] sm:$0xff]
        %v705 = vld [vmem:[%s678 + $0xd0] sm:$0xff]
        %v706 = vld [vmem:[%s678 + $0xd8] sm:$0xff]
        %v707 = vld [vmem:[%s678 + $0xe0] sm:$0xff]
        %v708 = vld [vmem:[%s678 + $0xe8] sm:$0xff]
        %v709 = vld [vmem:[%s678 + $0xf0] sm:$0xff]
        %v710 = vld [vmem:[%s678 + $0xf8] sm:$0xff]
        %v711 = vld [vmem:[%s678 + $0x100] sm:$0xff]
        %v712 = vld [vmem:[%s678 + $0x108] sm:$0xff]
        %v713 = vld [vmem:[%s678 + $0x110] sm:$0xff]
        %v714 = vld [vmem:[%s678 + $0x118] sm:$0xff]
        %v715 = vld [vmem:[%s678 + $0x120] sm:$0xff]
        %v716 = vld [vmem:[%s678 + $0x128] sm:$0xff]
        %v717 = vld [vmem:[%s678 + $0x130] sm:$0xff]
        %v718 = vld [vmem:[%s678 + $0x138] sm:$0xff]
        %v719 = vld [vmem:[%s678 + $0x140] sm:$0xff]
        %v720 = vld [vmem:[%s678 + $0x148] sm:$0xff]
        %v721 = vld [vmem:[%s678 + $0x150] sm:$0xff]
        %v722 = vld [vmem:[%s678 + $0x158] sm:$0xff]
        %v723 = vld [vmem:[%s678 + $0x160] sm:$0xff]
        %v724 = vld [vmem:[%s678 + $0x168] sm:$0xff]
        %v725 = vld [vmem:[%s678 + $0x170] sm:$0xff]
        %v726 = vld [vmem:[%s678 + $0x178] sm:$0xff]
        %v727 = vld [vmem:[%s678 + $0x180] sm:$0xff]
        %v728 = vld [vmem:[%s678 + $0x188] sm:$0xff]
        %v729 = vld [vmem:[%s678 + $0x190] sm:$0xff]
        %v730 = vld [vmem:[%s678 + $0x198] sm:$0xff]
        %v731 = vld [vmem:[%s678 + $0x1a0] sm:$0xff]
        %v732 = vld [vmem:[%s678 + $0x1a8] sm:$0xff]
        %v733 = vld [vmem:[%s678 + $0x1b0] sm:$0xff]
        %v734 = vld [vmem:[%s678 + $0x1b8] sm:$0xff]
        %v735 = vld [vmem:[%s678 + $0x1c0] sm:$0xff]
        %v736 = vld [vmem:[%s678 + $0x1c8] sm:$0xff]
        %v737 = vld [vmem:[%s678 + $0x1d0] sm:$0xff]
        %v738 = vld [vmem:[%s678 + $0x1d8] sm:$0xff]
        %v739 = vld [vmem:[%s678 + $0x1e0] sm:$0xff]
        %v740 = vld [vmem:[%s678 + $0x1e8] sm:$0xff]
        %v741 = vld [vmem:[%s678 + $0x1f0] sm:$0xff]
        %v742 = vld [vmem:[%s678 + $0x1f8] sm:$0xff]
        %v746 = vunpack.c.l.b16 %v611
        %v747 = vunpack.c.h.b16 %v611
        %v748 = vunpack.c.l.b16 %v612
        %v749 = vunpack.c.h.b16 %v612
        %v750 = vunpack.c.l.b16 %v677
        %v751 = vunpack.c.h.b16 %v677
        %v752 = vpack.c.b16 %v748, %v746
        %v753 = vpack.c.b16 %v749, %v747
        %v754 = vpack.c.b16 %v750, %v750
        %v755 = vpack.c.b16 %v751, %v751
        %vm756 = vsmask.f32 7424
        %v758 = vshrl.u32 %v752, 16
        %v760 = vshll.u32 %v752, 16
        %v762 = vrot.slane %v760, 1
        %v763 = vor.u32 %v758, %v762
        %v765 = vshll.u32 %v754, 16
        %v767 = vrot.slane %v765, 1
        %v768 = vsel %vm756, %v763, %v767
        %v770 = vshrl.u32 %v753, 16
        %v772 = vshll.u32 %v753, 16
        %v774 = vrot.slane %v772, 1
        %v775 = vor.u32 %v770, %v774
        %v777 = vshll.u32 %v755, 16
        %v779 = vrot.slane %v777, 1
        %v780 = vsel %vm756, %v775, %v779
        %v847 = vunpack.c.l.b16 %v679
        %v848 = vunpack.c.h.b16 %v679
        %v849 = vunpack.c.l.b16 %v680
        %v850 = vunpack.c.h.b16 %v680
        %v851 = vunpack.c.l.b16 %v681
        %v852 = vunpack.c.h.b16 %v681
        %v853 = vunpack.c.l.b16 %v682
        %v854 = vunpack.c.h.b16 %v682
        %v855 = vunpack.c.l.b16 %v683
        %v856 = vunpack.c.h.b16 %v683
        %v857 = vunpack.c.l.b16 %v684
        %v858 = vunpack.c.h.b16 %v684
        %v859 = vunpack.c.l.b16 %v685
        %v860 = vunpack.c.h.b16 %v685
        %v861 = vunpack.c.l.b16 %v686
        %v862 = vunpack.c.h.b16 %v686
        %v863 = vunpack.c.l.b16 %v687
        %v864 = vunpack.c.h.b16 %v687
        %v865 = vunpack.c.l.b16 %v688
        %v866 = vunpack.c.h.b16 %v688
        %v867 = vunpack.c.l.b16 %v689
        %v868 = vunpack.c.h.b16 %v689
        %v869 = vunpack.c.l.b16 %v690
        %v870 = vunpack.c.h.b16 %v690
        %v871 = vunpack.c.l.b16 %v691
        %v872 = vunpack.c.h.b16 %v691
        %v873 = vunpack.c.l.b16 %v692
        %v874 = vunpack.c.h.b16 %v692
        %v875 = vunpack.c.l.b16 %v693
        %v876 = vunpack.c.h.b16 %v693
        %v877 = vunpack.c.l.b16 %v694
        %v878 = vunpack.c.h.b16 %v694
        %v879 = vunpack.c.l.b16 %v695
        %v880 = vunpack.c.h.b16 %v695
        %v881 = vunpack.c.l.b16 %v696
        %v882 = vunpack.c.h.b16 %v696
        %v883 = vunpack.c.l.b16 %v697
        %v884 = vunpack.c.h.b16 %v697
        %v885 = vunpack.c.l.b16 %v698
        %v886 = vunpack.c.h.b16 %v698
        %v887 = vunpack.c.l.b16 %v699
        %v888 = vunpack.c.h.b16 %v699
        %v889 = vunpack.c.l.b16 %v700
        %v890 = vunpack.c.h.b16 %v700
        %v891 = vunpack.c.l.b16 %v701
        %v892 = vunpack.c.h.b16 %v701
        %v893 = vunpack.c.l.b16 %v702
        %v894 = vunpack.c.h.b16 %v702
        %v895 = vunpack.c.l.b16 %v703
        %v896 = vunpack.c.h.b16 %v703
        %v897 = vunpack.c.l.b16 %v704
        %v898 = vunpack.c.h.b16 %v704
        %v899 = vunpack.c.l.b16 %v705
        %v900 = vunpack.c.h.b16 %v705
        %v901 = vunpack.c.l.b16 %v706
        %v902 = vunpack.c.h.b16 %v706
        %v903 = vunpack.c.l.b16 %v707
        %v904 = vunpack.c.h.b16 %v707
        %v905 = vunpack.c.l.b16 %v708
        %v906 = vunpack.c.h.b16 %v708
        %v907 = vunpack.c.l.b16 %v709
        %v908 = vunpack.c.h.b16 %v709
        %v909 = vunpack.c.l.b16 %v710
        %v910 = vunpack.c.h.b16 %v710
        %v911 = vunpack.c.l.b16 %v711
        %v912 = vunpack.c.h.b16 %v711
        %v913 = vunpack.c.l.b16 %v712
        %v914 = vunpack.c.h.b16 %v712
        %v915 = vunpack.c.l.b16 %v713
        %v916 = vunpack.c.h.b16 %v713
        %v917 = vunpack.c.l.b16 %v714
        %v918 = vunpack.c.h.b16 %v714
        %v919 = vunpack.c.l.b16 %v715
        %v920 = vunpack.c.h.b16 %v715
        %v921 = vunpack.c.l.b16 %v716
        %v922 = vunpack.c.h.b16 %v716
        %v923 = vunpack.c.l.b16 %v717
        %v924 = vunpack.c.h.b16 %v717
        %v925 = vunpack.c.l.b16 %v718
        %v926 = vunpack.c.h.b16 %v718
        %v927 = vunpack.c.l.b16 %v719
        %v928 = vunpack.c.h.b16 %v719
        %v929 = vunpack.c.l.b16 %v720
        %v930 = vunpack.c.h.b16 %v720
        %v931 = vunpack.c.l.b16 %v721
        %v932 = vunpack.c.h.b16 %v721
        %v933 = vunpack.c.l.b16 %v722
        %v934 = vunpack.c.h.b16 %v722
        %v935 = vunpack.c.l.b16 %v723
        %v936 = vunpack.c.h.b16 %v723
        %v937 = vunpack.c.l.b16 %v724
        %v938 = vunpack.c.h.b16 %v724
        %v939 = vunpack.c.l.b16 %v725
        %v940 = vunpack.c.h.b16 %v725
        %v941 = vunpack.c.l.b16 %v726
        %v942 = vunpack.c.h.b16 %v726
        %v943 = vunpack.c.l.b16 %v727
        %v944 = vunpack.c.h.b16 %v727
        %v945 = vunpack.c.l.b16 %v728
        %v946 = vunpack.c.h.b16 %v728
        %v947 = vunpack.c.l.b16 %v729
        %v948 = vunpack.c.h.b16 %v729
        %v949 = vunpack.c.l.b16 %v730
        %v950 = vunpack.c.h.b16 %v730
        %v951 = vunpack.c.l.b16 %v731
        %v952 = vunpack.c.h.b16 %v731
        %v953 = vunpack.c.l.b16 %v732
        %v954 = vunpack.c.h.b16 %v732
        %v955 = vunpack.c.l.b16 %v733
        %v956 = vunpack.c.h.b16 %v733
        %v957 = vunpack.c.l.b16 %v734
        %v958 = vunpack.c.h.b16 %v734
        %v959 = vunpack.c.l.b16 %v735
        %v960 = vunpack.c.h.b16 %v735
        %v961 = vunpack.c.l.b16 %v736
        %v962 = vunpack.c.h.b16 %v736
        %v963 = vunpack.c.l.b16 %v737
        %v964 = vunpack.c.h.b16 %v737
        %v965 = vunpack.c.l.b16 %v738
        %v966 = vunpack.c.h.b16 %v738
        %v967 = vunpack.c.l.b16 %v739
        %v968 = vunpack.c.h.b16 %v739
        %v969 = vunpack.c.l.b16 %v740
        %v970 = vunpack.c.h.b16 %v740
        %v971 = vunpack.c.l.b16 %v741
        %v972 = vunpack.c.h.b16 %v741
        %v973 = vunpack.c.l.b16 %v742
        %v974 = vunpack.c.h.b16 %v742
        %v975 = vpack.c.b16 %v851, %v847
        %v976 = vpack.c.b16 %v852, %v848
        %v977 = vpack.c.b16 %v853, %v849
        %v978 = vpack.c.b16 %v854, %v850
        %v979 = vpack.c.b16 %v859, %v855
        %v980 = vpack.c.b16 %v860, %v856
        %v981 = vpack.c.b16 %v861, %v857
        %v982 = vpack.c.b16 %v862, %v858
        %v983 = vpack.c.b16 %v867, %v863
        %v984 = vpack.c.b16 %v868, %v864
        %v985 = vpack.c.b16 %v869, %v865
        %v986 = vpack.c.b16 %v870, %v866
        %v987 = vpack.c.b16 %v875, %v871
        %v988 = vpack.c.b16 %v876, %v872
        %v989 = vpack.c.b16 %v877, %v873
        %v990 = vpack.c.b16 %v878, %v874
        %v991 = vpack.c.b16 %v883, %v879
        %v992 = vpack.c.b16 %v884, %v880
        %v993 = vpack.c.b16 %v885, %v881
        %v994 = vpack.c.b16 %v886, %v882
        %v995 = vpack.c.b16 %v891, %v887
        %v996 = vpack.c.b16 %v892, %v888
        %v997 = vpack.c.b16 %v893, %v889
        %v998 = vpack.c.b16 %v894, %v890
        %v999 = vpack.c.b16 %v899, %v895
        %v1000 = vpack.c.b16 %v900, %v896
        %v1001 = vpack.c.b16 %v901, %v897
        %v1002 = vpack.c.b16 %v902, %v898
        %v1003 = vpack.c.b16 %v907, %v903
        %v1004 = vpack.c.b16 %v908, %v904
        %v1005 = vpack.c.b16 %v909, %v905
        %v1006 = vpack.c.b16 %v910, %v906
        %v1007 = vpack.c.b16 %v915, %v911
        %v1008 = vpack.c.b16 %v916, %v912
        %v1009 = vpack.c.b16 %v917, %v913
        %v1010 = vpack.c.b16 %v918, %v914
        %v1011 = vpack.c.b16 %v923, %v919
        %v1012 = vpack.c.b16 %v924, %v920
        %v1013 = vpack.c.b16 %v925, %v921
        %v1014 = vpack.c.b16 %v926, %v922
        %v1015 = vpack.c.b16 %v931, %v927
        %v1016 = vpack.c.b16 %v932, %v928
        %v1017 = vpack.c.b16 %v933, %v929
        %v1018 = vpack.c.b16 %v934, %v930
        %v1019 = vpack.c.b16 %v939, %v935
        %v1020 = vpack.c.b16 %v940, %v936
        %v1021 = vpack.c.b16 %v941, %v937
        %v1022 = vpack.c.b16 %v942, %v938
        %v1023 = vpack.c.b16 %v947, %v943
        %v1024 = vpack.c.b16 %v948, %v944
        %v1025 = vpack.c.b16 %v949, %v945
        %v1026 = vpack.c.b16 %v950, %v946
        %v1027 = vpack.c.b16 %v955, %v951
        %v1028 = vpack.c.b16 %v956, %v952
        %v1029 = vpack.c.b16 %v957, %v953
        %v1030 = vpack.c.b16 %v958, %v954
        %v1031 = vpack.c.b16 %v963, %v959
        %v1032 = vpack.c.b16 %v964, %v960
        %v1033 = vpack.c.b16 %v965, %v961
        %v1034 = vpack.c.b16 %v966, %v962
        %v1035 = vpack.c.b16 %v971, %v967
        %v1036 = vpack.c.b16 %v972, %v968
        %v1037 = vpack.c.b16 %v973, %v969
        %v1038 = vpack.c.b16 %v974, %v970
        %1103 = vmatprep.subr.bf16.mxu0 %v1004
        %1104 = vmatpush1.bf16.msra.mxu0 %v1003
        %1105 = vmatprep.subr.bf16.mxu0 %v1000
        %1106 = vmatpush1.bf16.msra.mxu0 %v999
        %1107 = vmatprep.subr.bf16.mxu0 %v996
        %1108 = vmatpush1.bf16.msra.mxu0 %v995
        %1109 = vmatprep.subr.bf16.mxu0 %v992
        %1110 = vmatpush1.bf16.msra.mxu0 %v991
        %1111 = vmatprep.subr.bf16.mxu0 %v988
        %1112 = vmatpush1.bf16.msra.mxu0 %v987
        %1113 = vmatprep.subr.bf16.mxu0 %v984
        %1114 = vmatpush1.bf16.msra.mxu0 %v983
        %1115 = vmatprep.subr.bf16.mxu0 %v980
        %1116 = vmatpush1.bf16.msra.mxu0 %v979
        %1117 = vmatprep.subr.bf16.mxu0 %v976
        %1118 = vmatpush1.bf16.msra.mxu0 %v975
        %1119 = vmatprep.subr.bf16.mxu0 %v1036
        %1120 = vmatpush2.bf16.msra.mxu0 %v1035
        %1121 = vmatprep.subr.bf16.mxu0 %v1032
        %1122 = vmatpush2.bf16.msra.mxu0 %v1031
        %1123 = vmatprep.subr.bf16.mxu0 %v1028
        %1124 = vmatpush2.bf16.msra.mxu0 %v1027
        %1125 = vmatprep.subr.bf16.mxu0 %v1024
        %1126 = vmatpush2.bf16.msra.mxu0 %v1023
        %1127 = vmatprep.subr.bf16.mxu0 %v1020
        %1128 = vmatpush2.bf16.msra.mxu0 %v1019
        %1129 = vmatprep.subr.bf16.mxu0 %v1016
        %1130 = vmatpush2.bf16.msra.mxu0 %v1015
        %1131 = vmatprep.subr.bf16.mxu0 %v1012
        %1132 = vmatpush2.bf16.msra.mxu0 %v1011
        %1133 = vmatprep.subr.bf16.mxu0 %v1008
        %1134 = vmatpush2.bf16.msra.mxu0 %v1007
        %1135 = vmatprep.mubr.bf16.mxu0 %v780
        %1136 = vmatmul.mubr.bf16.gmra.mxu0 %v768
        %v1137 = vpop.f32.mrf.mxu0
        %v1138 = vadd.f32 0.0, %v1137
        %v1139 = vpop.f32.mrf.mxu0
        %v1140 = vadd.f32 0.0, %v1139
        %v1141 = vpop.f32.mrf.mxu0
        %v1142 = vadd.f32 0.0, %v1141
        %v1143 = vpop.f32.mrf.mxu0
        %v1144 = vadd.f32 0.0, %v1143
        %1145 = vdwg.mxu0
        %1146 = vmatprep.subr.bf16.mxu0 %v1006
        %1147 = vmatpush1.bf16.msra.mxu0 %v1005
        %1148 = vmatprep.subr.bf16.mxu0 %v1002
        %1149 = vmatpush1.bf16.msra.mxu0 %v1001
        %1150 = vmatprep.subr.bf16.mxu0 %v998
        %1151 = vmatpush1.bf16.msra.mxu0 %v997
        %1152 = vmatprep.subr.bf16.mxu0 %v994
        %1153 = vmatpush1.bf16.msra.mxu0 %v993
        %1154 = vmatprep.subr.bf16.mxu0 %v990
        %1155 = vmatpush1.bf16.msra.mxu0 %v989
        %1156 = vmatprep.subr.bf16.mxu0 %v986
        %1157 = vmatpush1.bf16.msra.mxu0 %v985
        %1158 = vmatprep.subr.bf16.mxu0 %v982
        %1159 = vmatpush1.bf16.msra.mxu0 %v981
        %1160 = vmatprep.subr.bf16.mxu0 %v978
        %1161 = vmatpush1.bf16.msra.mxu0 %v977
        %1162 = vmatprep.subr.bf16.mxu0 %v1038
        %1163 = vmatpush2.bf16.msra.mxu0 %v1037
        %1164 = vmatprep.subr.bf16.mxu0 %v1034
        %1165 = vmatpush2.bf16.msra.mxu0 %v1033
        %1166 = vmatprep.subr.bf16.mxu0 %v1030
        %1167 = vmatpush2.bf16.msra.mxu0 %v1029
        %1168 = vmatprep.subr.bf16.mxu0 %v1026
        %1169 = vmatpush2.bf16.msra.mxu0 %v1025
        %1170 = vmatprep.subr.bf16.mxu0 %v1022
        %1171 = vmatpush2.bf16.msra.mxu0 %v1021
        %1172 = vmatprep.subr.bf16.mxu0 %v1018
        %1173 = vmatpush2.bf16.msra.mxu0 %v1017
        %1174 = vmatprep.subr.bf16.mxu0 %v1014
        %1175 = vmatpush2.bf16.msra.mxu0 %v1013
        %1176 = vmatprep.subr.bf16.mxu0 %v1010
        %1177 = vmatpush2.bf16.msra.mxu0 %v1009
        %1178 = vmatprep.mubr.bf16.mxu0 %v780
        %1179 = vmatmul.mubr.bf16.gmra.mxu0 %v768
        %v1180 = vpop.f32.mrf.mxu0
        %v1181 = vadd.f32 0.0, %v1180
        %v1182 = vpop.f32.mrf.mxu0
        %v1183 = vadd.f32 0.0, %v1182
        %v1184 = vpop.f32.mrf.mxu0
        %v1185 = vadd.f32 0.0, %v1184
        %v1186 = vpop.f32.mrf.mxu0
        %v1187 = vadd.f32 0.0, %v1186
        %1188 = vdwg.mxu0
        %v1255 = vunpack.c.l.b16 %v613
        %v1256 = vunpack.c.h.b16 %v613
        %v1257 = vunpack.c.l.b16 %v614
        %v1258 = vunpack.c.h.b16 %v614
        %v1259 = vunpack.c.l.b16 %v615
        %v1260 = vunpack.c.h.b16 %v615
        %v1261 = vunpack.c.l.b16 %v616
        %v1262 = vunpack.c.h.b16 %v616
        %v1263 = vunpack.c.l.b16 %v617
        %v1264 = vunpack.c.h.b16 %v617
        %v1265 = vunpack.c.l.b16 %v618
        %v1266 = vunpack.c.h.b16 %v618
        %v1267 = vunpack.c.l.b16 %v619
        %v1268 = vunpack.c.h.b16 %v619
        %v1269 = vunpack.c.l.b16 %v620
        %v1270 = vunpack.c.h.b16 %v620
        %v1271 = vunpack.c.l.b16 %v621
        %v1272 = vunpack.c.h.b16 %v621
        %v1273 = vunpack.c.l.b16 %v622
        %v1274 = vunpack.c.h.b16 %v622
        %v1275 = vunpack.c.l.b16 %v623
        %v1276 = vunpack.c.h.b16 %v623
        %v1277 = vunpack.c.l.b16 %v624
        %v1278 = vunpack.c.h.b16 %v624
        %v1279 = vunpack.c.l.b16 %v625
        %v1280 = vunpack.c.h.b16 %v625
        %v1281 = vunpack.c.l.b16 %v626
        %v1282 = vunpack.c.h.b16 %v626
        %v1283 = vunpack.c.l.b16 %v627
        %v1284 = vunpack.c.h.b16 %v627
        %v1285 = vunpack.c.l.b16 %v628
        %v1286 = vunpack.c.h.b16 %v628
        %v1287 = vunpack.c.l.b16 %v629
        %v1288 = vunpack.c.h.b16 %v629
        %v1289 = vunpack.c.l.b16 %v630
        %v1290 = vunpack.c.h.b16 %v630
        %v1291 = vunpack.c.l.b16 %v631
        %v1292 = vunpack.c.h.b16 %v631
        %v1293 = vunpack.c.l.b16 %v632
        %v1294 = vunpack.c.h.b16 %v632
        %v1295 = vunpack.c.l.b16 %v633
        %v1296 = vunpack.c.h.b16 %v633
        %v1297 = vunpack.c.l.b16 %v634
        %v1298 = vunpack.c.h.b16 %v634
        %v1299 = vunpack.c.l.b16 %v635
        %v1300 = vunpack.c.h.b16 %v635
        %v1301 = vunpack.c.l.b16 %v636
        %v1302 = vunpack.c.h.b16 %v636
        %v1303 = vunpack.c.l.b16 %v637
        %v1304 = vunpack.c.h.b16 %v637
        %v1305 = vunpack.c.l.b16 %v638
        %v1306 = vunpack.c.h.b16 %v638
        %v1307 = vunpack.c.l.b16 %v639
        %v1308 = vunpack.c.h.b16 %v639
        %v1309 = vunpack.c.l.b16 %v640
        %v1310 = vunpack.c.h.b16 %v640
        %v1311 = vunpack.c.l.b16 %v641
        %v1312 = vunpack.c.h.b16 %v641
        %v1313 = vunpack.c.l.b16 %v642
        %v1314 = vunpack.c.h.b16 %v642
        %v1315 = vunpack.c.l.b16 %v643
        %v1316 = vunpack.c.h.b16 %v643
        %v1317 = vunpack.c.l.b16 %v644
        %v1318 = vunpack.c.h.b16 %v644
        %v1319 = vunpack.c.l.b16 %v645
        %v1320 = vunpack.c.h.b16 %v645
        %v1321 = vunpack.c.l.b16 %v646
        %v1322 = vunpack.c.h.b16 %v646
        %v1323 = vunpack.c.l.b16 %v647
        %v1324 = vunpack.c.h.b16 %v647
        %v1325 = vunpack.c.l.b16 %v648
        %v1326 = vunpack.c.h.b16 %v648
        %v1327 = vunpack.c.l.b16 %v649
        %v1328 = vunpack.c.h.b16 %v649
        %v1329 = vunpack.c.l.b16 %v650
        %v1330 = vunpack.c.h.b16 %v650
        %v1331 = vunpack.c.l.b16 %v651
        %v1332 = vunpack.c.h.b16 %v651
        %v1333 = vunpack.c.l.b16 %v652
        %v1334 = vunpack.c.h.b16 %v652
        %v1335 = vunpack.c.l.b16 %v653
        %v1336 = vunpack.c.h.b16 %v653
        %v1337 = vunpack.c.l.b16 %v654
        %v1338 = vunpack.c.h.b16 %v654
        %v1339 = vunpack.c.l.b16 %v655
        %v1340 = vunpack.c.h.b16 %v655
        %v1341 = vunpack.c.l.b16 %v656
        %v1342 = vunpack.c.h.b16 %v656
        %v1343 = vunpack.c.l.b16 %v657
        %v1344 = vunpack.c.h.b16 %v657
        %v1345 = vunpack.c.l.b16 %v658
        %v1346 = vunpack.c.h.b16 %v658
        %v1347 = vunpack.c.l.b16 %v659
        %v1348 = vunpack.c.h.b16 %v659
        %v1349 = vunpack.c.l.b16 %v660
        %v1350 = vunpack.c.h.b16 %v660
        %v1351 = vunpack.c.l.b16 %v661
        %v1352 = vunpack.c.h.b16 %v661
        %v1353 = vunpack.c.l.b16 %v662
        %v1354 = vunpack.c.h.b16 %v662
        %v1355 = vunpack.c.l.b16 %v663
        %v1356 = vunpack.c.h.b16 %v663
        %v1357 = vunpack.c.l.b16 %v664
        %v1358 = vunpack.c.h.b16 %v664
        %v1359 = vunpack.c.l.b16 %v665
        %v1360 = vunpack.c.h.b16 %v665
        %v1361 = vunpack.c.l.b16 %v666
        %v1362 = vunpack.c.h.b16 %v666
        %v1363 = vunpack.c.l.b16 %v667
        %v1364 = vunpack.c.h.b16 %v667
        %v1365 = vunpack.c.l.b16 %v668
        %v1366 = vunpack.c.h.b16 %v668
        %v1367 = vunpack.c.l.b16 %v669
        %v1368 = vunpack.c.h.b16 %v669
        %v1369 = vunpack.c.l.b16 %v670
        %v1370 = vunpack.c.h.b16 %v670
        %v1371 = vunpack.c.l.b16 %v671
        %v1372 = vunpack.c.h.b16 %v671
        %v1373 = vunpack.c.l.b16 %v672
        %v1374 = vunpack.c.h.b16 %v672
        %v1375 = vunpack.c.l.b16 %v673
        %v1376 = vunpack.c.h.b16 %v673
        %v1377 = vunpack.c.l.b16 %v674
        %v1378 = vunpack.c.h.b16 %v674
        %v1379 = vunpack.c.l.b16 %v675
        %v1380 = vunpack.c.h.b16 %v675
        %v1381 = vunpack.c.l.b16 %v676
        %v1382 = vunpack.c.h.b16 %v676
        %v1383 = vpack.c.b16 %v1259, %v1255
        %v1384 = vpack.c.b16 %v1260, %v1256
        %v1385 = vpack.c.b16 %v1261, %v1257
        %v1386 = vpack.c.b16 %v1262, %v1258
        %v1387 = vpack.c.b16 %v1267, %v1263
        %v1388 = vpack.c.b16 %v1268, %v1264
        %v1389 = vpack.c.b16 %v1269, %v1265
        %v1390 = vpack.c.b16 %v1270, %v1266
        %v1391 = vpack.c.b16 %v1275, %v1271
        %v1392 = vpack.c.b16 %v1276, %v1272
        %v1393 = vpack.c.b16 %v1277, %v1273
        %v1394 = vpack.c.b16 %v1278, %v1274
        %v1395 = vpack.c.b16 %v1283, %v1279
        %v1396 = vpack.c.b16 %v1284, %v1280
        %v1397 = vpack.c.b16 %v1285, %v1281
        %v1398 = vpack.c.b16 %v1286, %v1282
        %v1399 = vpack.c.b16 %v1291, %v1287
        %v1400 = vpack.c.b16 %v1292, %v1288
        %v1401 = vpack.c.b16 %v1293, %v1289
        %v1402 = vpack.c.b16 %v1294, %v1290
        %v1403 = vpack.c.b16 %v1299, %v1295
        %v1404 = vpack.c.b16 %v1300, %v1296
        %v1405 = vpack.c.b16 %v1301, %v1297
        %v1406 = vpack.c.b16 %v1302, %v1298
        %v1407 = vpack.c.b16 %v1307, %v1303
        %v1408 = vpack.c.b16 %v1308, %v1304
        %v1409 = vpack.c.b16 %v1309, %v1305
        %v1410 = vpack.c.b16 %v1310, %v1306
        %v1411 = vpack.c.b16 %v1315, %v1311
        %v1412 = vpack.c.b16 %v1316, %v1312
        %v1413 = vpack.c.b16 %v1317, %v1313
        %v1414 = vpack.c.b16 %v1318, %v1314
        %v1415 = vpack.c.b16 %v1323, %v1319
        %v1416 = vpack.c.b16 %v1324, %v1320
        %v1417 = vpack.c.b16 %v1325, %v1321
        %v1418 = vpack.c.b16 %v1326, %v1322
        %v1419 = vpack.c.b16 %v1331, %v1327
        %v1420 = vpack.c.b16 %v1332, %v1328
        %v1421 = vpack.c.b16 %v1333, %v1329
        %v1422 = vpack.c.b16 %v1334, %v1330
        %v1423 = vpack.c.b16 %v1339, %v1335
        %v1424 = vpack.c.b16 %v1340, %v1336
        %v1425 = vpack.c.b16 %v1341, %v1337
        %v1426 = vpack.c.b16 %v1342, %v1338
        %v1427 = vpack.c.b16 %v1347, %v1343
        %v1428 = vpack.c.b16 %v1348, %v1344
        %v1429 = vpack.c.b16 %v1349, %v1345
        %v1430 = vpack.c.b16 %v1350, %v1346
        %v1431 = vpack.c.b16 %v1355, %v1351
        %v1432 = vpack.c.b16 %v1356, %v1352
        %v1433 = vpack.c.b16 %v1357, %v1353
        %v1434 = vpack.c.b16 %v1358, %v1354
        %v1435 = vpack.c.b16 %v1363, %v1359
        %v1436 = vpack.c.b16 %v1364, %v1360
        %v1437 = vpack.c.b16 %v1365, %v1361
        %v1438 = vpack.c.b16 %v1366, %v1362
        %v1439 = vpack.c.b16 %v1371, %v1367
        %v1440 = vpack.c.b16 %v1372, %v1368
        %v1441 = vpack.c.b16 %v1373, %v1369
        %v1442 = vpack.c.b16 %v1374, %v1370
        %v1443 = vpack.c.b16 %v1379, %v1375
        %v1444 = vpack.c.b16 %v1380, %v1376
        %v1445 = vpack.c.b16 %v1381, %v1377
        %v1446 = vpack.c.b16 %v1382, %v1378
        %1511 = vmatprep.subr.bf16.mxu0 %v1412
        %1512 = vmatpush1.bf16.msra.mxu0 %v1411
        %1513 = vmatprep.subr.bf16.mxu0 %v1408
        %1514 = vmatpush1.bf16.msra.mxu0 %v1407
        %1515 = vmatprep.subr.bf16.mxu0 %v1404
        %1516 = vmatpush1.bf16.msra.mxu0 %v1403
        %1517 = vmatprep.subr.bf16.mxu0 %v1400
        %1518 = vmatpush1.bf16.msra.mxu0 %v1399
        %1519 = vmatprep.subr.bf16.mxu0 %v1396
        %1520 = vmatpush1.bf16.msra.mxu0 %v1395
        %1521 = vmatprep.subr.bf16.mxu0 %v1392
        %1522 = vmatpush1.bf16.msra.mxu0 %v1391
        %1523 = vmatprep.subr.bf16.mxu0 %v1388
        %1524 = vmatpush1.bf16.msra.mxu0 %v1387
        %1525 = vmatprep.subr.bf16.mxu0 %v1384
        %1526 = vmatpush1.bf16.msra.mxu0 %v1383
        %1527 = vmatprep.subr.bf16.mxu0 %v1444
        %1528 = vmatpush2.bf16.msra.mxu0 %v1443
        %1529 = vmatprep.subr.bf16.mxu0 %v1440
        %1530 = vmatpush2.bf16.msra.mxu0 %v1439
        %1531 = vmatprep.subr.bf16.mxu0 %v1436
        %1532 = vmatpush2.bf16.msra.mxu0 %v1435
        %1533 = vmatprep.subr.bf16.mxu0 %v1432
        %1534 = vmatpush2.bf16.msra.mxu0 %v1431
        %1535 = vmatprep.subr.bf16.mxu0 %v1428
        %1536 = vmatpush2.bf16.msra.mxu0 %v1427
        %1537 = vmatprep.subr.bf16.mxu0 %v1424
        %1538 = vmatpush2.bf16.msra.mxu0 %v1423
        %1539 = vmatprep.subr.bf16.mxu0 %v1420
        %1540 = vmatpush2.bf16.msra.mxu0 %v1419
        %1541 = vmatprep.subr.bf16.mxu0 %v1416
        %1542 = vmatpush2.bf16.msra.mxu0 %v1415
        %1543 = vmatprep.mubr.bf16.mxu0 %v753
        %1544 = vmatmul.mubr.bf16.gmra.mxu0 %v752
        %v1545 = vpop.f32.mrf.mxu0
        %v1546 = vadd.f32 %v1138, %v1545
        %v1547 = vpop.f32.mrf.mxu0
        %v1548 = vadd.f32 %v1140, %v1547
        %v1549 = vpop.f32.mrf.mxu0
        %v1550 = vadd.f32 %v1142, %v1549
        %v1551 = vpop.f32.mrf.mxu0
        %v1552 = vadd.f32 %v1144, %v1551
        %1553 = vdwg.mxu0
        %1554 = vmatprep.subr.bf16.mxu0 %v1414
        %1555 = vmatpush1.bf16.msra.mxu0 %v1413
        %1556 = vmatprep.subr.bf16.mxu0 %v1410
        %1557 = vmatpush1.bf16.msra.mxu0 %v1409
        %1558 = vmatprep.subr.bf16.mxu0 %v1406
        %1559 = vmatpush1.bf16.msra.mxu0 %v1405
        %1560 = vmatprep.subr.bf16.mxu0 %v1402
        %1561 = vmatpush1.bf16.msra.mxu0 %v1401
        %1562 = vmatprep.subr.bf16.mxu0 %v1398
        %1563 = vmatpush1.bf16.msra.mxu0 %v1397
        %1564 = vmatprep.subr.bf16.mxu0 %v1394
        %1565 = vmatpush1.bf16.msra.mxu0 %v1393
        %1566 = vmatprep.subr.bf16.mxu0 %v1390
        %1567 = vmatpush1.bf16.msra.mxu0 %v1389
        %1568 = vmatprep.subr.bf16.mxu0 %v1386
        %1569 = vmatpush1.bf16.msra.mxu0 %v1385
        %1570 = vmatprep.subr.bf16.mxu0 %v1446
        %1571 = vmatpush2.bf16.msra.mxu0 %v1445
        %1572 = vmatprep.subr.bf16.mxu0 %v1442
        %1573 = vmatpush2.bf16.msra.mxu0 %v1441
        %1574 = vmatprep.subr.bf16.mxu0 %v1438
        %1575 = vmatpush2.bf16.msra.mxu0 %v1437
        %1576 = vmatprep.subr.bf16.mxu0 %v1434
        %1577 = vmatpush2.bf16.msra.mxu0 %v1433
        %1578 = vmatprep.subr.bf16.mxu0 %v1430
        %1579 = vmatpush2.bf16.msra.mxu0 %v1429
        %1580 = vmatprep.subr.bf16.mxu0 %v1426
        %1581 = vmatpush2.bf16.msra.mxu0 %v1425
        %1582 = vmatprep.subr.bf16.mxu0 %v1422
        %1583 = vmatpush2.bf16.msra.mxu0 %v1421
        %1584 = vmatprep.subr.bf16.mxu0 %v1418
        %1585 = vmatpush2.bf16.msra.mxu0 %v1417
        %1586 = vmatprep.mubr.bf16.mxu0 %v753
        %1587 = vmatmul.mubr.bf16.gmra.mxu0 %v752
        %v1588 = vpop.f32.mrf.mxu0
        %v1589 = vadd.f32 %v1181, %v1588
        %v1590 = vpop.f32.mrf.mxu0
        %v1591 = vadd.f32 %v1183, %v1590
        %v1592 = vpop.f32.mrf.mxu0
        %v1593 = vadd.f32 %v1185, %v1592
        %v1594 = vpop.f32.mrf.mxu0
        %v1595 = vadd.f32 %v1187, %v1594
        %1596 = vdwg.mxu0
        %v1597 = vld [vmem:[#allocation2] sm:$0xee]
        %s1598 = scalar_lea.vmem [#allocation6], 1024
        %v1599 = vld [vmem:[%s1598] sm:$0xff]
        %v1600 = vld [vmem:[%s1598 + $0x8] sm:$0xff]
        %v1601 = vld [vmem:[%s1598 + $0x10] sm:$0xff]
        %v1602 = vld [vmem:[%s1598 + $0x18] sm:$0xff]
        %v1603 = vld [vmem:[%s1598 + $0x20] sm:$0xff]
        %v1604 = vld [vmem:[%s1598 + $0x28] sm:$0xff]
        %v1605 = vld [vmem:[%s1598 + $0x30] sm:$0xff]
        %v1606 = vld [vmem:[%s1598 + $0x38] sm:$0xff]
        %v1607 = vld [vmem:[%s1598 + $0x40] sm:$0xff]
        %v1608 = vld [vmem:[%s1598 + $0x48] sm:$0xff]
        %v1609 = vld [vmem:[%s1598 + $0x50] sm:$0xff]
        %v1610 = vld [vmem:[%s1598 + $0x58] sm:$0xff]
        %v1611 = vld [vmem:[%s1598 + $0x60] sm:$0xff]
        %v1612 = vld [vmem:[%s1598 + $0x68] sm:$0xff]
        %v1613 = vld [vmem:[%s1598 + $0x70] sm:$0xff]
        %v1614 = vld [vmem:[%s1598 + $0x78] sm:$0xff]
        %v1615 = vld [vmem:[%s1598 + $0x80] sm:$0xff]
        %v1616 = vld [vmem:[%s1598 + $0x88] sm:$0xff]
        %v1617 = vld [vmem:[%s1598 + $0x90] sm:$0xff]
        %v1618 = vld [vmem:[%s1598 + $0x98] sm:$0xff]
        %v1619 = vld [vmem:[%s1598 + $0xa0] sm:$0xff]
        %v1620 = vld [vmem:[%s1598 + $0xa8] sm:$0xff]
        %v1621 = vld [vmem:[%s1598 + $0xb0] sm:$0xff]
        %v1622 = vld [vmem:[%s1598 + $0xb8] sm:$0xff]
        %v1623 = vld [vmem:[%s1598 + $0xc0] sm:$0xff]
        %v1624 = vld [vmem:[%s1598 + $0xc8] sm:$0xff]
        %v1625 = vld [vmem:[%s1598 + $0xd0] sm:$0xff]
        %v1626 = vld [vmem:[%s1598 + $0xd8] sm:$0xff]
        %v1627 = vld [vmem:[%s1598 + $0xe0] sm:$0xff]
        %v1628 = vld [vmem:[%s1598 + $0xe8] sm:$0xff]
        %v1629 = vld [vmem:[%s1598 + $0xf0] sm:$0xff]
        %v1630 = vld [vmem:[%s1598 + $0xf8] sm:$0xff]
        %v1631 = vld [vmem:[%s1598 + $0x100] sm:$0xff]
        %v1632 = vld [vmem:[%s1598 + $0x108] sm:$0xff]
        %v1633 = vld [vmem:[%s1598 + $0x110] sm:$0xff]
        %v1634 = vld [vmem:[%s1598 + $0x118] sm:$0xff]
        %v1635 = vld [vmem:[%s1598 + $0x120] sm:$0xff]
        %v1636 = vld [vmem:[%s1598 + $0x128] sm:$0xff]
        %v1637 = vld [vmem:[%s1598 + $0x130] sm:$0xff]
        %v1638 = vld [vmem:[%s1598 + $0x138] sm:$0xff]
        %v1639 = vld [vmem:[%s1598 + $0x140] sm:$0xff]
        %v1640 = vld [vmem:[%s1598 + $0x148] sm:$0xff]
        %v1641 = vld [vmem:[%s1598 + $0x150] sm:$0xff]
        %v1642 = vld [vmem:[%s1598 + $0x158] sm:$0xff]
        %v1643 = vld [vmem:[%s1598 + $0x160] sm:$0xff]
        %v1644 = vld [vmem:[%s1598 + $0x168] sm:$0xff]
        %v1645 = vld [vmem:[%s1598 + $0x170] sm:$0xff]
        %v1646 = vld [vmem:[%s1598 + $0x178] sm:$0xff]
        %v1647 = vld [vmem:[%s1598 + $0x180] sm:$0xff]
        %v1648 = vld [vmem:[%s1598 + $0x188] sm:$0xff]
        %v1649 = vld [vmem:[%s1598 + $0x190] sm:$0xff]
        %v1650 = vld [vmem:[%s1598 + $0x198] sm:$0xff]
        %v1651 = vld [vmem:[%s1598 + $0x1a0] sm:$0xff]
        %v1652 = vld [vmem:[%s1598 + $0x1a8] sm:$0xff]
        %v1653 = vld [vmem:[%s1598 + $0x1b0] sm:$0xff]
        %v1654 = vld [vmem:[%s1598 + $0x1b8] sm:$0xff]
        %v1655 = vld [vmem:[%s1598 + $0x1c0] sm:$0xff]
        %v1656 = vld [vmem:[%s1598 + $0x1c8] sm:$0xff]
        %v1657 = vld [vmem:[%s1598 + $0x1d0] sm:$0xff]
        %v1658 = vld [vmem:[%s1598 + $0x1d8] sm:$0xff]
        %v1659 = vld [vmem:[%s1598 + $0x1e0] sm:$0xff]
        %v1660 = vld [vmem:[%s1598 + $0x1e8] sm:$0xff]
        %v1661 = vld [vmem:[%s1598 + $0x1f0] sm:$0xff]
        %v1662 = vld [vmem:[%s1598 + $0x1f8] sm:$0xff]
        %v1664 = vunpack.c.l.b16 %v1597
        %v1665 = vunpack.c.h.b16 %v1597
        %v1666 = vpack.c.b16 %v748, %v1664
        %v1667 = vpack.c.b16 %v749, %v1665
        %vm1668 = vcmask 1046528
        %v1669 = vrot.slane %v1666, 1
        %v1670 = vrot.slane %v754, 1
        %v1671 = vsel %vm1668, %v1669, %v1670
        %v1672 = vrot.slane %v1667, 1
        %v1673 = vrot.slane %v755, 1
        %v1674 = vsel %vm1668, %v1672, %v1673
        %v1741 = vunpack.c.l.b16 %v1599
        %v1742 = vunpack.c.h.b16 %v1599
        %v1743 = vunpack.c.l.b16 %v1600
        %v1744 = vunpack.c.h.b16 %v1600
        %v1745 = vunpack.c.l.b16 %v1601
        %v1746 = vunpack.c.h.b16 %v1601
        %v1747 = vunpack.c.l.b16 %v1602
        %v1748 = vunpack.c.h.b16 %v1602
        %v1749 = vunpack.c.l.b16 %v1603
        %v1750 = vunpack.c.h.b16 %v1603
        %v1751 = vunpack.c.l.b16 %v1604
        %v1752 = vunpack.c.h.b16 %v1604
        %v1753 = vunpack.c.l.b16 %v1605
        %v1754 = vunpack.c.h.b16 %v1605
        %v1755 = vunpack.c.l.b16 %v1606
        %v1756 = vunpack.c.h.b16 %v1606
        %v1757 = vunpack.c.l.b16 %v1607
        %v1758 = vunpack.c.h.b16 %v1607
        %v1759 = vunpack.c.l.b16 %v1608
        %v1760 = vunpack.c.h.b16 %v1608
        %v1761 = vunpack.c.l.b16 %v1609
        %v1762 = vunpack.c.h.b16 %v1609
        %v1763 = vunpack.c.l.b16 %v1610
        %v1764 = vunpack.c.h.b16 %v1610
        %v1765 = vunpack.c.l.b16 %v1611
        %v1766 = vunpack.c.h.b16 %v1611
        %v1767 = vunpack.c.l.b16 %v1612
        %v1768 = vunpack.c.h.b16 %v1612
        %v1769 = vunpack.c.l.b16 %v1613
        %v1770 = vunpack.c.h.b16 %v1613
        %v1771 = vunpack.c.l.b16 %v1614
        %v1772 = vunpack.c.h.b16 %v1614
        %v1773 = vunpack.c.l.b16 %v1615
        %v1774 = vunpack.c.h.b16 %v1615
        %v1775 = vunpack.c.l.b16 %v1616
        %v1776 = vunpack.c.h.b16 %v1616
        %v1777 = vunpack.c.l.b16 %v1617
        %v1778 = vunpack.c.h.b16 %v1617
        %v1779 = vunpack.c.l.b16 %v1618
        %v1780 = vunpack.c.h.b16 %v1618
        %v1781 = vunpack.c.l.b16 %v1619
        %v1782 = vunpack.c.h.b16 %v1619
        %v1783 = vunpack.c.l.b16 %v1620
        %v1784 = vunpack.c.h.b16 %v1620
        %v1785 = vunpack.c.l.b16 %v1621
        %v1786 = vunpack.c.h.b16 %v1621
        %v1787 = vunpack.c.l.b16 %v1622
        %v1788 = vunpack.c.h.b16 %v1622
        %v1789 = vunpack.c.l.b16 %v1623
        %v1790 = vunpack.c.h.b16 %v1623
        %v1791 = vunpack.c.l.b16 %v1624
        %v1792 = vunpack.c.h.b16 %v1624
        %v1793 = vunpack.c.l.b16 %v1625
        %v1794 = vunpack.c.h.b16 %v1625
        %v1795 = vunpack.c.l.b16 %v1626
        %v1796 = vunpack.c.h.b16 %v1626
        %v1797 = vunpack.c.l.b16 %v1627
        %v1798 = vunpack.c.h.b16 %v1627
        %v1799 = vunpack.c.l.b16 %v1628
        %v1800 = vunpack.c.h.b16 %v1628
        %v1801 = vunpack.c.l.b16 %v1629
        %v1802 = vunpack.c.h.b16 %v1629
        %v1803 = vunpack.c.l.b16 %v1630
        %v1804 = vunpack.c.h.b16 %v1630
        %v1805 = vunpack.c.l.b16 %v1631
        %v1806 = vunpack.c.h.b16 %v1631
        %v1807 = vunpack.c.l.b16 %v1632
        %v1808 = vunpack.c.h.b16 %v1632
        %v1809 = vunpack.c.l.b16 %v1633
        %v1810 = vunpack.c.h.b16 %v1633
        %v1811 = vunpack.c.l.b16 %v1634
        %v1812 = vunpack.c.h.b16 %v1634
        %v1813 = vunpack.c.l.b16 %v1635
        %v1814 = vunpack.c.h.b16 %v1635
        %v1815 = vunpack.c.l.b16 %v1636
        %v1816 = vunpack.c.h.b16 %v1636
        %v1817 = vunpack.c.l.b16 %v1637
        %v1818 = vunpack.c.h.b16 %v1637
        %v1819 = vunpack.c.l.b16 %v1638
        %v1820 = vunpack.c.h.b16 %v1638
        %v1821 = vunpack.c.l.b16 %v1639
        %v1822 = vunpack.c.h.b16 %v1639
        %v1823 = vunpack.c.l.b16 %v1640
        %v1824 = vunpack.c.h.b16 %v1640
        %v1825 = vunpack.c.l.b16 %v1641
        %v1826 = vunpack.c.h.b16 %v1641
        %v1827 = vunpack.c.l.b16 %v1642
        %v1828 = vunpack.c.h.b16 %v1642
        %v1829 = vunpack.c.l.b16 %v1643
        %v1830 = vunpack.c.h.b16 %v1643
        %v1831 = vunpack.c.l.b16 %v1644
        %v1832 = vunpack.c.h.b16 %v1644
        %v1833 = vunpack.c.l.b16 %v1645
        %v1834 = vunpack.c.h.b16 %v1645
        %v1835 = vunpack.c.l.b16 %v1646
        %v1836 = vunpack.c.h.b16 %v1646
        %v1837 = vunpack.c.l.b16 %v1647
        %v1838 = vunpack.c.h.b16 %v1647
        %v1839 = vunpack.c.l.b16 %v1648
        %v1840 = vunpack.c.h.b16 %v1648
        %v1841 = vunpack.c.l.b16 %v1649
        %v1842 = vunpack.c.h.b16 %v1649
        %v1843 = vunpack.c.l.b16 %v1650
        %v1844 = vunpack.c.h.b16 %v1650
        %v1845 = vunpack.c.l.b16 %v1651
        %v1846 = vunpack.c.h.b16 %v1651
        %v1847 = vunpack.c.l.b16 %v1652
        %v1848 = vunpack.c.h.b16 %v1652
        %v1849 = vunpack.c.l.b16 %v1653
        %v1850 = vunpack.c.h.b16 %v1653
        %v1851 = vunpack.c.l.b16 %v1654
        %v1852 = vunpack.c.h.b16 %v1654
        %v1853 = vunpack.c.l.b16 %v1655
        %v1854 = vunpack.c.h.b16 %v1655
        %v1855 = vunpack.c.l.b16 %v1656
        %v1856 = vunpack.c.h.b16 %v1656
        %v1857 = vunpack.c.l.b16 %v1657
        %v1858 = vunpack.c.h.b16 %v1657
        %v1859 = vunpack.c.l.b16 %v1658
        %v1860 = vunpack.c.h.b16 %v1658
        %v1861 = vunpack.c.l.b16 %v1659
        %v1862 = vunpack.c.h.b16 %v1659
        %v1863 = vunpack.c.l.b16 %v1660
        %v1864 = vunpack.c.h.b16 %v1660
        %v1865 = vunpack.c.l.b16 %v1661
        %v1866 = vunpack.c.h.b16 %v1661
        %v1867 = vunpack.c.l.b16 %v1662
        %v1868 = vunpack.c.h.b16 %v1662
        %v1869 = vpack.c.b16 %v1745, %v1741
        %v1870 = vpack.c.b16 %v1746, %v1742
        %v1871 = vpack.c.b16 %v1747, %v1743
        %v1872 = vpack.c.b16 %v1748, %v1744
        %v1873 = vpack.c.b16 %v1753, %v1749
        %v1874 = vpack.c.b16 %v1754, %v1750
        %v1875 = vpack.c.b16 %v1755, %v1751
        %v1876 = vpack.c.b16 %v1756, %v1752
        %v1877 = vpack.c.b16 %v1761, %v1757
        %v1878 = vpack.c.b16 %v1762, %v1758
        %v1879 = vpack.c.b16 %v1763, %v1759
        %v1880 = vpack.c.b16 %v1764, %v1760
        %v1881 = vpack.c.b16 %v1769, %v1765
        %v1882 = vpack.c.b16 %v1770, %v1766
        %v1883 = vpack.c.b16 %v1771, %v1767
        %v1884 = vpack.c.b16 %v1772, %v1768
        %v1885 = vpack.c.b16 %v1777, %v1773
        %v1886 = vpack.c.b16 %v1778, %v1774
        %v1887 = vpack.c.b16 %v1779, %v1775
        %v1888 = vpack.c.b16 %v1780, %v1776
        %v1889 = vpack.c.b16 %v1785, %v1781
        %v1890 = vpack.c.b16 %v1786, %v1782
        %v1891 = vpack.c.b16 %v1787, %v1783
        %v1892 = vpack.c.b16 %v1788, %v1784
        %v1893 = vpack.c.b16 %v1793, %v1789
        %v1894 = vpack.c.b16 %v1794, %v1790
        %v1895 = vpack.c.b16 %v1795, %v1791
        %v1896 = vpack.c.b16 %v1796, %v1792
        %v1897 = vpack.c.b16 %v1801, %v1797
        %v1898 = vpack.c.b16 %v1802, %v1798
        %v1899 = vpack.c.b16 %v1803, %v1799
        %v1900 = vpack.c.b16 %v1804, %v1800
        %v1901 = vpack.c.b16 %v1809, %v1805
        %v1902 = vpack.c.b16 %v1810, %v1806
        %v1903 = vpack.c.b16 %v1811, %v1807
        %v1904 = vpack.c.b16 %v1812, %v1808
        %v1905 = vpack.c.b16 %v1817, %v1813
        %v1906 = vpack.c.b16 %v1818, %v1814
        %v1907 = vpack.c.b16 %v1819, %v1815
        %v1908 = vpack.c.b16 %v1820, %v1816
        %v1909 = vpack.c.b16 %v1825, %v1821
        %v1910 = vpack.c.b16 %v1826, %v1822
        %v1911 = vpack.c.b16 %v1827, %v1823
        %v1912 = vpack.c.b16 %v1828, %v1824
        %v1913 = vpack.c.b16 %v1833, %v1829
        %v1914 = vpack.c.b16 %v1834, %v1830
        %v1915 = vpack.c.b16 %v1835, %v1831
        %v1916 = vpack.c.b16 %v1836, %v1832
        %v1917 = vpack.c.b16 %v1841, %v1837
        %v1918 = vpack.c.b16 %v1842, %v1838
        %v1919 = vpack.c.b16 %v1843, %v1839
        %v1920 = vpack.c.b16 %v1844, %v1840
        %v1921 = vpack.c.b16 %v1849, %v1845
        %v1922 = vpack.c.b16 %v1850, %v1846
        %v1923 = vpack.c.b16 %v1851, %v1847
        %v1924 = vpack.c.b16 %v1852, %v1848
        %v1925 = vpack.c.b16 %v1857, %v1853
        %v1926 = vpack.c.b16 %v1858, %v1854
        %v1927 = vpack.c.b16 %v1859, %v1855
        %v1928 = vpack.c.b16 %v1860, %v1856
        %v1929 = vpack.c.b16 %v1865, %v1861
        %v1930 = vpack.c.b16 %v1866, %v1862
        %v1931 = vpack.c.b16 %v1867, %v1863
        %v1932 = vpack.c.b16 %v1868, %v1864
        %1997 = vmatprep.subr.bf16.mxu0 %v1898
        %1998 = vmatpush1.bf16.msra.mxu0 %v1897
        %1999 = vmatprep.subr.bf16.mxu0 %v1894
        %2000 = vmatpush1.bf16.msra.mxu0 %v1893
        %2001 = vmatprep.subr.bf16.mxu0 %v1890
        %2002 = vmatpush1.bf16.msra.mxu0 %v1889
        %2003 = vmatprep.subr.bf16.mxu0 %v1886
        %2004 = vmatpush1.bf16.msra.mxu0 %v1885
        %2005 = vmatprep.subr.bf16.mxu0 %v1882
        %2006 = vmatpush1.bf16.msra.mxu0 %v1881
        %2007 = vmatprep.subr.bf16.mxu0 %v1878
        %2008 = vmatpush1.bf16.msra.mxu0 %v1877
        %2009 = vmatprep.subr.bf16.mxu0 %v1874
        %2010 = vmatpush1.bf16.msra.mxu0 %v1873
        %2011 = vmatprep.subr.bf16.mxu0 %v1870
        %2012 = vmatpush1.bf16.msra.mxu0 %v1869
        %2013 = vmatprep.subr.bf16.mxu0 %v1930
        %2014 = vmatpush2.bf16.msra.mxu0 %v1929
        %2015 = vmatprep.subr.bf16.mxu0 %v1926
        %2016 = vmatpush2.bf16.msra.mxu0 %v1925
        %2017 = vmatprep.subr.bf16.mxu0 %v1922
        %2018 = vmatpush2.bf16.msra.mxu0 %v1921
        %2019 = vmatprep.subr.bf16.mxu0 %v1918
        %2020 = vmatpush2.bf16.msra.mxu0 %v1917
        %2021 = vmatprep.subr.bf16.mxu0 %v1914
        %2022 = vmatpush2.bf16.msra.mxu0 %v1913
        %2023 = vmatprep.subr.bf16.mxu0 %v1910
        %2024 = vmatpush2.bf16.msra.mxu0 %v1909
        %2025 = vmatprep.subr.bf16.mxu0 %v1906
        %2026 = vmatpush2.bf16.msra.mxu0 %v1905
        %2027 = vmatprep.subr.bf16.mxu0 %v1902
        %2028 = vmatpush2.bf16.msra.mxu0 %v1901
        %2029 = vmatprep.mubr.bf16.mxu0 %v1674
        %2030 = vmatmul.mubr.bf16.gmra.mxu0 %v1671
        %v2031 = vpop.f32.mrf.mxu0
        %v2032 = vadd.f32 0.0, %v2031
        %v2033 = vpop.f32.mrf.mxu0
        %v2034 = vadd.f32 0.0, %v2033
        %v2035 = vpop.f32.mrf.mxu0
        %v2036 = vadd.f32 0.0, %v2035
        %v2037 = vpop.f32.mrf.mxu0
        %v2038 = vadd.f32 0.0, %v2037
        %2039 = vdwg.mxu0
        %2040 = vmatprep.subr.bf16.mxu0 %v1900
        %2041 = vmatpush1.bf16.msra.mxu0 %v1899
        %2042 = vmatprep.subr.bf16.mxu0 %v1896
        %2043 = vmatpush1.bf16.msra.mxu0 %v1895
        %2044 = vmatprep.subr.bf16.mxu0 %v1892
        %2045 = vmatpush1.bf16.msra.mxu0 %v1891
        %2046 = vmatprep.subr.bf16.mxu0 %v1888
        %2047 = vmatpush1.bf16.msra.mxu0 %v1887
        %2048 = vmatprep.subr.bf16.mxu0 %v1884
        %2049 = vmatpush1.bf16.msra.mxu0 %v1883
        %2050 = vmatprep.subr.bf16.mxu0 %v1880
        %2051 = vmatpush1.bf16.msra.mxu0 %v1879
        %2052 = vmatprep.subr.bf16.mxu0 %v1876
        %2053 = vmatpush1.bf16.msra.mxu0 %v1875
        %2054 = vmatprep.subr.bf16.mxu0 %v1872
        %2055 = vmatpush1.bf16.msra.mxu0 %v1871
        %2056 = vmatprep.subr.bf16.mxu0 %v1932
        %2057 = vmatpush2.bf16.msra.mxu0 %v1931
        %2058 = vmatprep.subr.bf16.mxu0 %v1928
        %2059 = vmatpush2.bf16.msra.mxu0 %v1927
        %2060 = vmatprep.subr.bf16.mxu0 %v1924
        %2061 = vmatpush2.bf16.msra.mxu0 %v1923
        %2062 = vmatprep.subr.bf16.mxu0 %v1920
        %2063 = vmatpush2.bf16.msra.mxu0 %v1919
        %2064 = vmatprep.subr.bf16.mxu0 %v1916
        %2065 = vmatpush2.bf16.msra.mxu0 %v1915
        %2066 = vmatprep.subr.bf16.mxu0 %v1912
        %2067 = vmatpush2.bf16.msra.mxu0 %v1911
        %2068 = vmatprep.subr.bf16.mxu0 %v1908
        %2069 = vmatpush2.bf16.msra.mxu0 %v1907
        %2070 = vmatprep.subr.bf16.mxu0 %v1904
        %2071 = vmatpush2.bf16.msra.mxu0 %v1903
        %2072 = vmatprep.mubr.bf16.mxu0 %v1674
        %2073 = vmatmul.mubr.bf16.gmra.mxu0 %v1671
        %v2074 = vpop.f32.mrf.mxu0
        %v2075 = vadd.f32 0.0, %v2074
        %v2076 = vpop.f32.mrf.mxu0
        %v2077 = vadd.f32 0.0, %v2076
        %v2078 = vpop.f32.mrf.mxu0
        %v2079 = vadd.f32 0.0, %v2078
        %v2080 = vpop.f32.mrf.mxu0
        %v2081 = vadd.f32 0.0, %v2080
        %2082 = vdwg.mxu0
        %v2083 = vadd.f32 %v1546, %v2032
        %v2084 = vadd.f32 %v1548, %v2034
        %v2085 = vadd.f32 %v1589, %v2075
        %v2086 = vadd.f32 %v1591, %v2077
        %v2087 = vadd.f32 %v1550, %v2036
        %v2088 = vadd.f32 %v1552, %v2038
        %v2089 = vadd.f32 %v1593, %v2079
        %v2090 = vadd.f32 %v1595, %v2081
        %v2091 = vld [vmem:[#allocation2 + $0x10] sm:$0x33]
        %s2092 = scalar_lea.vmem [#allocation6], 1536
        %v2093 = vld [vmem:[%s2092] sm:$0xff]
        %v2094 = vld [vmem:[%s2092 + $0x8] sm:$0xff]
        %v2095 = vld [vmem:[%s2092 + $0x10] sm:$0xff]
        %v2096 = vld [vmem:[%s2092 + $0x18] sm:$0xff]
        %v2097 = vld [vmem:[%s2092 + $0x20] sm:$0xff]
        %v2098 = vld [vmem:[%s2092 + $0x28] sm:$0xff]
        %v2099 = vld [vmem:[%s2092 + $0x30] sm:$0xff]
        %v2100 = vld [vmem:[%s2092 + $0x38] sm:$0xff]
        %v2101 = vld [vmem:[%s2092 + $0x40] sm:$0xff]
        %v2102 = vld [vmem:[%s2092 + $0x48] sm:$0xff]
        %v2103 = vld [vmem:[%s2092 + $0x50] sm:$0xff]
        %v2104 = vld [vmem:[%s2092 + $0x58] sm:$0xff]
        %v2105 = vld [vmem:[%s2092 + $0x60] sm:$0xff]
        %v2106 = vld [vmem:[%s2092 + $0x68] sm:$0xff]
        %v2107 = vld [vmem:[%s2092 + $0x70] sm:$0xff]
        %v2108 = vld [vmem:[%s2092 + $0x78] sm:$0xff]
        %v2109 = vld [vmem:[%s2092 + $0x80] sm:$0xff]
        %v2110 = vld [vmem:[%s2092 + $0x88] sm:$0xff]
        %v2111 = vld [vmem:[%s2092 + $0x90] sm:$0xff]
        %v2112 = vld [vmem:[%s2092 + $0x98] sm:$0xff]
        %v2113 = vld [vmem:[%s2092 + $0xa0] sm:$0xff]
        %v2114 = vld [vmem:[%s2092 + $0xa8] sm:$0xff]
        %v2115 = vld [vmem:[%s2092 + $0xb0] sm:$0xff]
        %v2116 = vld [vmem:[%s2092 + $0xb8] sm:$0xff]
        %v2117 = vld [vmem:[%s2092 + $0xc0] sm:$0xff]
        %v2118 = vld [vmem:[%s2092 + $0xc8] sm:$0xff]
        %v2119 = vld [vmem:[%s2092 + $0xd0] sm:$0xff]
        %v2120 = vld [vmem:[%s2092 + $0xd8] sm:$0xff]
        %v2121 = vld [vmem:[%s2092 + $0xe0] sm:$0xff]
        %v2122 = vld [vmem:[%s2092 + $0xe8] sm:$0xff]
        %v2123 = vld [vmem:[%s2092 + $0xf0] sm:$0xff]
        %v2124 = vld [vmem:[%s2092 + $0xf8] sm:$0xff]
        %v2125 = vld [vmem:[%s2092 + $0x100] sm:$0xff]
        %v2126 = vld [vmem:[%s2092 + $0x108] sm:$0xff]
        %v2127 = vld [vmem:[%s2092 + $0x110] sm:$0xff]
        %v2128 = vld [vmem:[%s2092 + $0x118] sm:$0xff]
        %v2129 = vld [vmem:[%s2092 + $0x120] sm:$0xff]
        %v2130 = vld [vmem:[%s2092 + $0x128] sm:$0xff]
        %v2131 = vld [vmem:[%s2092 + $0x130] sm:$0xff]
        %v2132 = vld [vmem:[%s2092 + $0x138] sm:$0xff]
        %v2133 = vld [vmem:[%s2092 + $0x140] sm:$0xff]
        %v2134 = vld [vmem:[%s2092 + $0x148] sm:$0xff]
        %v2135 = vld [vmem:[%s2092 + $0x150] sm:$0xff]
        %v2136 = vld [vmem:[%s2092 + $0x158] sm:$0xff]
        %v2137 = vld [vmem:[%s2092 + $0x160] sm:$0xff]
        %v2138 = vld [vmem:[%s2092 + $0x168] sm:$0xff]
        %v2139 = vld [vmem:[%s2092 + $0x170] sm:$0xff]
        %v2140 = vld [vmem:[%s2092 + $0x178] sm:$0xff]
        %v2141 = vld [vmem:[%s2092 + $0x180] sm:$0xff]
        %v2142 = vld [vmem:[%s2092 + $0x188] sm:$0xff]
        %v2143 = vld [vmem:[%s2092 + $0x190] sm:$0xff]
        %v2144 = vld [vmem:[%s2092 + $0x198] sm:$0xff]
        %v2145 = vld [vmem:[%s2092 + $0x1a0] sm:$0xff]
        %v2146 = vld [vmem:[%s2092 + $0x1a8] sm:$0xff]
        %v2147 = vld [vmem:[%s2092 + $0x1b0] sm:$0xff]
        %v2148 = vld [vmem:[%s2092 + $0x1b8] sm:$0xff]
        %v2149 = vld [vmem:[%s2092 + $0x1c0] sm:$0xff]
        %v2150 = vld [vmem:[%s2092 + $0x1c8] sm:$0xff]
        %v2151 = vld [vmem:[%s2092 + $0x1d0] sm:$0xff]
        %v2152 = vld [vmem:[%s2092 + $0x1d8] sm:$0xff]
        %v2153 = vld [vmem:[%s2092 + $0x1e0] sm:$0xff]
        %v2154 = vld [vmem:[%s2092 + $0x1e8] sm:$0xff]
        %v2155 = vld [vmem:[%s2092 + $0x1f0] sm:$0xff]
        %v2156 = vld [vmem:[%s2092 + $0x1f8] sm:$0xff]
        %v2158 = vunpack.c.l.b16 %v2091
        %v2159 = vunpack.c.h.b16 %v2091
        %v2160 = vpack.c.b16 %v2158, %v2158
        %v2161 = vpack.c.b16 %v2159, %v2159
        %vm2162 = vsmask.f32 6400
        %v2164 = vshrl.u32 %v1666, 16
        %v2166 = vrot.slane %v2164, 1
        %v2167 = vshll.u32 %v1666, 16
        %v2169 = vrot.slane %v2167, 2
        %v2170 = vor.u32 %v2166, %v2169
        %v2172 = vshrl.u32 %v2160, 16
        %v2174 = vrot.slane %v2172, 1
        %v2175 = vshll.u32 %v2160, 16
        %v2177 = vrot.slane %v2175, 2
        %v2178 = vor.u32 %v2174, %v2177
        %v2179 = vsel %vm2162, %v2170, %v2178
        %v2181 = vshrl.u32 %v1667, 16
        %v2183 = vrot.slane %v2181, 1
        %v2184 = vshll.u32 %v1667, 16
        %v2186 = vrot.slane %v2184, 2
        %v2187 = vor.u32 %v2183, %v2186
        %v2189 = vshrl.u32 %v2161, 16
        %v2191 = vrot.slane %v2189, 1
        %v2192 = vshll.u32 %v2161, 16
        %v2194 = vrot.slane %v2192, 2
        %v2195 = vor.u32 %v2191, %v2194
        %v2196 = vsel %vm2162, %v2187, %v2195
        %v2263 = vunpack.c.l.b16 %v2093
        %v2264 = vunpack.c.h.b16 %v2093
        %v2265 = vunpack.c.l.b16 %v2094
        %v2266 = vunpack.c.h.b16 %v2094
        %v2267 = vunpack.c.l.b16 %v2095
        %v2268 = vunpack.c.h.b16 %v2095
        %v2269 = vunpack.c.l.b16 %v2096
        %v2270 = vunpack.c.h.b16 %v2096
        %v2271 = vunpack.c.l.b16 %v2097
        %v2272 = vunpack.c.h.b16 %v2097
        %v2273 = vunpack.c.l.b16 %v2098
        %v2274 = vunpack.c.h.b16 %v2098
        %v2275 = vunpack.c.l.b16 %v2099
        %v2276 = vunpack.c.h.b16 %v2099
        %v2277 = vunpack.c.l.b16 %v2100
        %v2278 = vunpack.c.h.b16 %v2100
        %v2279 = vunpack.c.l.b16 %v2101
        %v2280 = vunpack.c.h.b16 %v2101
        %v2281 = vunpack.c.l.b16 %v2102
        %v2282 = vunpack.c.h.b16 %v2102
        %v2283 = vunpack.c.l.b16 %v2103
        %v2284 = vunpack.c.h.b16 %v2103
        %v2285 = vunpack.c.l.b16 %v2104
        %v2286 = vunpack.c.h.b16 %v2104
        %v2287 = vunpack.c.l.b16 %v2105
        %v2288 = vunpack.c.h.b16 %v2105
        %v2289 = vunpack.c.l.b16 %v2106
        %v2290 = vunpack.c.h.b16 %v2106
        %v2291 = vunpack.c.l.b16 %v2107
        %v2292 = vunpack.c.h.b16 %v2107
        %v2293 = vunpack.c.l.b16 %v2108
        %v2294 = vunpack.c.h.b16 %v2108
        %v2295 = vunpack.c.l.b16 %v2109
        %v2296 = vunpack.c.h.b16 %v2109
        %v2297 = vunpack.c.l.b16 %v2110
        %v2298 = vunpack.c.h.b16 %v2110
        %v2299 = vunpack.c.l.b16 %v2111
        %v2300 = vunpack.c.h.b16 %v2111
        %v2301 = vunpack.c.l.b16 %v2112
        %v2302 = vunpack.c.h.b16 %v2112
        %v2303 = vunpack.c.l.b16 %v2113
        %v2304 = vunpack.c.h.b16 %v2113
        %v2305 = vunpack.c.l.b16 %v2114
        %v2306 = vunpack.c.h.b16 %v2114
        %v2307 = vunpack.c.l.b16 %v2115
        %v2308 = vunpack.c.h.b16 %v2115
        %v2309 = vunpack.c.l.b16 %v2116
        %v2310 = vunpack.c.h.b16 %v2116
        %v2311 = vunpack.c.l.b16 %v2117
        %v2312 = vunpack.c.h.b16 %v2117
        %v2313 = vunpack.c.l.b16 %v2118
        %v2314 = vunpack.c.h.b16 %v2118
        %v2315 = vunpack.c.l.b16 %v2119
        %v2316 = vunpack.c.h.b16 %v2119
        %v2317 = vunpack.c.l.b16 %v2120
        %v2318 = vunpack.c.h.b16 %v2120
        %v2319 = vunpack.c.l.b16 %v2121
        %v2320 = vunpack.c.h.b16 %v2121
        %v2321 = vunpack.c.l.b16 %v2122
        %v2322 = vunpack.c.h.b16 %v2122
        %v2323 = vunpack.c.l.b16 %v2123
        %v2324 = vunpack.c.h.b16 %v2123
        %v2325 = vunpack.c.l.b16 %v2124
        %v2326 = vunpack.c.h.b16 %v2124
        %v2327 = vunpack.c.l.b16 %v2125
        %v2328 = vunpack.c.h.b16 %v2125
        %v2329 = vunpack.c.l.b16 %v2126
        %v2330 = vunpack.c.h.b16 %v2126
        %v2331 = vunpack.c.l.b16 %v2127
        %v2332 = vunpack.c.h.b16 %v2127
        %v2333 = vunpack.c.l.b16 %v2128
        %v2334 = vunpack.c.h.b16 %v2128
        %v2335 = vunpack.c.l.b16 %v2129
        %v2336 = vunpack.c.h.b16 %v2129
        %v2337 = vunpack.c.l.b16 %v2130
        %v2338 = vunpack.c.h.b16 %v2130
        %v2339 = vunpack.c.l.b16 %v2131
        %v2340 = vunpack.c.h.b16 %v2131
        %v2341 = vunpack.c.l.b16 %v2132
        %v2342 = vunpack.c.h.b16 %v2132
        %v2343 = vunpack.c.l.b16 %v2133
        %v2344 = vunpack.c.h.b16 %v2133
        %v2345 = vunpack.c.l.b16 %v2134
        %v2346 = vunpack.c.h.b16 %v2134
        %v2347 = vunpack.c.l.b16 %v2135
        %v2348 = vunpack.c.h.b16 %v2135
        %v2349 = vunpack.c.l.b16 %v2136
        %v2350 = vunpack.c.h.b16 %v2136
        %v2351 = vunpack.c.l.b16 %v2137
        %v2352 = vunpack.c.h.b16 %v2137
        %v2353 = vunpack.c.l.b16 %v2138
        %v2354 = vunpack.c.h.b16 %v2138
        %v2355 = vunpack.c.l.b16 %v2139
        %v2356 = vunpack.c.h.b16 %v2139
        %v2357 = vunpack.c.l.b16 %v2140
        %v2358 = vunpack.c.h.b16 %v2140
        %v2359 = vunpack.c.l.b16 %v2141
        %v2360 = vunpack.c.h.b16 %v2141
        %v2361 = vunpack.c.l.b16 %v2142
        %v2362 = vunpack.c.h.b16 %v2142
        %v2363 = vunpack.c.l.b16 %v2143
        %v2364 = vunpack.c.h.b16 %v2143
        %v2365 = vunpack.c.l.b16 %v2144
        %v2366 = vunpack.c.h.b16 %v2144
        %v2367 = vunpack.c.l.b16 %v2145
        %v2368 = vunpack.c.h.b16 %v2145
        %v2369 = vunpack.c.l.b16 %v2146
        %v2370 = vunpack.c.h.b16 %v2146
        %v2371 = vunpack.c.l.b16 %v2147
        %v2372 = vunpack.c.h.b16 %v2147
        %v2373 = vunpack.c.l.b16 %v2148
        %v2374 = vunpack.c.h.b16 %v2148
        %v2375 = vunpack.c.l.b16 %v2149
        %v2376 = vunpack.c.h.b16 %v2149
        %v2377 = vunpack.c.l.b16 %v2150
        %v2378 = vunpack.c.h.b16 %v2150
        %v2379 = vunpack.c.l.b16 %v2151
        %v2380 = vunpack.c.h.b16 %v2151
        %v2381 = vunpack.c.l.b16 %v2152
        %v2382 = vunpack.c.h.b16 %v2152
        %v2383 = vunpack.c.l.b16 %v2153
        %v2384 = vunpack.c.h.b16 %v2153
        %v2385 = vunpack.c.l.b16 %v2154
        %v2386 = vunpack.c.h.b16 %v2154
        %v2387 = vunpack.c.l.b16 %v2155
        %v2388 = vunpack.c.h.b16 %v2155
        %v2389 = vunpack.c.l.b16 %v2156
        %v2390 = vunpack.c.h.b16 %v2156
        %v2391 = vpack.c.b16 %v2267, %v2263
        %v2392 = vpack.c.b16 %v2268, %v2264
        %v2393 = vpack.c.b16 %v2269, %v2265
        %v2394 = vpack.c.b16 %v2270, %v2266
        %v2395 = vpack.c.b16 %v2275, %v2271
        %v2396 = vpack.c.b16 %v2276, %v2272
        %v2397 = vpack.c.b16 %v2277, %v2273
        %v2398 = vpack.c.b16 %v2278, %v2274
        %v2399 = vpack.c.b16 %v2283, %v2279
        %v2400 = vpack.c.b16 %v2284, %v2280
        %v2401 = vpack.c.b16 %v2285, %v2281
        %v2402 = vpack.c.b16 %v2286, %v2282
        %v2403 = vpack.c.b16 %v2291, %v2287
        %v2404 = vpack.c.b16 %v2292, %v2288
        %v2405 = vpack.c.b16 %v2293, %v2289
        %v2406 = vpack.c.b16 %v2294, %v2290
        %v2407 = vpack.c.b16 %v2299, %v2295
        %v2408 = vpack.c.b16 %v2300, %v2296
        %v2409 = vpack.c.b16 %v2301, %v2297
        %v2410 = vpack.c.b16 %v2302, %v2298
        %v2411 = vpack.c.b16 %v2307, %v2303
        %v2412 = vpack.c.b16 %v2308, %v2304
        %v2413 = vpack.c.b16 %v2309, %v2305
        %v2414 = vpack.c.b16 %v2310, %v2306
        %v2415 = vpack.c.b16 %v2315, %v2311
        %v2416 = vpack.c.b16 %v2316, %v2312
        %v2417 = vpack.c.b16 %v2317, %v2313
        %v2418 = vpack.c.b16 %v2318, %v2314
        %v2419 = vpack.c.b16 %v2323, %v2319
        %v2420 = vpack.c.b16 %v2324, %v2320
        %v2421 = vpack.c.b16 %v2325, %v2321
        %v2422 = vpack.c.b16 %v2326, %v2322
        %v2423 = vpack.c.b16 %v2331, %v2327
        %v2424 = vpack.c.b16 %v2332, %v2328
        %v2425 = vpack.c.b16 %v2333, %v2329
        %v2426 = vpack.c.b16 %v2334, %v2330
        %v2427 = vpack.c.b16 %v2339, %v2335
        %v2428 = vpack.c.b16 %v2340, %v2336
        %v2429 = vpack.c.b16 %v2341, %v2337
        %v2430 = vpack.c.b16 %v2342, %v2338
        %v2431 = vpack.c.b16 %v2347, %v2343
        %v2432 = vpack.c.b16 %v2348, %v2344
        %v2433 = vpack.c.b16 %v2349, %v2345
        %v2434 = vpack.c.b16 %v2350, %v2346
        %v2435 = vpack.c.b16 %v2355, %v2351
        %v2436 = vpack.c.b16 %v2356, %v2352
        %v2437 = vpack.c.b16 %v2357, %v2353
        %v2438 = vpack.c.b16 %v2358, %v2354
        %v2439 = vpack.c.b16 %v2363, %v2359
        %v2440 = vpack.c.b16 %v2364, %v2360
        %v2441 = vpack.c.b16 %v2365, %v2361
        %v2442 = vpack.c.b16 %v2366, %v2362
        %v2443 = vpack.c.b16 %v2371, %v2367
        %v2444 = vpack.c.b16 %v2372, %v2368
        %v2445 = vpack.c.b16 %v2373, %v2369
        %v2446 = vpack.c.b16 %v2374, %v2370
        %v2447 = vpack.c.b16 %v2379, %v2375
        %v2448 = vpack.c.b16 %v2380, %v2376
        %v2449 = vpack.c.b16 %v2381, %v2377
        %v2450 = vpack.c.b16 %v2382, %v2378
        %v2451 = vpack.c.b16 %v2387, %v2383
        %v2452 = vpack.c.b16 %v2388, %v2384
        %v2453 = vpack.c.b16 %v2389, %v2385
        %v2454 = vpack.c.b16 %v2390, %v2386
        %2519 = vmatprep.subr.bf16.mxu0 %v2420
        %2520 = vmatpush1.bf16.msra.mxu0 %v2419
        %2521 = vmatprep.subr.bf16.mxu0 %v2416
        %2522 = vmatpush1.bf16.msra.mxu0 %v2415
        %2523 = vmatprep.subr.bf16.mxu0 %v2412
        %2524 = vmatpush1.bf16.msra.mxu0 %v2411
        %2525 = vmatprep.subr.bf16.mxu0 %v2408
        %2526 = vmatpush1.bf16.msra.mxu0 %v2407
        %2527 = vmatprep.subr.bf16.mxu0 %v2404
        %2528 = vmatpush1.bf16.msra.mxu0 %v2403
        %2529 = vmatprep.subr.bf16.mxu0 %v2400
        %2530 = vmatpush1.bf16.msra.mxu0 %v2399
        %2531 = vmatprep.subr.bf16.mxu0 %v2396
        %2532 = vmatpush1.bf16.msra.mxu0 %v2395
        %2533 = vmatprep.subr.bf16.mxu0 %v2392
        %2534 = vmatpush1.bf16.msra.mxu0 %v2391
        %2535 = vmatprep.subr.bf16.mxu0 %v2452
        %2536 = vmatpush2.bf16.msra.mxu0 %v2451
        %2537 = vmatprep.subr.bf16.mxu0 %v2448
        %2538 = vmatpush2.bf16.msra.mxu0 %v2447
        %2539 = vmatprep.subr.bf16.mxu0 %v2444
        %2540 = vmatpush2.bf16.msra.mxu0 %v2443
        %2541 = vmatprep.subr.bf16.mxu0 %v2440
        %2542 = vmatpush2.bf16.msra.mxu0 %v2439
        %2543 = vmatprep.subr.bf16.mxu0 %v2436
        %2544 = vmatpush2.bf16.msra.mxu0 %v2435
        %2545 = vmatprep.subr.bf16.mxu0 %v2432
        %2546 = vmatpush2.bf16.msra.mxu0 %v2431
        %2547 = vmatprep.subr.bf16.mxu0 %v2428
        %2548 = vmatpush2.bf16.msra.mxu0 %v2427
        %2549 = vmatprep.subr.bf16.mxu0 %v2424
        %2550 = vmatpush2.bf16.msra.mxu0 %v2423
        %2551 = vmatprep.mubr.bf16.mxu0 %v2196
        %2552 = vmatmul.mubr.bf16.gmra.mxu0 %v2179
        %v2553 = vpop.f32.mrf.mxu0
        %v2554 = vadd.f32 0.0, %v2553
        %v2555 = vpop.f32.mrf.mxu0
        %v2556 = vadd.f32 0.0, %v2555
        %v2557 = vpop.f32.mrf.mxu0
        %v2558 = vadd.f32 0.0, %v2557
        %v2559 = vpop.f32.mrf.mxu0
        %v2560 = vadd.f32 0.0, %v2559
        %2561 = vdwg.mxu0
        %2562 = vmatprep.subr.bf16.mxu0 %v2422
        %2563 = vmatpush1.bf16.msra.mxu0 %v2421
        %2564 = vmatprep.subr.bf16.mxu0 %v2418
        %2565 = vmatpush1.bf16.msra.mxu0 %v2417
        %2566 = vmatprep.subr.bf16.mxu0 %v2414
        %2567 = vmatpush1.bf16.msra.mxu0 %v2413
        %2568 = vmatprep.subr.bf16.mxu0 %v2410
        %2569 = vmatpush1.bf16.msra.mxu0 %v2409
        %2570 = vmatprep.subr.bf16.mxu0 %v2406
        %2571 = vmatpush1.bf16.msra.mxu0 %v2405
        %2572 = vmatprep.subr.bf16.mxu0 %v2402
        %2573 = vmatpush1.bf16.msra.mxu0 %v2401
        %2574 = vmatprep.subr.bf16.mxu0 %v2398
        %2575 = vmatpush1.bf16.msra.mxu0 %v2397
        %2576 = vmatprep.subr.bf16.mxu0 %v2394
        %2577 = vmatpush1.bf16.msra.mxu0 %v2393
        %2578 = vmatprep.subr.bf16.mxu0 %v2454
        %2579 = vmatpush2.bf16.msra.mxu0 %v2453
        %2580 = vmatprep.subr.bf16.mxu0 %v2450
        %2581 = vmatpush2.bf16.msra.mxu0 %v2449
        %2582 = vmatprep.subr.bf16.mxu0 %v2446
        %2583 = vmatpush2.bf16.msra.mxu0 %v2445
        %2584 = vmatprep.subr.bf16.mxu0 %v2442
        %2585 = vmatpush2.bf16.msra.mxu0 %v2441
        %2586 = vmatprep.subr.bf16.mxu0 %v2438
        %2587 = vmatpush2.bf16.msra.mxu0 %v2437
        %2588 = vmatprep.subr.bf16.mxu0 %v2434
        %2589 = vmatpush2.bf16.msra.mxu0 %v2433
        %2590 = vmatprep.subr.bf16.mxu0 %v2430
        %2591 = vmatpush2.bf16.msra.mxu0 %v2429
        %2592 = vmatprep.subr.bf16.mxu0 %v2426
        %2593 = vmatpush2.bf16.msra.mxu0 %v2425
        %2594 = vmatprep.mubr.bf16.mxu0 %v2196
        %2595 = vmatmul.mubr.bf16.gmra.mxu0 %v2179
        %v2596 = vpop.f32.mrf.mxu0
        %v2597 = vadd.f32 0.0, %v2596
        %v2598 = vpop.f32.mrf.mxu0
        %v2599 = vadd.f32 0.0, %v2598
        %v2600 = vpop.f32.mrf.mxu0
        %v2601 = vadd.f32 0.0, %v2600
        %v2602 = vpop.f32.mrf.mxu0
        %v2603 = vadd.f32 0.0, %v2602
        %2604 = vdwg.mxu0
        %v2605 = vadd.f32 %v2083, %v2554
        %v2606 = vadd.f32 %v2084, %v2556
        %v2607 = vadd.f32 %v2085, %v2597
        %v2608 = vadd.f32 %v2086, %v2599
        %v2609 = vadd.f32 %v2087, %v2558
        %v2610 = vadd.f32 %v2088, %v2560
        %v2611 = vadd.f32 %v2089, %v2601
        %v2612 = vadd.f32 %v2090, %v2603
        %v2613 = vld [vmem:[#allocation2] sm:$0xcc]
        %s2614 = scalar_lea.vmem [#allocation6], 2048
        %v2615 = vld [vmem:[%s2614] sm:$0xff]
        %v2616 = vld [vmem:[%s2614 + $0x8] sm:$0xff]
        %v2617 = vld [vmem:[%s2614 + $0x10] sm:$0xff]
        %v2618 = vld [vmem:[%s2614 + $0x18] sm:$0xff]
        %v2619 = vld [vmem:[%s2614 + $0x20] sm:$0xff]
        %v2620 = vld [vmem:[%s2614 + $0x28] sm:$0xff]
        %v2621 = vld [vmem:[%s2614 + $0x30] sm:$0xff]
        %v2622 = vld [vmem:[%s2614 + $0x38] sm:$0xff]
        %v2623 = vld [vmem:[%s2614 + $0x40] sm:$0xff]
        %v2624 = vld [vmem:[%s2614 + $0x48] sm:$0xff]
        %v2625 = vld [vmem:[%s2614 + $0x50] sm:$0xff]
        %v2626 = vld [vmem:[%s2614 + $0x58] sm:$0xff]
        %v2627 = vld [vmem:[%s2614 + $0x60] sm:$0xff]
        %v2628 = vld [vmem:[%s2614 + $0x68] sm:$0xff]
        %v2629 = vld [vmem:[%s2614 + $0x70] sm:$0xff]
        %v2630 = vld [vmem:[%s2614 + $0x78] sm:$0xff]
        %v2631 = vld [vmem:[%s2614 + $0x80] sm:$0xff]
        %v2632 = vld [vmem:[%s2614 + $0x88] sm:$0xff]
        %v2633 = vld [vmem:[%s2614 + $0x90] sm:$0xff]
        %v2634 = vld [vmem:[%s2614 + $0x98] sm:$0xff]
        %v2635 = vld [vmem:[%s2614 + $0xa0] sm:$0xff]
        %v2636 = vld [vmem:[%s2614 + $0xa8] sm:$0xff]
        %v2637 = vld [vmem:[%s2614 + $0xb0] sm:$0xff]
        %v2638 = vld [vmem:[%s2614 + $0xb8] sm:$0xff]
        %v2639 = vld [vmem:[%s2614 + $0xc0] sm:$0xff]
        %v2640 = vld [vmem:[%s2614 + $0xc8] sm:$0xff]
        %v2641 = vld [vmem:[%s2614 + $0xd0] sm:$0xff]
        %v2642 = vld [vmem:[%s2614 + $0xd8] sm:$0xff]
        %v2643 = vld [vmem:[%s2614 + $0xe0] sm:$0xff]
        %v2644 = vld [vmem:[%s2614 + $0xe8] sm:$0xff]
        %v2645 = vld [vmem:[%s2614 + $0xf0] sm:$0xff]
        %v2646 = vld [vmem:[%s2614 + $0xf8] sm:$0xff]
        %v2647 = vld [vmem:[%s2614 + $0x100] sm:$0xff]
        %v2648 = vld [vmem:[%s2614 + $0x108] sm:$0xff]
        %v2649 = vld [vmem:[%s2614 + $0x110] sm:$0xff]
        %v2650 = vld [vmem:[%s2614 + $0x118] sm:$0xff]
        %v2651 = vld [vmem:[%s2614 + $0x120] sm:$0xff]
        %v2652 = vld [vmem:[%s2614 + $0x128] sm:$0xff]
        %v2653 = vld [vmem:[%s2614 + $0x130] sm:$0xff]
        %v2654 = vld [vmem:[%s2614 + $0x138] sm:$0xff]
        %v2655 = vld [vmem:[%s2614 + $0x140] sm:$0xff]
        %v2656 = vld [vmem:[%s2614 + $0x148] sm:$0xff]
        %v2657 = vld [vmem:[%s2614 + $0x150] sm:$0xff]
        %v2658 = vld [vmem:[%s2614 + $0x158] sm:$0xff]
        %v2659 = vld [vmem:[%s2614 + $0x160] sm:$0xff]
        %v2660 = vld [vmem:[%s2614 + $0x168] sm:$0xff]
        %v2661 = vld [vmem:[%s2614 + $0x170] sm:$0xff]
        %v2662 = vld [vmem:[%s2614 + $0x178] sm:$0xff]
        %v2663 = vld [vmem:[%s2614 + $0x180] sm:$0xff]
        %v2664 = vld [vmem:[%s2614 + $0x188] sm:$0xff]
        %v2665 = vld [vmem:[%s2614 + $0x190] sm:$0xff]
        %v2666 = vld [vmem:[%s2614 + $0x198] sm:$0xff]
        %v2667 = vld [vmem:[%s2614 + $0x1a0] sm:$0xff]
        %v2668 = vld [vmem:[%s2614 + $0x1a8] sm:$0xff]
        %v2669 = vld [vmem:[%s2614 + $0x1b0] sm:$0xff]
        %v2670 = vld [vmem:[%s2614 + $0x1b8] sm:$0xff]
        %v2671 = vld [vmem:[%s2614 + $0x1c0] sm:$0xff]
        %v2672 = vld [vmem:[%s2614 + $0x1c8] sm:$0xff]
        %v2673 = vld [vmem:[%s2614 + $0x1d0] sm:$0xff]
        %v2674 = vld [vmem:[%s2614 + $0x1d8] sm:$0xff]
        %v2675 = vld [vmem:[%s2614 + $0x1e0] sm:$0xff]
        %v2676 = vld [vmem:[%s2614 + $0x1e8] sm:$0xff]
        %v2677 = vld [vmem:[%s2614 + $0x1f0] sm:$0xff]
        %v2678 = vld [vmem:[%s2614 + $0x1f8] sm:$0xff]
        %v2680 = vunpack.c.l.b16 %v2613
        %v2681 = vunpack.c.h.b16 %v2613
        %v2682 = vpack.c.b16 %v748, %v2680
        %v2683 = vpack.c.b16 %v749, %v2681
        %vm2684 = vcmask 1045504
        %v2685 = vrot.slane %v2682, 2
        %v2686 = vrot.slane %v2160, 2
        %v2687 = vsel %vm2684, %v2685, %v2686
        %v2688 = vrot.slane %v2683, 2
        %v2689 = vrot.slane %v2161, 2
        %v2690 = vsel %vm2684, %v2688, %v2689
        %v2757 = vunpack.c.l.b16 %v2615
        %v2758 = vunpack.c.h.b16 %v2615
        %v2759 = vunpack.c.l.b16 %v2616
        %v2760 = vunpack.c.h.b16 %v2616
        %v2761 = vunpack.c.l.b16 %v2617
        %v2762 = vunpack.c.h.b16 %v2617
        %v2763 = vunpack.c.l.b16 %v2618
        %v2764 = vunpack.c.h.b16 %v2618
        %v2765 = vunpack.c.l.b16 %v2619
        %v2766 = vunpack.c.h.b16 %v2619
        %v2767 = vunpack.c.l.b16 %v2620
        %v2768 = vunpack.c.h.b16 %v2620
        %v2769 = vunpack.c.l.b16 %v2621
        %v2770 = vunpack.c.h.b16 %v2621
        %v2771 = vunpack.c.l.b16 %v2622
        %v2772 = vunpack.c.h.b16 %v2622
        %v2773 = vunpack.c.l.b16 %v2623
        %v2774 = vunpack.c.h.b16 %v2623
        %v2775 = vunpack.c.l.b16 %v2624
        %v2776 = vunpack.c.h.b16 %v2624
        %v2777 = vunpack.c.l.b16 %v2625
        %v2778 = vunpack.c.h.b16 %v2625
        %v2779 = vunpack.c.l.b16 %v2626
        %v2780 = vunpack.c.h.b16 %v2626
        %v2781 = vunpack.c.l.b16 %v2627
        %v2782 = vunpack.c.h.b16 %v2627
        %v2783 = vunpack.c.l.b16 %v2628
        %v2784 = vunpack.c.h.b16 %v2628
        %v2785 = vunpack.c.l.b16 %v2629
        %v2786 = vunpack.c.h.b16 %v2629
        %v2787 = vunpack.c.l.b16 %v2630
        %v2788 = vunpack.c.h.b16 %v2630
        %v2789 = vunpack.c.l.b16 %v2631
        %v2790 = vunpack.c.h.b16 %v2631
        %v2791 = vunpack.c.l.b16 %v2632
        %v2792 = vunpack.c.h.b16 %v2632
        %v2793 = vunpack.c.l.b16 %v2633
        %v2794 = vunpack.c.h.b16 %v2633
        %v2795 = vunpack.c.l.b16 %v2634
        %v2796 = vunpack.c.h.b16 %v2634
        %v2797 = vunpack.c.l.b16 %v2635
        %v2798 = vunpack.c.h.b16 %v2635
        %v2799 = vunpack.c.l.b16 %v2636
        %v2800 = vunpack.c.h.b16 %v2636
        %v2801 = vunpack.c.l.b16 %v2637
        %v2802 = vunpack.c.h.b16 %v2637
        %v2803 = vunpack.c.l.b16 %v2638
        %v2804 = vunpack.c.h.b16 %v2638
        %v2805 = vunpack.c.l.b16 %v2639
        %v2806 = vunpack.c.h.b16 %v2639
        %v2807 = vunpack.c.l.b16 %v2640
        %v2808 = vunpack.c.h.b16 %v2640
        %v2809 = vunpack.c.l.b16 %v2641
        %v2810 = vunpack.c.h.b16 %v2641
        %v2811 = vunpack.c.l.b16 %v2642
        %v2812 = vunpack.c.h.b16 %v2642
        %v2813 = vunpack.c.l.b16 %v2643
        %v2814 = vunpack.c.h.b16 %v2643
        %v2815 = vunpack.c.l.b16 %v2644
        %v2816 = vunpack.c.h.b16 %v2644
        %v2817 = vunpack.c.l.b16 %v2645
        %v2818 = vunpack.c.h.b16 %v2645
        %v2819 = vunpack.c.l.b16 %v2646
        %v2820 = vunpack.c.h.b16 %v2646
        %v2821 = vunpack.c.l.b16 %v2647
        %v2822 = vunpack.c.h.b16 %v2647
        %v2823 = vunpack.c.l.b16 %v2648
        %v2824 = vunpack.c.h.b16 %v2648
        %v2825 = vunpack.c.l.b16 %v2649
        %v2826 = vunpack.c.h.b16 %v2649
        %v2827 = vunpack.c.l.b16 %v2650
        %v2828 = vunpack.c.h.b16 %v2650
        %v2829 = vunpack.c.l.b16 %v2651
        %v2830 = vunpack.c.h.b16 %v2651
        %v2831 = vunpack.c.l.b16 %v2652
        %v2832 = vunpack.c.h.b16 %v2652
        %v2833 = vunpack.c.l.b16 %v2653
        %v2834 = vunpack.c.h.b16 %v2653
        %v2835 = vunpack.c.l.b16 %v2654
        %v2836 = vunpack.c.h.b16 %v2654
        %v2837 = vunpack.c.l.b16 %v2655
        %v2838 = vunpack.c.h.b16 %v2655
        %v2839 = vunpack.c.l.b16 %v2656
        %v2840 = vunpack.c.h.b16 %v2656
        %v2841 = vunpack.c.l.b16 %v2657
        %v2842 = vunpack.c.h.b16 %v2657
        %v2843 = vunpack.c.l.b16 %v2658
        %v2844 = vunpack.c.h.b16 %v2658
        %v2845 = vunpack.c.l.b16 %v2659
        %v2846 = vunpack.c.h.b16 %v2659
        %v2847 = vunpack.c.l.b16 %v2660
        %v2848 = vunpack.c.h.b16 %v2660
        %v2849 = vunpack.c.l.b16 %v2661
        %v2850 = vunpack.c.h.b16 %v2661
        %v2851 = vunpack.c.l.b16 %v2662
        %v2852 = vunpack.c.h.b16 %v2662
        %v2853 = vunpack.c.l.b16 %v2663
        %v2854 = vunpack.c.h.b16 %v2663
        %v2855 = vunpack.c.l.b16 %v2664
        %v2856 = vunpack.c.h.b16 %v2664
        %v2857 = vunpack.c.l.b16 %v2665
        %v2858 = vunpack.c.h.b16 %v2665
        %v2859 = vunpack.c.l.b16 %v2666
        %v2860 = vunpack.c.h.b16 %v2666
        %v2861 = vunpack.c.l.b16 %v2667
        %v2862 = vunpack.c.h.b16 %v2667
        %v2863 = vunpack.c.l.b16 %v2668
        %v2864 = vunpack.c.h.b16 %v2668
        %v2865 = vunpack.c.l.b16 %v2669
        %v2866 = vunpack.c.h.b16 %v2669
        %v2867 = vunpack.c.l.b16 %v2670
        %v2868 = vunpack.c.h.b16 %v2670
        %v2869 = vunpack.c.l.b16 %v2671
        %v2870 = vunpack.c.h.b16 %v2671
        %v2871 = vunpack.c.l.b16 %v2672
        %v2872 = vunpack.c.h.b16 %v2672
        %v2873 = vunpack.c.l.b16 %v2673
        %v2874 = vunpack.c.h.b16 %v2673
        %v2875 = vunpack.c.l.b16 %v2674
        %v2876 = vunpack.c.h.b16 %v2674
        %v2877 = vunpack.c.l.b16 %v2675
        %v2878 = vunpack.c.h.b16 %v2675
        %v2879 = vunpack.c.l.b16 %v2676
        %v2880 = vunpack.c.h.b16 %v2676
        %v2881 = vunpack.c.l.b16 %v2677
        %v2882 = vunpack.c.h.b16 %v2677
        %v2883 = vunpack.c.l.b16 %v2678
        %v2884 = vunpack.c.h.b16 %v2678
        %v2885 = vpack.c.b16 %v2761, %v2757
        %v2886 = vpack.c.b16 %v2762, %v2758
        %v2887 = vpack.c.b16 %v2763, %v2759
        %v2888 = vpack.c.b16 %v2764, %v2760
        %v2889 = vpack.c.b16 %v2769, %v2765
        %v2890 = vpack.c.b16 %v2770, %v2766
        %v2891 = vpack.c.b16 %v2771, %v2767
        %v2892 = vpack.c.b16 %v2772, %v2768
        %v2893 = vpack.c.b16 %v2777, %v2773
        %v2894 = vpack.c.b16 %v2778, %v2774
        %v2895 = vpack.c.b16 %v2779, %v2775
        %v2896 = vpack.c.b16 %v2780, %v2776
        %v2897 = vpack.c.b16 %v2785, %v2781
        %v2898 = vpack.c.b16 %v2786, %v2782
        %v2899 = vpack.c.b16 %v2787, %v2783
        %v2900 = vpack.c.b16 %v2788, %v2784
        %v2901 = vpack.c.b16 %v2793, %v2789
        %v2902 = vpack.c.b16 %v2794, %v2790
        %v2903 = vpack.c.b16 %v2795, %v2791
        %v2904 = vpack.c.b16 %v2796, %v2792
        %v2905 = vpack.c.b16 %v2801, %v2797
        %v2906 = vpack.c.b16 %v2802, %v2798
        %v2907 = vpack.c.b16 %v2803, %v2799
        %v2908 = vpack.c.b16 %v2804, %v2800
        %v2909 = vpack.c.b16 %v2809, %v2805
        %v2910 = vpack.c.b16 %v2810, %v2806
        %v2911 = vpack.c.b16 %v2811, %v2807
        %v2912 = vpack.c.b16 %v2812, %v2808
        %v2913 = vpack.c.b16 %v2817, %v2813
        %v2914 = vpack.c.b16 %v2818, %v2814
        %v2915 = vpack.c.b16 %v2819, %v2815
        %v2916 = vpack.c.b16 %v2820, %v2816
        %v2917 = vpack.c.b16 %v2825, %v2821
        %v2918 = vpack.c.b16 %v2826, %v2822
        %v2919 = vpack.c.b16 %v2827, %v2823
        %v2920 = vpack.c.b16 %v2828, %v2824
        %v2921 = vpack.c.b16 %v2833, %v2829
        %v2922 = vpack.c.b16 %v2834, %v2830
        %v2923 = vpack.c.b16 %v2835, %v2831
        %v2924 = vpack.c.b16 %v2836, %v2832
        %v2925 = vpack.c.b16 %v2841, %v2837
        %v2926 = vpack.c.b16 %v2842, %v2838
        %v2927 = vpack.c.b16 %v2843, %v2839
        %v2928 = vpack.c.b16 %v2844, %v2840
        %v2929 = vpack.c.b16 %v2849, %v2845
        %v2930 = vpack.c.b16 %v2850, %v2846
        %v2931 = vpack.c.b16 %v2851, %v2847
        %v2932 = vpack.c.b16 %v2852, %v2848
        %v2933 = vpack.c.b16 %v2857, %v2853
        %v2934 = vpack.c.b16 %v2858, %v2854
        %v2935 = vpack.c.b16 %v2859, %v2855
        %v2936 = vpack.c.b16 %v2860, %v2856
        %v2937 = vpack.c.b16 %v2865, %v2861
        %v2938 = vpack.c.b16 %v2866, %v2862
        %v2939 = vpack.c.b16 %v2867, %v2863
        %v2940 = vpack.c.b16 %v2868, %v2864
        %v2941 = vpack.c.b16 %v2873, %v2869
        %v2942 = vpack.c.b16 %v2874, %v2870
        %v2943 = vpack.c.b16 %v2875, %v2871
        %v2944 = vpack.c.b16 %v2876, %v2872
        %v2945 = vpack.c.b16 %v2881, %v2877
        %v2946 = vpack.c.b16 %v2882, %v2878
        %v2947 = vpack.c.b16 %v2883, %v2879
        %v2948 = vpack.c.b16 %v2884, %v2880
        %3013 = vmatprep.subr.bf16.mxu0 %v2914
        %3014 = vmatpush1.bf16.msra.mxu0 %v2913
        %3015 = vmatprep.subr.bf16.mxu0 %v2910
        %3016 = vmatpush1.bf16.msra.mxu0 %v2909
        %3017 = vmatprep.subr.bf16.mxu0 %v2906
        %3018 = vmatpush1.bf16.msra.mxu0 %v2905
        %3019 = vmatprep.subr.bf16.mxu0 %v2902
        %3020 = vmatpush1.bf16.msra.mxu0 %v2901
        %3021 = vmatprep.subr.bf16.mxu0 %v2898
        %3022 = vmatpush1.bf16.msra.mxu0 %v2897
        %3023 = vmatprep.subr.bf16.mxu0 %v2894
        %3024 = vmatpush1.bf16.msra.mxu0 %v2893
        %3025 = vmatprep.subr.bf16.mxu0 %v2890
        %3026 = vmatpush1.bf16.msra.mxu0 %v2889
        %3027 = vmatprep.subr.bf16.mxu0 %v2886
        %3028 = vmatpush1.bf16.msra.mxu0 %v2885
        %3029 = vmatprep.subr.bf16.mxu0 %v2946
        %3030 = vmatpush2.bf16.msra.mxu0 %v2945
        %3031 = vmatprep.subr.bf16.mxu0 %v2942
        %3032 = vmatpush2.bf16.msra.mxu0 %v2941
        %3033 = vmatprep.subr.bf16.mxu0 %v2938
        %3034 = vmatpush2.bf16.msra.mxu0 %v2937
        %3035 = vmatprep.subr.bf16.mxu0 %v2934
        %3036 = vmatpush2.bf16.msra.mxu0 %v2933
        %3037 = vmatprep.subr.bf16.mxu0 %v2930
        %3038 = vmatpush2.bf16.msra.mxu0 %v2929
        %3039 = vmatprep.subr.bf16.mxu0 %v2926
        %3040 = vmatpush2.bf16.msra.mxu0 %v2925
        %3041 = vmatprep.subr.bf16.mxu0 %v2922
        %3042 = vmatpush2.bf16.msra.mxu0 %v2921
        %3043 = vmatprep.subr.bf16.mxu0 %v2918
        %3044 = vmatpush2.bf16.msra.mxu0 %v2917
        %3045 = vmatprep.mubr.bf16.mxu0 %v2690
        %3046 = vmatmul.mubr.bf16.gmra.mxu0 %v2687
        %v3047 = vpop.f32.mrf.mxu0
        %v3048 = vadd.f32 0.0, %v3047
        %v3049 = vpop.f32.mrf.mxu0
        %v3050 = vadd.f32 0.0, %v3049
        %v3051 = vpop.f32.mrf.mxu0
        %v3052 = vadd.f32 0.0, %v3051
        %v3053 = vpop.f32.mrf.mxu0
        %v3054 = vadd.f32 0.0, %v3053
        %3055 = vdwg.mxu0
        %3056 = vmatprep.subr.bf16.mxu0 %v2916
        %3057 = vmatpush1.bf16.msra.mxu0 %v2915
        %3058 = vmatprep.subr.bf16.mxu0 %v2912
        %3059 = vmatpush1.bf16.msra.mxu0 %v2911
        %3060 = vmatprep.subr.bf16.mxu0 %v2908
        %3061 = vmatpush1.bf16.msra.mxu0 %v2907
        %3062 = vmatprep.subr.bf16.mxu0 %v2904
        %3063 = vmatpush1.bf16.msra.mxu0 %v2903
        %3064 = vmatprep.subr.bf16.mxu0 %v2900
        %3065 = vmatpush1.bf16.msra.mxu0 %v2899
        %3066 = vmatprep.subr.bf16.mxu0 %v2896
        %3067 = vmatpush1.bf16.msra.mxu0 %v2895
        %3068 = vmatprep.subr.bf16.mxu0 %v2892
        %3069 = vmatpush1.bf16.msra.mxu0 %v2891
        %3070 = vmatprep.subr.bf16.mxu0 %v2888
        %3071 = vmatpush1.bf16.msra.mxu0 %v2887
        %3072 = vmatprep.subr.bf16.mxu0 %v2948
        %3073 = vmatpush2.bf16.msra.mxu0 %v2947
        %3074 = vmatprep.subr.bf16.mxu0 %v2944
        %3075 = vmatpush2.bf16.msra.mxu0 %v2943
        %3076 = vmatprep.subr.bf16.mxu0 %v2940
        %3077 = vmatpush2.bf16.msra.mxu0 %v2939
        %3078 = vmatprep.subr.bf16.mxu0 %v2936
        %3079 = vmatpush2.bf16.msra.mxu0 %v2935
        %3080 = vmatprep.subr.bf16.mxu0 %v2932
        %3081 = vmatpush2.bf16.msra.mxu0 %v2931
        %3082 = vmatprep.subr.bf16.mxu0 %v2928
        %3083 = vmatpush2.bf16.msra.mxu0 %v2927
        %3084 = vmatprep.subr.bf16.mxu0 %v2924
        %3085 = vmatpush2.bf16.msra.mxu0 %v2923
        %3086 = vmatprep.subr.bf16.mxu0 %v2920
        %3087 = vmatpush2.bf16.msra.mxu0 %v2919
        %3088 = vmatprep.mubr.bf16.mxu0 %v2690
        %3089 = vmatmul.mubr.bf16.gmra.mxu0 %v2687
        %v3090 = vpop.f32.mrf.mxu0
        %v3091 = vadd.f32 0.0, %v3090
        %v3092 = vpop.f32.mrf.mxu0
        %v3093 = vadd.f32 0.0, %v3092
        %v3094 = vpop.f32.mrf.mxu0
        %v3095 = vadd.f32 0.0, %v3094
        %v3096 = vpop.f32.mrf.mxu0
        %v3097 = vadd.f32 0.0, %v3096
        %3098 = vdwg.mxu0
        %v3099 = vadd.f32 %v2605, %v3048
        %v3100 = vadd.f32 %v2606, %v3050
        %v3101 = vadd.f32 %v2607, %v3091
        %v3102 = vadd.f32 %v2608, %v3093
        %v3103 = vadd.f32 %v2609, %v3052
        %v3104 = vadd.f32 %v2610, %v3054
        %v3105 = vadd.f32 %v2611, %v3095
        %v3106 = vadd.f32 %v2612, %v3097
        %v3107 = vld [vmem:[#allocation8] sm:$0xf]
        %v3109 = vlaneseq
        %v3110 = vshrl.u32 %v3109, 7
        %v3111 = vsub.s32 0, %v3110
        %v3112 = vrot.slane %v3107, %v3111
        %v3113 = vlaneseq
        %v3114 = vshrl.u32 %v3113, 7
        %v3115 = vsub.s32 1, %v3114
        %v3116 = vrot.slane %v3107, %v3115
        %v3117 = vlaneseq
        %v3118 = vshrl.u32 %v3117, 7
        %v3119 = vsub.s32 2, %v3118
        %v3120 = vrot.slane %v3107, %v3119
        %v3121 = vlaneseq
        %v3122 = vshrl.u32 %v3121, 7
        %v3123 = vsub.s32 3, %v3122
        %v3124 = vrot.slane %v3107, %v3123
        %v3129 = vadd.f32 %v3099, %v3112
        %v3130 = vadd.f32 %v3100, %v3116
        %v3131 = vadd.f32 %v3101, %v3120
        %v3132 = vadd.f32 %v3102, %v3124
        %v3133 = vadd.f32 %v3103, %v3112
        %v3134 = vadd.f32 %v3104, %v3116
        %v3135 = vadd.f32 %v3105, %v3120
        %v3136 = vadd.f32 %v3106, %v3124
        %v3137 = vmax.f32 %v3129, 0.0
        %v3138 = vmax.f32 %v3130, 0.0
        %v3139 = vmax.f32 %v3133, 0.0
        %v3140 = vmax.f32 %v3134, 0.0
        %v3141 = vmax.f32 %v3131, 0.0
        %v3142 = vmax.f32 %v3132, 0.0
        %v3143 = vmax.f32 %v3135, 0.0
        %v3144 = vmax.f32 %v3136, 0.0
        %v3145 = vadd.f32 %v3137, %v3141
        %v3146 = vadd.f32 %v3138, %v3142
        %v3147 = vadd.f32 %v3139, %v3143
        %v3148 = vadd.f32 %v3140, %v3144
        %v3149 = vpack.c.bf16 %v3147, %v3145
        %v3150 = vpack.c.bf16 %v3148, %v3146
        %v3151 = vld [vmem:[%s489] sm:$0xff]
        %v3152 = vld [vmem:[%s489 + $0x8] sm:$0xff]
        %v3153 = vld [vmem:[%s489 + $0x10] sm:$0xff]
        %v3154 = vld [vmem:[%s489 + $0x18] sm:$0xff]
        %v3155 = vpack.c.bf16 %v3153, %v3151
        %v3156 = vpack.c.bf16 %v3154, %v3152
        %v3157 = vld [vmem:[#allocation9] sm:$0xff]
        %v3158 = vld [vmem:[#allocation9 + $0x8] sm:$0xff]
        %v3159 = vld [vmem:[#allocation9 + $0x10] sm:$0xff]
        %v3160 = vld [vmem:[#allocation9 + $0x18] sm:$0xff]
        %v3161 = vld [vmem:[#allocation9 + $0x20] sm:$0xff]
        %v3162 = vld [vmem:[#allocation9 + $0x28] sm:$0xff]
        %v3163 = vld [vmem:[#allocation9 + $0x30] sm:$0xff]
        %v3164 = vld [vmem:[#allocation9 + $0x38] sm:$0xff]
        %v3165 = vld [vmem:[#allocation9 + $0x40] sm:$0xff]
        %v3166 = vld [vmem:[#allocation9 + $0x48] sm:$0xff]
        %v3167 = vld [vmem:[#allocation9 + $0x50] sm:$0xff]
        %v3168 = vld [vmem:[#allocation9 + $0x58] sm:$0xff]
        %v3169 = vld [vmem:[#allocation9 + $0x60] sm:$0xff]
        %v3170 = vld [vmem:[#allocation9 + $0x68] sm:$0xff]
        %v3171 = vld [vmem:[#allocation9 + $0x70] sm:$0xff]
        %v3172 = vld [vmem:[#allocation9 + $0x78] sm:$0xff]
        %v3173 = vld [vmem:[#allocation9 + $0x80] sm:$0xff]
        %v3174 = vld [vmem:[#allocation9 + $0x88] sm:$0xff]
        %v3175 = vld [vmem:[#allocation9 + $0x90] sm:$0xff]
        %v3176 = vld [vmem:[#allocation9 + $0x98] sm:$0xff]
        %v3177 = vld [vmem:[#allocation9 + $0xa0] sm:$0xff]
        %v3178 = vld [vmem:[#allocation9 + $0xa8] sm:$0xff]
        %v3179 = vld [vmem:[#allocation9 + $0xb0] sm:$0xff]
        %v3180 = vld [vmem:[#allocation9 + $0xb8] sm:$0xff]
        %v3181 = vld [vmem:[#allocation9 + $0xc0] sm:$0xff]
        %v3182 = vld [vmem:[#allocation9 + $0xc8] sm:$0xff]
        %v3183 = vld [vmem:[#allocation9 + $0xd0] sm:$0xff]
        %v3184 = vld [vmem:[#allocation9 + $0xd8] sm:$0xff]
        %v3185 = vld [vmem:[#allocation9 + $0xe0] sm:$0xff]
        %v3186 = vld [vmem:[#allocation9 + $0xe8] sm:$0xff]
        %v3187 = vld [vmem:[#allocation9 + $0xf0] sm:$0xff]
        %v3188 = vld [vmem:[#allocation9 + $0xf8] sm:$0xff]
        %v3189 = vld [vmem:[#allocation11] sm:$0x3]
        %v3191 = vlaneseq
        %v3192 = vshrl.u32 %v3191, 7
        %v3193 = vsub.s32 0, %v3192
        %v3194 = vrot.slane %v3189, %v3193
        %v3195 = vlaneseq
        %v3196 = vshrl.u32 %v3195, 7
        %v3197 = vsub.s32 1, %v3196
        %v3198 = vrot.slane %v3189, %v3197
        %v3233 = vunpack.c.l.b16 %v3157
        %v3234 = vunpack.c.h.b16 %v3157
        %v3235 = vunpack.c.l.b16 %v3158
        %v3236 = vunpack.c.h.b16 %v3158
        %v3237 = vunpack.c.l.b16 %v3159
        %v3238 = vunpack.c.h.b16 %v3159
        %v3239 = vunpack.c.l.b16 %v3160
        %v3240 = vunpack.c.h.b16 %v3160
        %v3241 = vunpack.c.l.b16 %v3161
        %v3242 = vunpack.c.h.b16 %v3161
        %v3243 = vunpack.c.l.b16 %v3162
        %v3244 = vunpack.c.h.b16 %v3162
        %v3245 = vunpack.c.l.b16 %v3163
        %v3246 = vunpack.c.h.b16 %v3163
        %v3247 = vunpack.c.l.b16 %v3164
        %v3248 = vunpack.c.h.b16 %v3164
        %v3249 = vunpack.c.l.b16 %v3165
        %v3250 = vunpack.c.h.b16 %v3165
        %v3251 = vunpack.c.l.b16 %v3166
        %v3252 = vunpack.c.h.b16 %v3166
        %v3253 = vunpack.c.l.b16 %v3167
        %v3254 = vunpack.c.h.b16 %v3167
        %v3255 = vunpack.c.l.b16 %v3168
        %v3256 = vunpack.c.h.b16 %v3168
        %v3257 = vunpack.c.l.b16 %v3169
        %v3258 = vunpack.c.h.b16 %v3169
        %v3259 = vunpack.c.l.b16 %v3170
        %v3260 = vunpack.c.h.b16 %v3170
        %v3261 = vunpack.c.l.b16 %v3171
        %v3262 = vunpack.c.h.b16 %v3171
        %v3263 = vunpack.c.l.b16 %v3172
        %v3264 = vunpack.c.h.b16 %v3172
        %v3265 = vunpack.c.l.b16 %v3173
        %v3266 = vunpack.c.h.b16 %v3173
        %v3267 = vunpack.c.l.b16 %v3174
        %v3268 = vunpack.c.h.b16 %v3174
        %v3269 = vunpack.c.l.b16 %v3175
        %v3270 = vunpack.c.h.b16 %v3175
        %v3271 = vunpack.c.l.b16 %v3176
        %v3272 = vunpack.c.h.b16 %v3176
        %v3273 = vunpack.c.l.b16 %v3177
        %v3274 = vunpack.c.h.b16 %v3177
        %v3275 = vunpack.c.l.b16 %v3178
        %v3276 = vunpack.c.h.b16 %v3178
        %v3277 = vunpack.c.l.b16 %v3179
        %v3278 = vunpack.c.h.b16 %v3179
        %v3279 = vunpack.c.l.b16 %v3180
        %v3280 = vunpack.c.h.b16 %v3180
        %v3281 = vunpack.c.l.b16 %v3181
        %v3282 = vunpack.c.h.b16 %v3181
        %v3283 = vunpack.c.l.b16 %v3182
        %v3284 = vunpack.c.h.b16 %v3182
        %v3285 = vunpack.c.l.b16 %v3183
        %v3286 = vunpack.c.h.b16 %v3183
        %v3287 = vunpack.c.l.b16 %v3184
        %v3288 = vunpack.c.h.b16 %v3184
        %v3289 = vunpack.c.l.b16 %v3185
        %v3290 = vunpack.c.h.b16 %v3185
        %v3291 = vunpack.c.l.b16 %v3186
        %v3292 = vunpack.c.h.b16 %v3186
        %v3293 = vunpack.c.l.b16 %v3187
        %v3294 = vunpack.c.h.b16 %v3187
        %v3295 = vunpack.c.l.b16 %v3188
        %v3296 = vunpack.c.h.b16 %v3188
        %v3297 = vpack.c.b16 %v3235, %v3233
        %v3298 = vpack.c.b16 %v3236, %v3234
        %v3299 = vpack.c.b16 %v3239, %v3237
        %v3300 = vpack.c.b16 %v3240, %v3238
        %v3301 = vpack.c.b16 %v3243, %v3241
        %v3302 = vpack.c.b16 %v3244, %v3242
        %v3303 = vpack.c.b16 %v3247, %v3245
        %v3304 = vpack.c.b16 %v3248, %v3246
        %v3305 = vpack.c.b16 %v3251, %v3249
        %v3306 = vpack.c.b16 %v3252, %v3250
        %v3307 = vpack.c.b16 %v3255, %v3253
        %v3308 = vpack.c.b16 %v3256, %v3254
        %v3309 = vpack.c.b16 %v3259, %v3257
        %v3310 = vpack.c.b16 %v3260, %v3258
        %v3311 = vpack.c.b16 %v3263, %v3261
        %v3312 = vpack.c.b16 %v3264, %v3262
        %v3313 = vpack.c.b16 %v3267, %v3265
        %v3314 = vpack.c.b16 %v3268, %v3266
        %v3315 = vpack.c.b16 %v3271, %v3269
        %v3316 = vpack.c.b16 %v3272, %v3270
        %v3317 = vpack.c.b16 %v3275, %v3273
        %v3318 = vpack.c.b16 %v3276, %v3274
        %v3319 = vpack.c.b16 %v3279, %v3277
        %v3320 = vpack.c.b16 %v3280, %v3278
        %v3321 = vpack.c.b16 %v3283, %v3281
        %v3322 = vpack.c.b16 %v3284, %v3282
        %v3323 = vpack.c.b16 %v3287, %v3285
        %v3324 = vpack.c.b16 %v3288, %v3286
        %v3325 = vpack.c.b16 %v3291, %v3289
        %v3326 = vpack.c.b16 %v3292, %v3290
        %v3327 = vpack.c.b16 %v3295, %v3293
        %v3328 = vpack.c.b16 %v3296, %v3294
        %3361 = vmatprep.subr.bf16.mxu0 %v3312
        %3362 = vmatpush1.bf16.msra.mxu0 %v3311
        %3363 = vmatprep.subr.bf16.mxu0 %v3310
        %3364 = vmatpush1.bf16.msra.mxu0 %v3309
        %3365 = vmatprep.subr.bf16.mxu0 %v3308
        %3366 = vmatpush1.bf16.msra.mxu0 %v3307
        %3367 = vmatprep.subr.bf16.mxu0 %v3306
        %3368 = vmatpush1.bf16.msra.mxu0 %v3305
        %3369 = vmatprep.subr.bf16.mxu0 %v3304
        %3370 = vmatpush1.bf16.msra.mxu0 %v3303
        %3371 = vmatprep.subr.bf16.mxu0 %v3302
        %3372 = vmatpush1.bf16.msra.mxu0 %v3301
        %3373 = vmatprep.subr.bf16.mxu0 %v3300
        %3374 = vmatpush1.bf16.msra.mxu0 %v3299
        %3375 = vmatprep.subr.bf16.mxu0 %v3298
        %3376 = vmatpush1.bf16.msra.mxu0 %v3297
        %3377 = vmatprep.subr.bf16.mxu0 %v3328
        %3378 = vmatpush2.bf16.msra.mxu0 %v3327
        %3379 = vmatprep.subr.bf16.mxu0 %v3326
        %3380 = vmatpush2.bf16.msra.mxu0 %v3325
        %3381 = vmatprep.subr.bf16.mxu0 %v3324
        %3382 = vmatpush2.bf16.msra.mxu0 %v3323
        %3383 = vmatprep.subr.bf16.mxu0 %v3322
        %3384 = vmatpush2.bf16.msra.mxu0 %v3321
        %3385 = vmatprep.subr.bf16.mxu0 %v3320
        %3386 = vmatpush2.bf16.msra.mxu0 %v3319
        %3387 = vmatprep.subr.bf16.mxu0 %v3318
        %3388 = vmatpush2.bf16.msra.mxu0 %v3317
        %3389 = vmatprep.subr.bf16.mxu0 %v3316
        %3390 = vmatpush2.bf16.msra.mxu0 %v3315
        %3391 = vmatprep.subr.bf16.mxu0 %v3314
        %3392 = vmatpush2.bf16.msra.mxu0 %v3313
        %3393 = vmatprep.mubr.bf16.mxu0 %v3156
        %3394 = vmatmul.mubr.bf16.gmra.mxu0 %v3155
        %v3395 = vpop.f32.mrf.mxu0
        %v3396 = vadd.f32 %v3194, %v3395
        %v3397 = vpop.f32.mrf.mxu0
        %v3398 = vadd.f32 %v3198, %v3397
        %v3399 = vpop.f32.mrf.mxu0
        %v3400 = vadd.f32 %v3194, %v3399
        %v3401 = vpop.f32.mrf.mxu0
        %v3402 = vadd.f32 %v3198, %v3401
        %3403 = vdwg.mxu0
        %v3404 = vmax.f32 %v3396, 0.0
        %v3405 = vmax.f32 %v3398, 0.0
        %v3406 = vmax.f32 %v3400, 0.0
        %v3407 = vmax.f32 %v3402, 0.0
        %v3408 = vld [vmem:[#allocation12] sm:$0xff]
        %v3409 = vld [vmem:[#allocation12 + $0x8] sm:$0xff]
        %v3410 = vld [vmem:[#allocation12 + $0x10] sm:$0xff]
        %v3411 = vld [vmem:[#allocation12 + $0x18] sm:$0xff]
        %v3412 = vld [vmem:[#allocation12 + $0x20] sm:$0xff]
        %v3413 = vld [vmem:[#allocation12 + $0x28] sm:$0xff]
        %v3414 = vld [vmem:[#allocation12 + $0x30] sm:$0xff]
        %v3415 = vld [vmem:[#allocation12 + $0x38] sm:$0xff]
        %v3416 = vld [vmem:[#allocation12 + $0x40] sm:$0xff]
        %v3417 = vld [vmem:[#allocation12 + $0x48] sm:$0xff]
        %v3418 = vld [vmem:[#allocation12 + $0x50] sm:$0xff]
        %v3419 = vld [vmem:[#allocation12 + $0x58] sm:$0xff]
        %v3420 = vld [vmem:[#allocation12 + $0x60] sm:$0xff]
        %v3421 = vld [vmem:[#allocation12 + $0x68] sm:$0xff]
        %v3422 = vld [vmem:[#allocation12 + $0x70] sm:$0xff]
        %v3423 = vld [vmem:[#allocation12 + $0x78] sm:$0xff]
        %v3424 = vld [vmem:[#allocation12 + $0x80] sm:$0xff]
        %v3425 = vld [vmem:[#allocation12 + $0x88] sm:$0xff]
        %v3426 = vld [vmem:[#allocation12 + $0x90] sm:$0xff]
        %v3427 = vld [vmem:[#allocation12 + $0x98] sm:$0xff]
        %v3428 = vld [vmem:[#allocation12 + $0xa0] sm:$0xff]
        %v3429 = vld [vmem:[#allocation12 + $0xa8] sm:$0xff]
        %v3430 = vld [vmem:[#allocation12 + $0xb0] sm:$0xff]
        %v3431 = vld [vmem:[#allocation12 + $0xb8] sm:$0xff]
        %v3432 = vld [vmem:[#allocation12 + $0xc0] sm:$0xff]
        %v3433 = vld [vmem:[#allocation12 + $0xc8] sm:$0xff]
        %v3434 = vld [vmem:[#allocation12 + $0xd0] sm:$0xff]
        %v3435 = vld [vmem:[#allocation12 + $0xd8] sm:$0xff]
        %v3436 = vld [vmem:[#allocation12 + $0xe0] sm:$0xff]
        %v3437 = vld [vmem:[#allocation12 + $0xe8] sm:$0xff]
        %v3438 = vld [vmem:[#allocation12 + $0xf0] sm:$0xff]
        %v3439 = vld [vmem:[#allocation12 + $0xf8] sm:$0xff]
        %v3440 = vld [vmem:[#allocation14] sm:$0x3]
        %v3442 = vlaneseq
        %v3443 = vshrl.u32 %v3442, 7
        %v3444 = vsub.s32 0, %v3443
        %v3445 = vrot.slane %v3440, %v3444
        %v3446 = vlaneseq
        %v3447 = vshrl.u32 %v3446, 7
        %v3448 = vsub.s32 1, %v3447
        %v3449 = vrot.slane %v3440, %v3448
        %v3484 = vunpack.c.l.b16 %v3408
        %v3485 = vunpack.c.h.b16 %v3408
        %v3486 = vunpack.c.l.b16 %v3409
        %v3487 = vunpack.c.h.b16 %v3409
        %v3488 = vunpack.c.l.b16 %v3410
        %v3489 = vunpack.c.h.b16 %v3410
        %v3490 = vunpack.c.l.b16 %v3411
        %v3491 = vunpack.c.h.b16 %v3411
        %v3492 = vunpack.c.l.b16 %v3412
        %v3493 = vunpack.c.h.b16 %v3412
        %v3494 = vunpack.c.l.b16 %v3413
        %v3495 = vunpack.c.h.b16 %v3413
        %v3496 = vunpack.c.l.b16 %v3414
        %v3497 = vunpack.c.h.b16 %v3414
        %v3498 = vunpack.c.l.b16 %v3415
        %v3499 = vunpack.c.h.b16 %v3415
        %v3500 = vunpack.c.l.b16 %v3416
        %v3501 = vunpack.c.h.b16 %v3416
        %v3502 = vunpack.c.l.b16 %v3417
        %v3503 = vunpack.c.h.b16 %v3417
        %v3504 = vunpack.c.l.b16 %v3418
        %v3505 = vunpack.c.h.b16 %v3418
        %v3506 = vunpack.c.l.b16 %v3419
        %v3507 = vunpack.c.h.b16 %v3419
        %v3508 = vunpack.c.l.b16 %v3420
        %v3509 = vunpack.c.h.b16 %v3420
        %v3510 = vunpack.c.l.b16 %v3421
        %v3511 = vunpack.c.h.b16 %v3421
        %v3512 = vunpack.c.l.b16 %v3422
        %v3513 = vunpack.c.h.b16 %v3422
        %v3514 = vunpack.c.l.b16 %v3423
        %v3515 = vunpack.c.h.b16 %v3423
        %v3516 = vunpack.c.l.b16 %v3424
        %v3517 = vunpack.c.h.b16 %v3424
        %v3518 = vunpack.c.l.b16 %v3425
        %v3519 = vunpack.c.h.b16 %v3425
        %v3520 = vunpack.c.l.b16 %v3426
        %v3521 = vunpack.c.h.b16 %v3426
        %v3522 = vunpack.c.l.b16 %v3427
        %v3523 = vunpack.c.h.b16 %v3427
        %v3524 = vunpack.c.l.b16 %v3428
        %v3525 = vunpack.c.h.b16 %v3428
        %v3526 = vunpack.c.l.b16 %v3429
        %v3527 = vunpack.c.h.b16 %v3429
        %v3528 = vunpack.c.l.b16 %v3430
        %v3529 = vunpack.c.h.b16 %v3430
        %v3530 = vunpack.c.l.b16 %v3431
        %v3531 = vunpack.c.h.b16 %v3431
        %v3532 = vunpack.c.l.b16 %v3432
        %v3533 = vunpack.c.h.b16 %v3432
        %v3534 = vunpack.c.l.b16 %v3433
        %v3535 = vunpack.c.h.b16 %v3433
        %v3536 = vunpack.c.l.b16 %v3434
        %v3537 = vunpack.c.h.b16 %v3434
        %v3538 = vunpack.c.l.b16 %v3435
        %v3539 = vunpack.c.h.b16 %v3435
        %v3540 = vunpack.c.l.b16 %v3436
        %v3541 = vunpack.c.h.b16 %v3436
        %v3542 = vunpack.c.l.b16 %v3437
        %v3543 = vunpack.c.h.b16 %v3437
        %v3544 = vunpack.c.l.b16 %v3438
        %v3545 = vunpack.c.h.b16 %v3438
        %v3546 = vunpack.c.l.b16 %v3439
        %v3547 = vunpack.c.h.b16 %v3439
        %v3548 = vpack.c.b16 %v3486, %v3484
        %v3549 = vpack.c.b16 %v3487, %v3485
        %v3550 = vpack.c.b16 %v3490, %v3488
        %v3551 = vpack.c.b16 %v3491, %v3489
        %v3552 = vpack.c.b16 %v3494, %v3492
        %v3553 = vpack.c.b16 %v3495, %v3493
        %v3554 = vpack.c.b16 %v3498, %v3496
        %v3555 = vpack.c.b16 %v3499, %v3497
        %v3556 = vpack.c.b16 %v3502, %v3500
        %v3557 = vpack.c.b16 %v3503, %v3501
        %v3558 = vpack.c.b16 %v3506, %v3504
        %v3559 = vpack.c.b16 %v3507, %v3505
        %v3560 = vpack.c.b16 %v3510, %v3508
        %v3561 = vpack.c.b16 %v3511, %v3509
        %v3562 = vpack.c.b16 %v3514, %v3512
        %v3563 = vpack.c.b16 %v3515, %v3513
        %v3564 = vpack.c.b16 %v3518, %v3516
        %v3565 = vpack.c.b16 %v3519, %v3517
        %v3566 = vpack.c.b16 %v3522, %v3520
        %v3567 = vpack.c.b16 %v3523, %v3521
        %v3568 = vpack.c.b16 %v3526, %v3524
        %v3569 = vpack.c.b16 %v3527, %v3525
        %v3570 = vpack.c.b16 %v3530, %v3528
        %v3571 = vpack.c.b16 %v3531, %v3529
        %v3572 = vpack.c.b16 %v3534, %v3532
        %v3573 = vpack.c.b16 %v3535, %v3533
        %v3574 = vpack.c.b16 %v3538, %v3536
        %v3575 = vpack.c.b16 %v3539, %v3537
        %v3576 = vpack.c.b16 %v3542, %v3540
        %v3577 = vpack.c.b16 %v3543, %v3541
        %v3578 = vpack.c.b16 %v3546, %v3544
        %v3579 = vpack.c.b16 %v3547, %v3545
        %3612 = vmatprep.subr.bf16.mxu0 %v3563
        %3613 = vmatpush1.bf16.msra.mxu0 %v3562
        %3614 = vmatprep.subr.bf16.mxu0 %v3561
        %3615 = vmatpush1.bf16.msra.mxu0 %v3560
        %3616 = vmatprep.subr.bf16.mxu0 %v3559
        %3617 = vmatpush1.bf16.msra.mxu0 %v3558
        %3618 = vmatprep.subr.bf16.mxu0 %v3557
        %3619 = vmatpush1.bf16.msra.mxu0 %v3556
        %3620 = vmatprep.subr.bf16.mxu0 %v3555
        %3621 = vmatpush1.bf16.msra.mxu0 %v3554
        %3622 = vmatprep.subr.bf16.mxu0 %v3553
        %3623 = vmatpush1.bf16.msra.mxu0 %v3552
        %3624 = vmatprep.subr.bf16.mxu0 %v3551
        %3625 = vmatpush1.bf16.msra.mxu0 %v3550
        %3626 = vmatprep.subr.bf16.mxu0 %v3549
        %3627 = vmatpush1.bf16.msra.mxu0 %v3548
        %3628 = vmatprep.subr.bf16.mxu0 %v3579
        %3629 = vmatpush2.bf16.msra.mxu0 %v3578
        %3630 = vmatprep.subr.bf16.mxu0 %v3577
        %3631 = vmatpush2.bf16.msra.mxu0 %v3576
        %3632 = vmatprep.subr.bf16.mxu0 %v3575
        %3633 = vmatpush2.bf16.msra.mxu0 %v3574
        %3634 = vmatprep.subr.bf16.mxu0 %v3573
        %3635 = vmatpush2.bf16.msra.mxu0 %v3572
        %3636 = vmatprep.subr.bf16.mxu0 %v3571
        %3637 = vmatpush2.bf16.msra.mxu0 %v3570
        %3638 = vmatprep.subr.bf16.mxu0 %v3569
        %3639 = vmatpush2.bf16.msra.mxu0 %v3568
        %3640 = vmatprep.subr.bf16.mxu0 %v3567
        %3641 = vmatpush2.bf16.msra.mxu0 %v3566
        %3642 = vmatprep.subr.bf16.mxu0 %v3565
        %3643 = vmatpush2.bf16.msra.mxu0 %v3564
        %3644 = vmatprep.mubr.bf16.mxu0 %v3150
        %3645 = vmatmul.mubr.bf16.gmra.mxu0 %v3149
        %v3646 = vpop.f32.mrf.mxu0
        %v3647 = vadd.f32 %v3445, %v3646
        %v3648 = vpop.f32.mrf.mxu0
        %v3649 = vadd.f32 %v3449, %v3648
        %v3650 = vpop.f32.mrf.mxu0
        %v3651 = vadd.f32 %v3445, %v3650
        %v3652 = vpop.f32.mrf.mxu0
        %v3653 = vadd.f32 %v3449, %v3652
        %3654 = vdwg.mxu0
        %v3655 = vmax.f32 %v3647, 0.0
        %v3656 = vmax.f32 %v3649, 0.0
        %v3657 = vmax.f32 %v3651, 0.0
        %v3658 = vmax.f32 %v3653, 0.0
        %v3659 = vadd.f32 %v3655, %v3404
        %v3660 = vadd.f32 %v3656, %v3405
        %v3661 = vadd.f32 %v3657, %v3406
        %v3662 = vadd.f32 %v3658, %v3407
        %v3663 = vpack.c.bf16 %v3661, %v3659
        %v3664 = vpack.c.bf16 %v3662, %v3660
        %v3665 = vld [vmem:[#allocation15] sm:$0xff]
        %v3666 = vld [vmem:[#allocation15 + $0x8] sm:$0xff]
        %v3667 = vld [vmem:[#allocation15 + $0x10] sm:$0xff]
        %v3668 = vld [vmem:[#allocation15 + $0x18] sm:$0xff]
        %v3669 = vld [vmem:[#allocation15 + $0x20] sm:$0xff]
        %v3670 = vld [vmem:[#allocation15 + $0x28] sm:$0xff]
        %v3671 = vld [vmem:[#allocation15 + $0x30] sm:$0xff]
        %v3672 = vld [vmem:[#allocation15 + $0x38] sm:$0xff]
        %v3673 = vld [vmem:[#allocation15 + $0x40] sm:$0xff]
        %v3674 = vld [vmem:[#allocation15 + $0x48] sm:$0xff]
        %v3675 = vld [vmem:[#allocation15 + $0x50] sm:$0xff]
        %v3676 = vld [vmem:[#allocation15 + $0x58] sm:$0xff]
        %v3677 = vld [vmem:[#allocation15 + $0x60] sm:$0xff]
        %v3678 = vld [vmem:[#allocation15 + $0x68] sm:$0xff]
        %v3679 = vld [vmem:[#allocation15 + $0x70] sm:$0xff]
        %v3680 = vld [vmem:[#allocation15 + $0x78] sm:$0xff]
        %v3681 = vld [vmem:[#allocation15 + $0x80] sm:$0xff]
        %v3682 = vld [vmem:[#allocation15 + $0x88] sm:$0xff]
        %v3683 = vld [vmem:[#allocation15 + $0x90] sm:$0xff]
        %v3684 = vld [vmem:[#allocation15 + $0x98] sm:$0xff]
        %v3685 = vld [vmem:[#allocation15 + $0xa0] sm:$0xff]
        %v3686 = vld [vmem:[#allocation15 + $0xa8] sm:$0xff]
        %v3687 = vld [vmem:[#allocation15 + $0xb0] sm:$0xff]
        %v3688 = vld [vmem:[#allocation15 + $0xb8] sm:$0xff]
        %v3689 = vld [vmem:[#allocation15 + $0xc0] sm:$0xff]
        %v3690 = vld [vmem:[#allocation15 + $0xc8] sm:$0xff]
        %v3691 = vld [vmem:[#allocation15 + $0xd0] sm:$0xff]
        %v3692 = vld [vmem:[#allocation15 + $0xd8] sm:$0xff]
        %v3693 = vld [vmem:[#allocation15 + $0xe0] sm:$0xff]
        %v3694 = vld [vmem:[#allocation15 + $0xe8] sm:$0xff]
        %v3695 = vld [vmem:[#allocation15 + $0xf0] sm:$0xff]
        %v3696 = vld [vmem:[#allocation15 + $0xf8] sm:$0xff]
        %v3697 = vld [vmem:[#allocation17] sm:$0x3]
        %v3699 = vlaneseq
        %v3700 = vshrl.u32 %v3699, 7
        %v3701 = vsub.s32 0, %v3700
        %v3702 = vrot.slane %v3697, %v3701
        %v3703 = vlaneseq
        %v3704 = vshrl.u32 %v3703, 7
        %v3705 = vsub.s32 1, %v3704
        %v3706 = vrot.slane %v3697, %v3705
        %v3741 = vunpack.c.l.b16 %v3665
        %v3742 = vunpack.c.h.b16 %v3665
        %v3743 = vunpack.c.l.b16 %v3666
        %v3744 = vunpack.c.h.b16 %v3666
        %v3745 = vunpack.c.l.b16 %v3667
        %v3746 = vunpack.c.h.b16 %v3667
        %v3747 = vunpack.c.l.b16 %v3668
        %v3748 = vunpack.c.h.b16 %v3668
        %v3749 = vunpack.c.l.b16 %v3669
        %v3750 = vunpack.c.h.b16 %v3669
        %v3751 = vunpack.c.l.b16 %v3670
        %v3752 = vunpack.c.h.b16 %v3670
        %v3753 = vunpack.c.l.b16 %v3671
        %v3754 = vunpack.c.h.b16 %v3671
        %v3755 = vunpack.c.l.b16 %v3672
        %v3756 = vunpack.c.h.b16 %v3672
        %v3757 = vunpack.c.l.b16 %v3673
        %v3758 = vunpack.c.h.b16 %v3673
        %v3759 = vunpack.c.l.b16 %v3674
        %v3760 = vunpack.c.h.b16 %v3674
        %v3761 = vunpack.c.l.b16 %v3675
        %v3762 = vunpack.c.h.b16 %v3675
        %v3763 = vunpack.c.l.b16 %v3676
        %v3764 = vunpack.c.h.b16 %v3676
        %v3765 = vunpack.c.l.b16 %v3677
        %v3766 = vunpack.c.h.b16 %v3677
        %v3767 = vunpack.c.l.b16 %v3678
        %v3768 = vunpack.c.h.b16 %v3678
        %v3769 = vunpack.c.l.b16 %v3679
        %v3770 = vunpack.c.h.b16 %v3679
        %v3771 = vunpack.c.l.b16 %v3680
        %v3772 = vunpack.c.h.b16 %v3680
        %v3773 = vunpack.c.l.b16 %v3681
        %v3774 = vunpack.c.h.b16 %v3681
        %v3775 = vunpack.c.l.b16 %v3682
        %v3776 = vunpack.c.h.b16 %v3682
        %v3777 = vunpack.c.l.b16 %v3683
        %v3778 = vunpack.c.h.b16 %v3683
        %v3779 = vunpack.c.l.b16 %v3684
        %v3780 = vunpack.c.h.b16 %v3684
        %v3781 = vunpack.c.l.b16 %v3685
        %v3782 = vunpack.c.h.b16 %v3685
        %v3783 = vunpack.c.l.b16 %v3686
        %v3784 = vunpack.c.h.b16 %v3686
        %v3785 = vunpack.c.l.b16 %v3687
        %v3786 = vunpack.c.h.b16 %v3687
        %v3787 = vunpack.c.l.b16 %v3688
        %v3788 = vunpack.c.h.b16 %v3688
        %v3789 = vunpack.c.l.b16 %v3689
        %v3790 = vunpack.c.h.b16 %v3689
        %v3791 = vunpack.c.l.b16 %v3690
        %v3792 = vunpack.c.h.b16 %v3690
        %v3793 = vunpack.c.l.b16 %v3691
        %v3794 = vunpack.c.h.b16 %v3691
        %v3795 = vunpack.c.l.b16 %v3692
        %v3796 = vunpack.c.h.b16 %v3692
        %v3797 = vunpack.c.l.b16 %v3693
        %v3798 = vunpack.c.h.b16 %v3693
        %v3799 = vunpack.c.l.b16 %v3694
        %v3800 = vunpack.c.h.b16 %v3694
        %v3801 = vunpack.c.l.b16 %v3695
        %v3802 = vunpack.c.h.b16 %v3695
        %v3803 = vunpack.c.l.b16 %v3696
        %v3804 = vunpack.c.h.b16 %v3696
        %v3805 = vpack.c.b16 %v3743, %v3741
        %v3806 = vpack.c.b16 %v3744, %v3742
        %v3807 = vpack.c.b16 %v3747, %v3745
        %v3808 = vpack.c.b16 %v3748, %v3746
        %v3809 = vpack.c.b16 %v3751, %v3749
        %v3810 = vpack.c.b16 %v3752, %v3750
        %v3811 = vpack.c.b16 %v3755, %v3753
        %v3812 = vpack.c.b16 %v3756, %v3754
        %v3813 = vpack.c.b16 %v3759, %v3757
        %v3814 = vpack.c.b16 %v3760, %v3758
        %v3815 = vpack.c.b16 %v3763, %v3761
        %v3816 = vpack.c.b16 %v3764, %v3762
        %v3817 = vpack.c.b16 %v3767, %v3765
        %v3818 = vpack.c.b16 %v3768, %v3766
        %v3819 = vpack.c.b16 %v3771, %v3769
        %v3820 = vpack.c.b16 %v3772, %v3770
        %v3821 = vpack.c.b16 %v3775, %v3773
        %v3822 = vpack.c.b16 %v3776, %v3774
        %v3823 = vpack.c.b16 %v3779, %v3777
        %v3824 = vpack.c.b16 %v3780, %v3778
        %v3825 = vpack.c.b16 %v3783, %v3781
        %v3826 = vpack.c.b16 %v3784, %v3782
        %v3827 = vpack.c.b16 %v3787, %v3785
        %v3828 = vpack.c.b16 %v3788, %v3786
        %v3829 = vpack.c.b16 %v3791, %v3789
        %v3830 = vpack.c.b16 %v3792, %v3790
        %v3831 = vpack.c.b16 %v3795, %v3793
        %v3832 = vpack.c.b16 %v3796, %v3794
        %v3833 = vpack.c.b16 %v3799, %v3797
        %v3834 = vpack.c.b16 %v3800, %v3798
        %v3835 = vpack.c.b16 %v3803, %v3801
        %v3836 = vpack.c.b16 %v3804, %v3802
        %3869 = vmatprep.subr.bf16.mxu0 %v3820
        %3870 = vmatpush1.bf16.msra.mxu0 %v3819
        %3871 = vmatprep.subr.bf16.mxu0 %v3818
        %3872 = vmatpush1.bf16.msra.mxu0 %v3817
        %3873 = vmatprep.subr.bf16.mxu0 %v3816
        %3874 = vmatpush1.bf16.msra.mxu0 %v3815
        %3875 = vmatprep.subr.bf16.mxu0 %v3814
        %3876 = vmatpush1.bf16.msra.mxu0 %v3813
        %3877 = vmatprep.subr.bf16.mxu0 %v3812
        %3878 = vmatpush1.bf16.msra.mxu0 %v3811
        %3879 = vmatprep.subr.bf16.mxu0 %v3810
        %3880 = vmatpush1.bf16.msra.mxu0 %v3809
        %3881 = vmatprep.subr.bf16.mxu0 %v3808
        %3882 = vmatpush1.bf16.msra.mxu0 %v3807
        %3883 = vmatprep.subr.bf16.mxu0 %v3806
        %3884 = vmatpush1.bf16.msra.mxu0 %v3805
        %3885 = vmatprep.subr.bf16.mxu0 %v3836
        %3886 = vmatpush2.bf16.msra.mxu0 %v3835
        %3887 = vmatprep.subr.bf16.mxu0 %v3834
        %3888 = vmatpush2.bf16.msra.mxu0 %v3833
        %3889 = vmatprep.subr.bf16.mxu0 %v3832
        %3890 = vmatpush2.bf16.msra.mxu0 %v3831
        %3891 = vmatprep.subr.bf16.mxu0 %v3830
        %3892 = vmatpush2.bf16.msra.mxu0 %v3829
        %3893 = vmatprep.subr.bf16.mxu0 %v3828
        %3894 = vmatpush2.bf16.msra.mxu0 %v3827
        %3895 = vmatprep.subr.bf16.mxu0 %v3826
        %3896 = vmatpush2.bf16.msra.mxu0 %v3825
        %3897 = vmatprep.subr.bf16.mxu0 %v3824
        %3898 = vmatpush2.bf16.msra.mxu0 %v3823
        %3899 = vmatprep.subr.bf16.mxu0 %v3822
        %3900 = vmatpush2.bf16.msra.mxu0 %v3821
        %3901 = vmatprep.mubr.bf16.mxu0 %v3664
        %3902 = vmatmul.mubr.bf16.gmra.mxu0 %v3663
        %v3903 = vpop.f32.mrf.mxu0
        %v3904 = vadd.f32 %v3702, %v3903
        %v3905 = vpop.f32.mrf.mxu0
        %v3906 = vadd.f32 %v3706, %v3905
        %v3907 = vpop.f32.mrf.mxu0
        %v3908 = vadd.f32 %v3702, %v3907
        %v3909 = vpop.f32.mrf.mxu0
        %v3910 = vadd.f32 %v3706, %v3909
        %3911 = vdwg.mxu0
        %v3912 = vmax.f32 %v3904, 0.0
        %v3913 = vmax.f32 %v3906, 0.0
        %v3914 = vmax.f32 %v3908, 0.0
        %v3915 = vmax.f32 %v3910, 0.0
        %3916 = vst [vmem:[%s567] sm:$0xff] %v3912
        %3917 = vst [vmem:[%s567 + $0x8] sm:$0xff] %v3913
        %3918 = vst [vmem:[%s567 + $0x10] sm:$0xff] %v3914
        %3919 = vst [vmem:[%s567 + $0x18] sm:$0xff] %v3915
        %v3920 = vpack.c.bf16 %v3914, %v3912
        %v3921 = vpack.c.bf16 %v3915, %v3913
        %v3922 = vld [vmem:[#allocation18] sm:$0xf]
        %v3923 = vld [vmem:[#allocation18 + $0x4] sm:$0xf]
        %v3924 = vld [vmem:[#allocation18 + $0x8] sm:$0xf]
        %v3925 = vld [vmem:[#allocation18 + $0xc] sm:$0xf]
        %v3926 = vld [vmem:[#allocation18 + $0x10] sm:$0xf]
        %v3927 = vld [vmem:[#allocation18 + $0x14] sm:$0xf]
        %v3928 = vld [vmem:[#allocation18 + $0x18] sm:$0xf]
        %v3929 = vld [vmem:[#allocation18 + $0x1c] sm:$0xf]
        %v3930 = vld [vmem:[#allocation18 + $0x20] sm:$0xf]
        %v3931 = vld [vmem:[#allocation18 + $0x24] sm:$0xf]
        %v3932 = vld [vmem:[#allocation18 + $0x28] sm:$0xf]
        %v3933 = vld [vmem:[#allocation18 + $0x2c] sm:$0xf]
        %v3934 = vld [vmem:[#allocation18 + $0x30] sm:$0xf]
        %v3935 = vld [vmem:[#allocation18 + $0x34] sm:$0xf]
        %v3936 = vld [vmem:[#allocation18 + $0x38] sm:$0xf]
        %v3937 = vld [vmem:[#allocation18 + $0x3c] sm:$0xf]
        %v3938 = vld [vmem:[#allocation18 + $0x40] sm:$0xf]
        %v3939 = vld [vmem:[#allocation18 + $0x44] sm:$0xf]
        %v3940 = vld [vmem:[#allocation18 + $0x48] sm:$0xf]
        %v3941 = vld [vmem:[#allocation18 + $0x4c] sm:$0xf]
        %v3942 = vld [vmem:[#allocation18 + $0x50] sm:$0xf]
        %v3943 = vld [vmem:[#allocation18 + $0x54] sm:$0xf]
        %v3944 = vld [vmem:[#allocation18 + $0x58] sm:$0xf]
        %v3945 = vld [vmem:[#allocation18 + $0x5c] sm:$0xf]
        %v3946 = vld [vmem:[#allocation18 + $0x60] sm:$0xf]
        %v3947 = vld [vmem:[#allocation18 + $0x64] sm:$0xf]
        %v3948 = vld [vmem:[#allocation18 + $0x68] sm:$0xf]
        %v3949 = vld [vmem:[#allocation18 + $0x6c] sm:$0xf]
        %v3950 = vld [vmem:[#allocation18 + $0x70] sm:$0xf]
        %v3951 = vld [vmem:[#allocation18 + $0x74] sm:$0xf]
        %v3952 = vld [vmem:[#allocation18 + $0x78] sm:$0xf]
        %v3953 = vld [vmem:[#allocation18 + $0x7c] sm:$0xf]
        %v3954 = vld [vmem:[#allocation20] sm:$0x1]
        %v3956 = vlaneseq
        %v3957 = vshrl.u32 %v3956, 7
        %v3958 = vsub.s32 0, %v3957
        %v3959 = vrot.slane %v3954, %v3958
        %v3993 = vunpack.c.l.b16 %v3922
        %v3994 = vunpack.c.l.b16 %v3923
        %v3995 = vunpack.c.l.b16 %v3924
        %v3996 = vunpack.c.l.b16 %v3925
        %v3997 = vunpack.c.l.b16 %v3926
        %v3998 = vunpack.c.l.b16 %v3927
        %v3999 = vunpack.c.l.b16 %v3928
        %v4000 = vunpack.c.l.b16 %v3929
        %v4001 = vunpack.c.l.b16 %v3930
        %v4002 = vunpack.c.l.b16 %v3931
        %v4003 = vunpack.c.l.b16 %v3932
        %v4004 = vunpack.c.l.b16 %v3933
        %v4005 = vunpack.c.l.b16 %v3934
        %v4006 = vunpack.c.l.b16 %v3935
        %v4007 = vunpack.c.l.b16 %v3936
        %v4008 = vunpack.c.l.b16 %v3937
        %v4009 = vunpack.c.l.b16 %v3938
        %v4010 = vunpack.c.l.b16 %v3939
        %v4011 = vunpack.c.l.b16 %v3940
        %v4012 = vunpack.c.l.b16 %v3941
        %v4013 = vunpack.c.l.b16 %v3942
        %v4014 = vunpack.c.l.b16 %v3943
        %v4015 = vunpack.c.l.b16 %v3944
        %v4016 = vunpack.c.l.b16 %v3945
        %v4017 = vunpack.c.l.b16 %v3946
        %v4018 = vunpack.c.l.b16 %v3947
        %v4019 = vunpack.c.l.b16 %v3948
        %v4020 = vunpack.c.l.b16 %v3949
        %v4021 = vunpack.c.l.b16 %v3950
        %v4022 = vunpack.c.l.b16 %v3951
        %v4023 = vunpack.c.l.b16 %v3952
        %v4024 = vunpack.c.l.b16 %v3953
        %v4025 = vpack.c.b16 %v3994, %v3993
        %v4026 = vpack.c.b16 %v3996, %v3995
        %v4027 = vpack.c.b16 %v3998, %v3997
        %v4028 = vpack.c.b16 %v4000, %v3999
        %v4029 = vpack.c.b16 %v4002, %v4001
        %v4030 = vpack.c.b16 %v4004, %v4003
        %v4031 = vpack.c.b16 %v4006, %v4005
        %v4032 = vpack.c.b16 %v4008, %v4007
        %v4033 = vpack.c.b16 %v4010, %v4009
        %v4034 = vpack.c.b16 %v4012, %v4011
        %v4035 = vpack.c.b16 %v4014, %v4013
        %v4036 = vpack.c.b16 %v4016, %v4015
        %v4037 = vpack.c.b16 %v4018, %v4017
        %v4038 = vpack.c.b16 %v4020, %v4019
        %v4039 = vpack.c.b16 %v4022, %v4021
        %v4040 = vpack.c.b16 %v4024, %v4023
        %4057 = vmatprep.subr.bf16.mxu0 0
        %4058 = vmatpush1.bf16.msra.mxu0 %v4032
        %4059 = vmatprep.subr.bf16.mxu0 0
        %4060 = vmatpush1.bf16.msra.mxu0 %v4031
        %4061 = vmatprep.subr.bf16.mxu0 0
        %4062 = vmatpush1.bf16.msra.mxu0 %v4030
        %4063 = vmatprep.subr.bf16.mxu0 0
        %4064 = vmatpush1.bf16.msra.mxu0 %v4029
        %4065 = vmatprep.subr.bf16.mxu0 0
        %4066 = vmatpush1.bf16.msra.mxu0 %v4028
        %4067 = vmatprep.subr.bf16.mxu0 0
        %4068 = vmatpush1.bf16.msra.mxu0 %v4027
        %4069 = vmatprep.subr.bf16.mxu0 0
        %4070 = vmatpush1.bf16.msra.mxu0 %v4026
        %4071 = vmatprep.subr.bf16.mxu0 0
        %4072 = vmatpush1.bf16.msra.mxu0 %v4025
        %4073 = vmatprep.subr.bf16.mxu0 0
        %4074 = vmatpush2.bf16.msra.mxu0 %v4040
        %4075 = vmatprep.subr.bf16.mxu0 0
        %4076 = vmatpush2.bf16.msra.mxu0 %v4039
        %4077 = vmatprep.subr.bf16.mxu0 0
        %4078 = vmatpush2.bf16.msra.mxu0 %v4038
        %4079 = vmatprep.subr.bf16.mxu0 0
        %4080 = vmatpush2.bf16.msra.mxu0 %v4037
        %4081 = vmatprep.subr.bf16.mxu0 0
        %4082 = vmatpush2.bf16.msra.mxu0 %v4036
        %4083 = vmatprep.subr.bf16.mxu0 0
        %4084 = vmatpush2.bf16.msra.mxu0 %v4035
        %4085 = vmatprep.subr.bf16.mxu0 0
        %4086 = vmatpush2.bf16.msra.mxu0 %v4034
        %4087 = vmatprep.subr.bf16.mxu0 0
        %4088 = vmatpush2.bf16.msra.mxu0 %v4033
        %4089 = vmatprep.mubr.bf16.mxu0 %v3921
        %4090 = vmatmul.mubr.bf16.gmra.mxu0 %v3920
        %v4091 = vpop.f32.mrf.mxu0
        %v4092 = vadd.f32 %v3959, %v4091
        %v4093 = vpop.f32.mrf.mxu0
        %v4094 = vpop.f32.mrf.mxu0
        %v4095 = vadd.f32 %v3959, %v4094
        %v4096 = vpop.f32.mrf.mxu0
        %4097 = vdwg.mxu0
        %v4098 = vxor.u32 %v4092, 2147483648
        %v4099 = vxor.u32 %v4095, 2147483648
        %v4100 = vmul.f32 %v4098, 1.442695
        %v4101 = vpow.pop %v4100
        %v4102 = vmul.f32 %v4099, 1.442695
        %v4103 = vpow.pop %v4102
        %v4104 = vadd.f32 %v4101, 1.0
        %v4105 = vadd.f32 %v4103, 1.0
        %v4106 = vrcp.pop %v4104
        %v4107 = vmul.f32 1.0, %v4106
        %v4108 = vrcp.pop %v4105
        %v4109 = vmul.f32 1.0, %v4108
        %v4110 = vpack.c.bf16 %v4109, %v4107
        %v4112 = vunpack.c.l.b16 %v4110
        %v4113 = vunpack.c.h.b16 %v4110
        %v4114 = vpack.c.b16 %v4112, %v4112
        %v4115 = vpack.c.b16 %v4113, %v4113
        %4118 = vst [vmem:[%s579] sm:$0xf] %v4114
        %4119 = vst [vmem:[%s579 + $0x4] sm:$0xf] %v4115
        %s4120 = sand.u32 %s279, 1
        %s4121 = scalar_lea.sflag [#allocation5], %s4120
        %s4122 = sand.u32 %s279, 1
        %s4123 = smul.addr %s4122, 32
        %s4124 = scalar_lea.vmem [#allocation21], %s4123
        %p4125 = scmp.lt.s32.totalorder %s35, 1
        %s4126 = scalar_select %p4125, %s35, 1
        %s4127 = smul.addr %s4126, 2
        %s4128 = smul.addr %s4127, 4
        %s4129 = scalar_lea.vmem %s12, %s4128
        // Predicated region
        $region109: #{model_sequence_forward.1} parent=63 // pred_check
          %p4130 = pneg %p289
        $region110: #{model_sequence_forward.1} parent=63 // pred_check_branch
          %4132 = sbr.rel (%p4130) target = $region112
        $region111: #{model_sequence_forward.1} parent=63 // pred_region
          %s4134 = ssub.s32 512, 512
          %4135 = vsyncadd %s4121, %s4134
          %s4136 = smul.addr %s35, 4
          %s4137 = smul.addr %s4136, 128
          %s4138 = scalar_lea.hbm %s11, %s4137
          %s4139 = sshll.u32 %s4124, 4
          %s4140 = int_to_ptr.vmem [resolvable:$true] %s4139
          %4145 = dma.vmem_to_hbm [thread:$0]  %s4140, 512, %s4138, %s4121, 256, 256, 16
        $region112: #{model_sequence_forward.1} parent=63 // pred_fallthru
          _
        // Predicated region
        $region113: #{model_sequence_forward.1} parent=63 // pred_check
          %p4146 = pneg %p315
        $region114: #{model_sequence_forward.1} parent=63 // pred_check_branch
          %4148 = sbr.rel (%p4146) target = $region116
        $region115: #{model_sequence_forward.1} parent=63 // pred_region
          _
        $region116: #{model_sequence_forward.1} parent=63 // pred_fallthru
          _
      $region64: #{model_sequence_forward.1} parent=5 // pred_fallthru
        _
      %p4149 = scmp.le.s32.totalorder 2, %s30
      // Predicated region
      $region117: #{model_sequence_forward.1} parent=5 // pred_check
        %p4150 = pneg %p4149
      $region118: #{model_sequence_forward.1} parent=5 // pred_check_branch
        %4152 = sbr.rel (%p4150) target = $region120
      $region119: #{model_sequence_forward.1} parent=5 // pred_region
        %s4153 = ssub.s32 %s30, 2
        // Predicated region
        $region121: #{model_sequence_forward.1} parent=119 // pred_check
          %p4154 = pneg %p295
        $region122: #{model_sequence_forward.1} parent=119 // pred_check_branch
          %4156 = sbr.rel (%p4154) target = $region124
        $region123: #{model_sequence_forward.1} parent=119 // pred_region
          %s4157 = sand.u32 %s280, 1
          %s4158 = scalar_lea.sflag [#allocation5], %s4157
          %s4159 = sand.u32 %s280, 1
          %s4160 = smul.addr %s4159, 32
          %s4161 = scalar_lea.vmem [#allocation21], %s4160
          %4162 = dma.done %s4158, 512
        $region124: #{model_sequence_forward.1} parent=119 // pred_fallthru
          _
        // Predicated region
        $region125: #{model_sequence_forward.1} parent=119 // pred_check
          %p4163 = pneg %p321
        $region126: #{model_sequence_forward.1} parent=119 // pred_check_branch
          %4165 = sbr.rel (%p4163) target = $region128
        $region127: #{model_sequence_forward.1} parent=119 // pred_region
          %p4166 = scmp.lt.s32.totalorder %s36, 1
          %s4167 = scalar_select %p4166, %s36, 1
          %s4168 = smul.addr %s4167, 2
          %s4169 = smul.addr %s4168, 4
          %s4170 = scalar_lea.vmem %s12, %s4169
        $region128: #{model_sequence_forward.1} parent=119 // pred_fallthru
          _
      $region120: #{model_sequence_forward.1} parent=5 // pred_fallthru
        _
    $region6: #{model_sequence_forward.1} parent=1 // loop_footer
      %s34 = sadd.s32 1, %s30
    $region7: #{model_sequence_forward.1} parent=1 // loop_footer_branch
      %29 = sbr.rel target = $region3
    $region8: #{model_sequence_forward.1} parent=1 // loop_exit
      _
    %4171 = vsyncpa [#allocation4], 1
    %s4172 = scalar_lea.sflag [#allocation4], 1
    %4173 = vsyncpa %s4172, 1
    %4174 = vsyncpa [#allocation7], 1
    %4175 = vsyncpa [#allocation10], 1
    %4176 = vsyncpa [#allocation13], 1
    %4177 = vsyncpa [#allocation16], 1
    %4178 = vsyncpa [#allocation19], 1
    %4179 = vsyncpa [#allocation5], 1
    %s4180 = scalar_lea.sflag [#allocation5], 1
    %4181 = vsyncpa %s4180, 1

</llo_original>
